<compile_context>
chip_gen: v5e
topology: v5e:2x2
jax: 0.10.0
libtpu: 0.0.40
codegen_flags: <defaults>
</compile_context>

<pallas_src>
import functools

import jax
import jax.numpy as jnp
from jax import lax
from jax.experimental import pallas as pl
from jax.experimental.pallas import tpu as pltpu

MATMUL_DTYPE = jnp.bfloat16   # MXU operand dtype (set jnp.float32 for exact f32 matmuls)
_LANE = 128
_SUBLANE = 8

_LAYER_DIMS = [(34 * 34 * 2, 64), (64, 512), (512, 512), (512, 10)]
_LAYER_CFGS = (
    dict(threshold=0.1, current_decay=1.0, voltage_decay=0.01),
    dict(threshold=0.1, current_decay=1.0, voltage_decay=0.01),
    dict(threshold=0.1, current_decay=1.0, voltage_decay=0.01),
    dict(threshold=1e5, current_decay=1.0, voltage_decay=0.01),
)


def _round_up(n, m):
    return ((n + m - 1) // m) * m


# ---------------------------------------------------------------------------
# In-kernel CUBA leaky-integrate-and-fire scan.
# ---------------------------------------------------------------------------
def _cuba_scan(z_ref, out_ref, *, T, B, C, threshold, current_decay,
               voltage_decay, emit_spikes):
    """Sequential CUBA scan over T steps.

    z_ref:   [T, B, >=C] f32 synapse drive (only lanes [0, C) are read).
    out_ref: [T, B, C]   spike (bf16) or membrane-voltage (f32) output.
    B % 8 == 0 and C % 128 == 0, so every per-step load/store is a full aligned tile.
    """
    vd = jnp.float32(1.0 - voltage_decay)
    thr = jnp.float32(threshold)
    decay_cur = (current_decay != 1.0)        # this model: current_decay == 1 -> I[t] = z[t]
    cd = jnp.float32(1.0 - current_decay)

    def step(t, carry):
        if decay_cur:
            volt, cur = carry
        else:
            volt = carry
        z_t = z_ref[t, :, 0:C].astype(jnp.float32)
        if decay_cur:
            cur = cd * cur + z_t
            i_t = cur
        else:
            i_t = z_t
        volt = vd * volt + i_t                # pre-reset membrane voltage
        spk = volt >= thr
        if emit_spikes:
            out_ref[t] = spk.astype(out_ref.dtype)
        else:
            out_ref[t] = volt.astype(out_ref.dtype)   # report pre-reset V
        volt = jnp.where(spk, 0.0, volt)      # carried state resets where spiked
        return (volt, cur) if decay_cur else volt

    zero = jnp.zeros((B, C), jnp.float32)
    carry = (zero, zero) if decay_cur else zero
    if T <= 32:                               # small T: full unroll (static offsets)
        for t in range(T):
            carry = step(t, carry)
    else:                                     # large T: bounded live ranges
        lax.fori_loop(0, T, step, carry, unroll=2)


# ---------------------------------------------------------------------------
# Fused 4-layer kernel (one grid step == one batch chunk of BBLK samples).
# ---------------------------------------------------------------------------
def _snn_fused_kernel(x_ref, w1_ref, w2_ref, w3_ref, w4_ref, v_ref,
                      z_ref, s1_ref, s2_ref, s3_ref, *, T, BBLK, cfgs):
    f32 = jnp.float32
    M = T * BBLK

    def dense(a_ref, w_ref):
        """Synapse matmul hoisted over all T*BBLK rows (one MXU matmul per layer)."""
        cin, cout = w_ref.shape
        a = a_ref[...].reshape(M, cin)                       # collapse (T, BBLK) -> rows
        z = jnp.dot(a, w_ref[...], preferred_element_type=f32)
        z_ref[:, :, :cout] = z.reshape(T, BBLK, cout)        # f32 drive into shared scratch
        return cout

    def cuba(out_ref, cout, emit_spikes, cfg):
        _cuba_scan(z_ref, out_ref, T=T, B=BBLK, C=cout,
                   emit_spikes=emit_spikes, **cfg)

    cuba(s1_ref, dense(x_ref, w1_ref), True, cfgs[0])    # Dense(2432p->128p) + CUBA spikes
    cuba(s2_ref, dense(s1_ref, w2_ref), True, cfgs[1])   # Dense(128p ->512 ) + CUBA spikes
    cuba(s3_ref, dense(s2_ref, w3_ref), True, cfgs[2])   # Dense(512  ->512 ) + CUBA spikes
    cuba(v_ref, dense(s3_ref, w4_ref), False, cfgs[3])   # Dense(512  ->128p) -> membrane V


def _vmem_budget_bytes(T, BBLK, cin_p, p1, p2, p3, p4):
    """Scoped-VMEM budget from the real per-chunk footprint (generation-aware sizing)."""
    wsz = jnp.finfo(MATMUL_DTYPE).bits // 8
    x_blk = T * BBLK * cin_p * wsz
    out_blk = T * BBLK * p4 * 4
    weights = (cin_p * p1 + p1 * p2 + p2 * p3 + p3 * p4) * wsz
    scratch = T * BBLK * max(p1, p2, p3, p4) * 4 + T * BBLK * (p1 + p2 + p3) * wsz
    total = 2 * (x_blk + out_blk + weights) + scratch     # in/out blocks double-buffered
    return int(min(max(int(total * 1.25), 8 * 1024 * 1024), 120 * 1024 * 1024))


def _snn_fused_call(x, w1, w2, w3, w4, *, T, BBLK, cfgs):
    """x: [T, B_pad, Cin_pad] bf16; weights padded/bf16 -> V: [T, B_pad, Cout_pad] f32."""
    Tn, B_pad, cin_p = x.shape
    assert Tn == T and B_pad % BBLK == 0
    p1, p2, p3, p4 = (w.shape[1] for w in (w1, w2, w3, w4))
    nchunks = B_pad // BBLK

    kernel = functools.partial(_snn_fused_kernel, T=T, BBLK=BBLK, cfgs=cfgs)
    const = lambda i: (0, 0)   # weights: one block, fetched once, resident across chunks

    grid_spec = pltpu.PrefetchScalarGridSpec(
        num_scalar_prefetch=0,
        grid=(nchunks,),
        in_specs=[
            pl.BlockSpec((T, BBLK, cin_p), lambda i: (0, i, 0)),   # input spikes, per chunk
            pl.BlockSpec((cin_p, p1), const),
            pl.BlockSpec((p1, p2), const),
            pl.BlockSpec((p2, p3), const),
            pl.BlockSpec((p3, p4), const),
        ],
        out_specs=pl.BlockSpec((T, BBLK, p4), lambda i: (0, i, 0)),
        scratch_shapes=[
            pltpu.VMEM((T, BBLK, max(p1, p2, p3, p4)), jnp.float32),  # shared synapse drive z
            pltpu.VMEM((T, BBLK, p1), MATMUL_DTYPE),                  # layer-1 spikes (bf16)
            pltpu.VMEM((T, BBLK, p2), MATMUL_DTYPE),                  # layer-2 spikes
            pltpu.VMEM((T, BBLK, p3), MATMUL_DTYPE),                  # layer-3 spikes
        ],
    )
    return pl.pallas_call(
        kernel,
        out_shape=jax.ShapeDtypeStruct((T, B_pad, p4), jnp.float32),
        grid_spec=grid_spec,
        compiler_params=pltpu.CompilerParams(
            dimension_semantics=("parallel",),     # shard batch chunks across v7x's 2 TCs
            vmem_limit_bytes=_vmem_budget_bytes(T, BBLK, cin_p, p1, p2, p3, p4),
        ),
    )(x, w1, w2, w3, w4)


# ---------------------------------------------------------------------------
# Host-side glue: one-time weight prep + thin per-call wrapper.
# ---------------------------------------------------------------------------
def init_weights(key):
    """Deterministic synthetic weights. slayer stores [out, in]; we keep [in, out]."""
    weights = []
    for i, (cin, cout) in enumerate(_LAYER_DIMS):
        k = jax.random.fold_in(key, i)
        weights.append(0.05 * jax.random.normal(k, (cin, cout), dtype=jnp.float32))
    return weights


def prepare_weights(weights):
    """One-time weight prep: pad feature dims to 128 multiples + cast to MXU dtype.

    Hoisted out of the jitted forward (perf review #1): per-call wrapper work is now
    just the input transpose/pad.
    """
    pads = [_round_up(_LAYER_DIMS[0][0], _LANE)] + [
        _round_up(cout, _LANE) for _, cout in _LAYER_DIMS]
    prepped = []
    for w, rp, cp in zip(weights, pads[:-1], pads[1:]):
        wp = jnp.pad(w, ((0, rp - w.shape[0]), (0, cp - w.shape[1]))).astype(MATMUL_DTYPE)
        prepped.append(wp)
    return tuple(prepped)


def snn_forward(spike_bct, prepared_weights):
    """spike_bct: [B, 2312, T] (slayer NCT) -> membrane voltage V: [B, 10, T]."""
    B, c_in, T = spike_bct.shape
    w1p, w2p, w3p, w4p = prepared_weights
    c_out = _LAYER_DIMS[-1][1]
    cin_p = w1p.shape[0]

    # Sublane-aligned batch chunk: padded rows never spike (zero drive < threshold)
    # and are sliced off below, so semantics are unchanged.
    BBLK = min(64, _round_up(B, _SUBLANE))
    B_pad = _round_up(B, BBLK)

    # Time-major layout [T, B_pad, Cin_pad]: each chunk's rows are contiguous and each
    # CUBA timestep touches one full aligned (BBLK, C) tile inside the kernel.
    x = jnp.transpose(spike_bct, (2, 0, 1))                          # [T, B, Cin]
    x = jnp.pad(x, ((0, 0), (0, B_pad - B), (0, cin_p - c_in))).astype(MATMUL_DTYPE)

    v = _snn_fused_call(x, w1p, w2p, w3p, w4p, T=T, BBLK=BBLK, cfgs=_LAYER_CFGS)
    v = v[:, :B, :c_out]                       # strip batch / lane padding: [T, B, 10]
    return jnp.transpose(v, (1, 2, 0))         # [B, 10, T]


if __name__ == "__main__":
    key = jax.random.PRNGKey(0)
    k_w, k_x = jax.random.split(key)

    B, C_IN, T = 2, 34 * 34 * 2, 8
    # Binary input spike train, slayer NCT layout.
    spike_in = jax.random.bernoulli(k_x, p=0.3, shape=(B, C_IN, T)).astype(jnp.float32)

    weights = init_weights(k_w)
    prepared = prepare_weights(weights)        # one-time: padded + bf16 weights

    fwd = jax.jit(snn_forward)
    V = jax.block_until_ready(fwd(spike_in, prepared))

    assert V.shape == (B, 10, T), V.shape
    assert V.dtype == jnp.float32
    assert bool(jnp.all(jnp.isfinite(V)))
    print("KERNEL_OK")
</pallas_src>

<mosaic_0001>
module attributes {stable_mosaic.version = 11 : i64} {
  func.func @_snn_fused_kernel(%arg0: i32, %arg1: memref<8x8x2432xbf16, #tpu.memory_space<vmem>>, %arg2: memref<2432x128xbf16, #tpu.memory_space<vmem>>, %arg3: memref<128x512xbf16, #tpu.memory_space<vmem>>, %arg4: memref<512x512xbf16, #tpu.memory_space<vmem>>, %arg5: memref<512x128xbf16, #tpu.memory_space<vmem>>, %arg6: memref<8x8x128xf32, #tpu.memory_space<vmem>>, %arg7: memref<8x8x512xf32, #tpu.memory_space<vmem>>, %arg8: memref<8x8x128xbf16, #tpu.memory_space<vmem>>, %arg9: memref<8x8x512xbf16, #tpu.memory_space<vmem>>, %arg10: memref<8x8x512xbf16, #tpu.memory_space<vmem>>) attributes {dimension_semantics = [#tpu.dimension_semantics<parallel>], iteration_bounds = array<i64: 1>, scalar_prefetch = 0 : i64, scratch_operands = 4 : i64, tpu.core_type = #tpu.core_type<tc>, window_params = [{transform_indices = @transform_0, window_bounds = array<i64: 8, 8, 2432>}, {pipeline_mode = #tpu.pipeline_mode<synchronous>, transform_indices = @transform_1, window_bounds = array<i64: 2432, 128>}, {pipeline_mode = #tpu.pipeline_mode<synchronous>, transform_indices = @transform_2, window_bounds = array<i64: 128, 512>}, {pipeline_mode = #tpu.pipeline_mode<synchronous>, transform_indices = @transform_3, window_bounds = array<i64: 512, 512>}, {pipeline_mode = #tpu.pipeline_mode<synchronous>, transform_indices = @transform_4, window_bounds = array<i64: 512, 128>}, {transform_indices = @transform_5, window_bounds = array<i64: 8, 8, 128>}]} {
    %c0 = arith.constant 0 : index
    %c0_0 = arith.constant 0 : index
    %c0_1 = arith.constant 0 : index
    %0 = vector.load %arg1[%c0, %c0_0, %c0_1] : memref<8x8x2432xbf16, #tpu.memory_space<vmem>>, vector<8x8x2432xbf16>
    %1 = vector.shape_cast %0 : vector<8x8x2432xbf16> to vector<64x2432xbf16>
    %c0_2 = arith.constant 0 : index
    %c0_3 = arith.constant 0 : index
    %2 = vector.load %arg2[%c0_2, %c0_3] : memref<2432x128xbf16, #tpu.memory_space<vmem>>, vector<2432x128xbf16>
    %cst = arith.constant dense<0.000000e+00> : vector<64x128xf32>
    %3 = tpu.matmul %1, %2, %cst {dimension_numbers = #tpu.dot_dimension_numbers<[1], [0], [0], [1], [0, 0, 1, 1], [], []>} : vector<64x2432xbf16>, vector<2432x128xbf16>, vector<64x128xf32> -> vector<64x128xf32>
    %4 = vector.shape_cast %3 : vector<64x128xf32> to vector<8x8x128xf32>
    %c0_4 = arith.constant 0 : index
    %c0_5 = arith.constant 0 : index
    %c0_6 = arith.constant 0 : index
    %5 = vector.load %arg7[%c0_4, %c0_5, %c0_6] : memref<8x8x512xf32, #tpu.memory_space<vmem>>, vector<8x8x128xf32>
    tpu.vector_store %arg7[%c0_4, %c0_5, %c0_6], %4 {strides = array<i32>} : memref<8x8x512xf32, #tpu.memory_space<vmem>>, vector<8x8x128xf32>,
    %cst_7 = arith.constant 0.000000e+00 : f32
    %6 = vector.broadcast %cst_7 : f32 to vector<8x128xf32>
    %c0_8 = arith.constant 0 : index
    %c0_9 = arith.constant 0 : index
    %c0_10 = arith.constant 0 : index
    %7 = vector.load %arg7[%c0_8, %c0_9, %c0_10] : memref<8x8x512xf32, #tpu.memory_space<vmem>>, vector<1x8x128xf32>
    %8 = vector.shape_cast %7 : vector<1x8x128xf32> to vector<8x128xf32>
    %cst_11 = arith.constant 9.900000e-01 : f32
    %9 = vector.broadcast %cst_11 : f32 to vector<8x128xf32>
    %10 = arith.mulf %9, %6 : vector<8x128xf32>
    %11 = arith.addf %10, %8 : vector<8x128xf32>
    %cst_12 = arith.constant 1.000000e-01 : f32
    %12 = vector.broadcast %cst_12 : f32 to vector<8x128xf32>
    %13 = arith.cmpf oge, %11, %12 : vector<8x128xf32>
    %14 = arith.extui %13 : vector<8x128xi1> to vector<8x128xi32>
    %15 = arith.sitofp %14 : vector<8x128xi32> to vector<8x128xf32>
    %16 = arith.truncf %15 : vector<8x128xf32> to vector<8x128xbf16>
    %c0_13 = arith.constant 0 : index
    %c0_14 = arith.constant 0 : index
    %c0_15 = arith.constant 0 : index
    %17 = vector.load %arg8[%c0_13, %c0_14, %c0_15] : memref<8x8x128xbf16, #tpu.memory_space<vmem>>, vector<1x8x128xbf16>
    %18 = vector.shape_cast %17 : vector<1x8x128xbf16> to vector<8x128xbf16>
    %19 = vector.shape_cast %16 : vector<8x128xbf16> to vector<1x8x128xbf16>
    tpu.vector_store %arg8[%c0_13, %c0_14, %c0_15], %19 {strides = array<i32>} : memref<8x8x128xbf16, #tpu.memory_space<vmem>>, vector<1x8x128xbf16>,
    %cst_16 = arith.constant 0.000000e+00 : f32
    %20 = vector.broadcast %cst_16 : f32 to vector<8x128xf32>
    %21 = arith.select %13, %20, %11 : vector<8x128xi1>, vector<8x128xf32>
    %c1 = arith.constant 1 : index
    %c0_17 = arith.constant 0 : index
    %c0_18 = arith.constant 0 : index
    %22 = vector.load %arg7[%c1, %c0_17, %c0_18] : memref<8x8x512xf32, #tpu.memory_space<vmem>>, vector<1x8x128xf32>
    %23 = vector.shape_cast %22 : vector<1x8x128xf32> to vector<8x128xf32>
    %cst_19 = arith.constant 9.900000e-01 : f32
    %24 = vector.broadcast %cst_19 : f32 to vector<8x128xf32>
    %25 = arith.mulf %24, %21 : vector<8x128xf32>
    %26 = arith.addf %25, %23 : vector<8x128xf32>
    %cst_20 = arith.constant 1.000000e-01 : f32
    %27 = vector.broadcast %cst_20 : f32 to vector<8x128xf32>
    %28 = arith.cmpf oge, %26, %27 : vector<8x128xf32>
    %29 = arith.extui %28 : vector<8x128xi1> to vector<8x128xi32>
    %30 = arith.sitofp %29 : vector<8x128xi32> to vector<8x128xf32>
    %31 = arith.truncf %30 : vector<8x128xf32> to vector<8x128xbf16>
    %c1_21 = arith.constant 1 : index
    %c0_22 = arith.constant 0 : index
    %c0_23 = arith.constant 0 : index
    %32 = vector.load %arg8[%c1_21, %c0_22, %c0_23] : memref<8x8x128xbf16, #tpu.memory_space<vmem>>, vector<1x8x128xbf16>
    %33 = vector.shape_cast %32 : vector<1x8x128xbf16> to vector<8x128xbf16>
    %34 = vector.shape_cast %31 : vector<8x128xbf16> to vector<1x8x128xbf16>
    tpu.vector_store %arg8[%c1_21, %c0_22, %c0_23], %34 {strides = array<i32>} : memref<8x8x128xbf16, #tpu.memory_space<vmem>>, vector<1x8x128xbf16>,
    %cst_24 = arith.constant 0.000000e+00 : f32
    %35 = vector.broadcast %cst_24 : f32 to vector<8x128xf32>
    %36 = arith.select %28, %35, %26 : vector<8x128xi1>, vector<8x128xf32>
    %c2 = arith.constant 2 : index
    %c0_25 = arith.constant 0 : index
    %c0_26 = arith.constant 0 : index
    %37 = vector.load %arg7[%c2, %c0_25, %c0_26] : memref<8x8x512xf32, #tpu.memory_space<vmem>>, vector<1x8x128xf32>
    %38 = vector.shape_cast %37 : vector<1x8x128xf32> to vector<8x128xf32>
    %cst_27 = arith.constant 9.900000e-01 : f32
    %39 = vector.broadcast %cst_27 : f32 to vector<8x128xf32>
    %40 = arith.mulf %39, %36 : vector<8x128xf32>
    %41 = arith.addf %40, %38 : vector<8x128xf32>
    %cst_28 = arith.constant 1.000000e-01 : f32
    %42 = vector.broadcast %cst_28 : f32 to vector<8x128xf32>
    %43 = arith.cmpf oge, %41, %42 : vector<8x128xf32>
    %44 = arith.extui %43 : vector<8x128xi1> to vector<8x128xi32>
    %45 = arith.sitofp %44 : vector<8x128xi32> to vector<8x128xf32>
    %46 = arith.truncf %45 : vector<8x128xf32> to vector<8x128xbf16>
    %c2_29 = arith.constant 2 : index
    %c0_30 = arith.constant 0 : index
    %c0_31 = arith.constant 0 : index
    %47 = vector.load %arg8[%c2_29, %c0_30, %c0_31] : memref<8x8x128xbf16, #tpu.memory_space<vmem>>, vector<1x8x128xbf16>
    %48 = vector.shape_cast %47 : vector<1x8x128xbf16> to vector<8x128xbf16>
    %49 = vector.shape_cast %46 : vector<8x128xbf16> to vector<1x8x128xbf16>
    tpu.vector_store %arg8[%c2_29, %c0_30, %c0_31], %49 {strides = array<i32>} : memref<8x8x128xbf16, #tpu.memory_space<vmem>>, vector<1x8x128xbf16>,
    %cst_32 = arith.constant 0.000000e+00 : f32
    %50 = vector.broadcast %cst_32 : f32 to vector<8x128xf32>
    %51 = arith.select %43, %50, %41 : vector<8x128xi1>, vector<8x128xf32>
    %c3 = arith.constant 3 : index
    %c0_33 = arith.constant 0 : index
    %c0_34 = arith.constant 0 : index
    %52 = vector.load %arg7[%c3, %c0_33, %c0_34] : memref<8x8x512xf32, #tpu.memory_space<vmem>>, vector<1x8x128xf32>
    %53 = vector.shape_cast %52 : vector<1x8x128xf32> to vector<8x128xf32>
    %cst_35 = arith.constant 9.900000e-01 : f32
    %54 = vector.broadcast %cst_35 : f32 to vector<8x128xf32>
    %55 = arith.mulf %54, %51 : vector<8x128xf32>
    %56 = arith.addf %55, %53 : vector<8x128xf32>
    %cst_36 = arith.constant 1.000000e-01 : f32
    %57 = vector.broadcast %cst_36 : f32 to vector<8x128xf32>
    %58 = arith.cmpf oge, %56, %57 : vector<8x128xf32>
    %59 = arith.extui %58 : vector<8x128xi1> to vector<8x128xi32>
    %60 = arith.sitofp %59 : vector<8x128xi32> to vector<8x128xf32>
    %61 = arith.truncf %60 : vector<8x128xf32> to vector<8x128xbf16>
    %c3_37 = arith.constant 3 : index
    %c0_38 = arith.constant 0 : index
    %c0_39 = arith.constant 0 : index
    %62 = vector.load %arg8[%c3_37, %c0_38, %c0_39] : memref<8x8x128xbf16, #tpu.memory_space<vmem>>, vector<1x8x128xbf16>
    %63 = vector.shape_cast %62 : vector<1x8x128xbf16> to vector<8x128xbf16>
    %64 = vector.shape_cast %61 : vector<8x128xbf16> to vector<1x8x128xbf16>
    tpu.vector_store %arg8[%c3_37, %c0_38, %c0_39], %64 {strides = array<i32>} : memref<8x8x128xbf16, #tpu.memory_space<vmem>>, vector<1x8x128xbf16>,
    %cst_40 = arith.constant 0.000000e+00 : f32
    %65 = vector.broadcast %cst_40 : f32 to vector<8x128xf32>
    %66 = arith.select %58, %65, %56 : vector<8x128xi1>, vector<8x128xf32>
    %c4 = arith.constant 4 : index
    %c0_41 = arith.constant 0 : index
    %c0_42 = arith.constant 0 : index
    %67 = vector.load %arg7[%c4, %c0_41, %c0_42] : memref<8x8x512xf32, #tpu.memory_space<vmem>>, vector<1x8x128xf32>
    %68 = vector.shape_cast %67 : vector<1x8x128xf32> to vector<8x128xf32>
    %cst_43 = arith.constant 9.900000e-01 : f32
    %69 = vector.broadcast %cst_43 : f32 to vector<8x128xf32>
    %70 = arith.mulf %69, %66 : vector<8x128xf32>
    %71 = arith.addf %70, %68 : vector<8x128xf32>
    %cst_44 = arith.constant 1.000000e-01 : f32
    %72 = vector.broadcast %cst_44 : f32 to vector<8x128xf32>
    %73 = arith.cmpf oge, %71, %72 : vector<8x128xf32>
    %74 = arith.extui %73 : vector<8x128xi1> to vector<8x128xi32>
    %75 = arith.sitofp %74 : vector<8x128xi32> to vector<8x128xf32>
    %76 = arith.truncf %75 : vector<8x128xf32> to vector<8x128xbf16>
    %c4_45 = arith.constant 4 : index
    %c0_46 = arith.constant 0 : index
    %c0_47 = arith.constant 0 : index
    %77 = vector.load %arg8[%c4_45, %c0_46, %c0_47] : memref<8x8x128xbf16, #tpu.memory_space<vmem>>, vector<1x8x128xbf16>
    %78 = vector.shape_cast %77 : vector<1x8x128xbf16> to vector<8x128xbf16>
    %79 = vector.shape_cast %76 : vector<8x128xbf16> to vector<1x8x128xbf16>
    tpu.vector_store %arg8[%c4_45, %c0_46, %c0_47], %79 {strides = array<i32>} : memref<8x8x128xbf16, #tpu.memory_space<vmem>>, vector<1x8x128xbf16>,
    %cst_48 = arith.constant 0.000000e+00 : f32
    %80 = vector.broadcast %cst_48 : f32 to vector<8x128xf32>
    %81 = arith.select %73, %80, %71 : vector<8x128xi1>, vector<8x128xf32>
    %c5 = arith.constant 5 : index
    %c0_49 = arith.constant 0 : index
    %c0_50 = arith.constant 0 : index
    %82 = vector.load %arg7[%c5, %c0_49, %c0_50] : memref<8x8x512xf32, #tpu.memory_space<vmem>>, vector<1x8x128xf32>
    %83 = vector.shape_cast %82 : vector<1x8x128xf32> to vector<8x128xf32>
    %cst_51 = arith.constant 9.900000e-01 : f32
    %84 = vector.broadcast %cst_51 : f32 to vector<8x128xf32>
    %85 = arith.mulf %84, %81 : vector<8x128xf32>
    %86 = arith.addf %85, %83 : vector<8x128xf32>
    %cst_52 = arith.constant 1.000000e-01 : f32
    %87 = vector.broadcast %cst_52 : f32 to vector<8x128xf32>
    %88 = arith.cmpf oge, %86, %87 : vector<8x128xf32>
    %89 = arith.extui %88 : vector<8x128xi1> to vector<8x128xi32>
    %90 = arith.sitofp %89 : vector<8x128xi32> to vector<8x128xf32>
    %91 = arith.truncf %90 : vector<8x128xf32> to vector<8x128xbf16>
    %c5_53 = arith.constant 5 : index
    %c0_54 = arith.constant 0 : index
    %c0_55 = arith.constant 0 : index
    %92 = vector.load %arg8[%c5_53, %c0_54, %c0_55] : memref<8x8x128xbf16, #tpu.memory_space<vmem>>, vector<1x8x128xbf16>
    %93 = vector.shape_cast %92 : vector<1x8x128xbf16> to vector<8x128xbf16>
    %94 = vector.shape_cast %91 : vector<8x128xbf16> to vector<1x8x128xbf16>
    tpu.vector_store %arg8[%c5_53, %c0_54, %c0_55], %94 {strides = array<i32>} : memref<8x8x128xbf16, #tpu.memory_space<vmem>>, vector<1x8x128xbf16>,
    %cst_56 = arith.constant 0.000000e+00 : f32
    %95 = vector.broadcast %cst_56 : f32 to vector<8x128xf32>
    %96 = arith.select %88, %95, %86 : vector<8x128xi1>, vector<8x128xf32>
    %c6 = arith.constant 6 : index
    %c0_57 = arith.constant 0 : index
    %c0_58 = arith.constant 0 : index
    %97 = vector.load %arg7[%c6, %c0_57, %c0_58] : memref<8x8x512xf32, #tpu.memory_space<vmem>>, vector<1x8x128xf32>
    %98 = vector.shape_cast %97 : vector<1x8x128xf32> to vector<8x128xf32>
    %cst_59 = arith.constant 9.900000e-01 : f32
    %99 = vector.broadcast %cst_59 : f32 to vector<8x128xf32>
    %100 = arith.mulf %99, %96 : vector<8x128xf32>
    %101 = arith.addf %100, %98 : vector<8x128xf32>
    %cst_60 = arith.constant 1.000000e-01 : f32
    %102 = vector.broadcast %cst_60 : f32 to vector<8x128xf32>
    %103 = arith.cmpf oge, %101, %102 : vector<8x128xf32>
    %104 = arith.extui %103 : vector<8x128xi1> to vector<8x128xi32>
    %105 = arith.sitofp %104 : vector<8x128xi32> to vector<8x128xf32>
    %106 = arith.truncf %105 : vector<8x128xf32> to vector<8x128xbf16>
    %c6_61 = arith.constant 6 : index
    %c0_62 = arith.constant 0 : index
    %c0_63 = arith.constant 0 : index
    %107 = vector.load %arg8[%c6_61, %c0_62, %c0_63] : memref<8x8x128xbf16, #tpu.memory_space<vmem>>, vector<1x8x128xbf16>
    %108 = vector.shape_cast %107 : vector<1x8x128xbf16> to vector<8x128xbf16>
    %109 = vector.shape_cast %106 : vector<8x128xbf16> to vector<1x8x128xbf16>
    tpu.vector_store %arg8[%c6_61, %c0_62, %c0_63], %109 {strides = array<i32>} : memref<8x8x128xbf16, #tpu.memory_space<vmem>>, vector<1x8x128xbf16>,
    %cst_64 = arith.constant 0.000000e+00 : f32
    %110 = vector.broadcast %cst_64 : f32 to vector<8x128xf32>
    %111 = arith.select %103, %110, %101 : vector<8x128xi1>, vector<8x128xf32>
    %c7 = arith.constant 7 : index
    %c0_65 = arith.constant 0 : index
    %c0_66 = arith.constant 0 : index
    %112 = vector.load %arg7[%c7, %c0_65, %c0_66] : memref<8x8x512xf32, #tpu.memory_space<vmem>>, vector<1x8x128xf32>
    %113 = vector.shape_cast %112 : vector<1x8x128xf32> to vector<8x128xf32>
    %cst_67 = arith.constant 9.900000e-01 : f32
    %114 = vector.broadcast %cst_67 : f32 to vector<8x128xf32>
    %115 = arith.mulf %114, %111 : vector<8x128xf32>
    %116 = arith.addf %115, %113 : vector<8x128xf32>
    %cst_68 = arith.constant 1.000000e-01 : f32
    %117 = vector.broadcast %cst_68 : f32 to vector<8x128xf32>
    %118 = arith.cmpf oge, %116, %117 : vector<8x128xf32>
    %119 = arith.extui %118 : vector<8x128xi1> to vector<8x128xi32>
    %120 = arith.sitofp %119 : vector<8x128xi32> to vector<8x128xf32>
    %121 = arith.truncf %120 : vector<8x128xf32> to vector<8x128xbf16>
    %c7_69 = arith.constant 7 : index
    %c0_70 = arith.constant 0 : index
    %c0_71 = arith.constant 0 : index
    %122 = vector.load %arg8[%c7_69, %c0_70, %c0_71] : memref<8x8x128xbf16, #tpu.memory_space<vmem>>, vector<1x8x128xbf16>
    %123 = vector.shape_cast %122 : vector<1x8x128xbf16> to vector<8x128xbf16>
    %124 = vector.shape_cast %121 : vector<8x128xbf16> to vector<1x8x128xbf16>
    tpu.vector_store %arg8[%c7_69, %c0_70, %c0_71], %124 {strides = array<i32>} : memref<8x8x128xbf16, #tpu.memory_space<vmem>>, vector<1x8x128xbf16>,
    %c0_72 = arith.constant 0 : index
    %c0_73 = arith.constant 0 : index
    %c0_74 = arith.constant 0 : index
    %125 = vector.load %arg8[%c0_72, %c0_73, %c0_74] : memref<8x8x128xbf16, #tpu.memory_space<vmem>>, vector<8x8x128xbf16>
    %126 = vector.shape_cast %125 : vector<8x8x128xbf16> to vector<64x128xbf16>
    %c0_75 = arith.constant 0 : index
    %c0_76 = arith.constant 0 : index
    %127 = vector.load %arg3[%c0_75, %c0_76] : memref<128x512xbf16, #tpu.memory_space<vmem>>, vector<128x512xbf16>
    %cst_77 = arith.constant dense<0.000000e+00> : vector<64x512xf32>
    %128 = tpu.matmul %126, %127, %cst_77 {dimension_numbers = #tpu.dot_dimension_numbers<[1], [0], [0], [1], [0, 0, 1, 1], [], []>} : vector<64x128xbf16>, vector<128x512xbf16>, vector<64x512xf32> -> vector<64x512xf32>
    %129 = vector.shape_cast %128 : vector<64x512xf32> to vector<8x8x512xf32>
    %c0_78 = arith.constant 0 : index
    %c0_79 = arith.constant 0 : index
    %c0_80 = arith.constant 0 : index
    %130 = vector.load %arg7[%c0_78, %c0_79, %c0_80] : memref<8x8x512xf32, #tpu.memory_space<vmem>>, vector<8x8x512xf32>
    tpu.vector_store %arg7[%c0_78, %c0_79, %c0_80], %129 {strides = array<i32>} : memref<8x8x512xf32, #tpu.memory_space<vmem>>, vector<8x8x512xf32>,
    %cst_81 = arith.constant 0.000000e+00 : f32
    %131 = vector.broadcast %cst_81 : f32 to vector<8x512xf32>
    %c0_82 = arith.constant 0 : index
    %c0_83 = arith.constant 0 : index
    %c0_84 = arith.constant 0 : index
    %132 = vector.load %arg7[%c0_82, %c0_83, %c0_84] : memref<8x8x512xf32, #tpu.memory_space<vmem>>, vector<1x8x512xf32>
    %133 = vector.shape_cast %132 : vector<1x8x512xf32> to vector<8x512xf32>
    %cst_85 = arith.constant 9.900000e-01 : f32
    %134 = vector.broadcast %cst_85 : f32 to vector<8x512xf32>
    %135 = arith.mulf %134, %131 : vector<8x512xf32>
    %136 = arith.addf %135, %133 : vector<8x512xf32>
    %cst_86 = arith.constant 1.000000e-01 : f32
    %137 = vector.broadcast %cst_86 : f32 to vector<8x512xf32>
    %138 = arith.cmpf oge, %136, %137 : vector<8x512xf32>
    %139 = arith.extui %138 : vector<8x512xi1> to vector<8x512xi32>
    %140 = arith.sitofp %139 : vector<8x512xi32> to vector<8x512xf32>
    %141 = arith.truncf %140 : vector<8x512xf32> to vector<8x512xbf16>
    %c0_87 = arith.constant 0 : index
    %c0_88 = arith.constant 0 : index
    %c0_89 = arith.constant 0 : index
    %142 = vector.load %arg9[%c0_87, %c0_88, %c0_89] : memref<8x8x512xbf16, #tpu.memory_space<vmem>>, vector<1x8x512xbf16>
    %143 = vector.shape_cast %142 : vector<1x8x512xbf16> to vector<8x512xbf16>
    %144 = vector.shape_cast %141 : vector<8x512xbf16> to vector<1x8x512xbf16>
    tpu.vector_store %arg9[%c0_87, %c0_88, %c0_89], %144 {strides = array<i32>} : memref<8x8x512xbf16, #tpu.memory_space<vmem>>, vector<1x8x512xbf16>,
    %cst_90 = arith.constant 0.000000e+00 : f32
    %145 = vector.broadcast %cst_90 : f32 to vector<8x512xf32>
    %146 = arith.select %138, %145, %136 : vector<8x512xi1>, vector<8x512xf32>
    %c1_91 = arith.constant 1 : index
    %c0_92 = arith.constant 0 : index
    %c0_93 = arith.constant 0 : index
    %147 = vector.load %arg7[%c1_91, %c0_92, %c0_93] : memref<8x8x512xf32, #tpu.memory_space<vmem>>, vector<1x8x512xf32>
    %148 = vector.shape_cast %147 : vector<1x8x512xf32> to vector<8x512xf32>
    %cst_94 = arith.constant 9.900000e-01 : f32
    %149 = vector.broadcast %cst_94 : f32 to vector<8x512xf32>
    %150 = arith.mulf %149, %146 : vector<8x512xf32>
    %151 = arith.addf %150, %148 : vector<8x512xf32>
    %cst_95 = arith.constant 1.000000e-01 : f32
    %152 = vector.broadcast %cst_95 : f32 to vector<8x512xf32>
    %153 = arith.cmpf oge, %151, %152 : vector<8x512xf32>
    %154 = arith.extui %153 : vector<8x512xi1> to vector<8x512xi32>
    %155 = arith.sitofp %154 : vector<8x512xi32> to vector<8x512xf32>
    %156 = arith.truncf %155 : vector<8x512xf32> to vector<8x512xbf16>
    %c1_96 = arith.constant 1 : index
    %c0_97 = arith.constant 0 : index
    %c0_98 = arith.constant 0 : index
    %157 = vector.load %arg9[%c1_96, %c0_97, %c0_98] : memref<8x8x512xbf16, #tpu.memory_space<vmem>>, vector<1x8x512xbf16>
    %158 = vector.shape_cast %157 : vector<1x8x512xbf16> to vector<8x512xbf16>
    %159 = vector.shape_cast %156 : vector<8x512xbf16> to vector<1x8x512xbf16>
    tpu.vector_store %arg9[%c1_96, %c0_97, %c0_98], %159 {strides = array<i32>} : memref<8x8x512xbf16, #tpu.memory_space<vmem>>, vector<1x8x512xbf16>,
    %cst_99 = arith.constant 0.000000e+00 : f32
    %160 = vector.broadcast %cst_99 : f32 to vector<8x512xf32>
    %161 = arith.select %153, %160, %151 : vector<8x512xi1>, vector<8x512xf32>
    %c2_100 = arith.constant 2 : index
    %c0_101 = arith.constant 0 : index
    %c0_102 = arith.constant 0 : index
    %162 = vector.load %arg7[%c2_100, %c0_101, %c0_102] : memref<8x8x512xf32, #tpu.memory_space<vmem>>, vector<1x8x512xf32>
    %163 = vector.shape_cast %162 : vector<1x8x512xf32> to vector<8x512xf32>
    %cst_103 = arith.constant 9.900000e-01 : f32
    %164 = vector.broadcast %cst_103 : f32 to vector<8x512xf32>
    %165 = arith.mulf %164, %161 : vector<8x512xf32>
    %166 = arith.addf %165, %163 : vector<8x512xf32>
    %cst_104 = arith.constant 1.000000e-01 : f32
    %167 = vector.broadcast %cst_104 : f32 to vector<8x512xf32>
    %168 = arith.cmpf oge, %166, %167 : vector<8x512xf32>
    %169 = arith.extui %168 : vector<8x512xi1> to vector<8x512xi32>
    %170 = arith.sitofp %169 : vector<8x512xi32> to vector<8x512xf32>
    %171 = arith.truncf %170 : vector<8x512xf32> to vector<8x512xbf16>
    %c2_105 = arith.constant 2 : index
    %c0_106 = arith.constant 0 : index
    %c0_107 = arith.constant 0 : index
    %172 = vector.load %arg9[%c2_105, %c0_106, %c0_107] : memref<8x8x512xbf16, #tpu.memory_space<vmem>>, vector<1x8x512xbf16>
    %173 = vector.shape_cast %172 : vector<1x8x512xbf16> to vector<8x512xbf16>
    %174 = vector.shape_cast %171 : vector<8x512xbf16> to vector<1x8x512xbf16>
    tpu.vector_store %arg9[%c2_105, %c0_106, %c0_107], %174 {strides = array<i32>} : memref<8x8x512xbf16, #tpu.memory_space<vmem>>, vector<1x8x512xbf16>,
    %cst_108 = arith.constant 0.000000e+00 : f32
    %175 = vector.broadcast %cst_108 : f32 to vector<8x512xf32>
    %176 = arith.select %168, %175, %166 : vector<8x512xi1>, vector<8x512xf32>
    %c3_109 = arith.constant 3 : index
    %c0_110 = arith.constant 0 : index
    %c0_111 = arith.constant 0 : index
    %177 = vector.load %arg7[%c3_109, %c0_110, %c0_111] : memref<8x8x512xf32, #tpu.memory_space<vmem>>, vector<1x8x512xf32>
    %178 = vector.shape_cast %177 : vector<1x8x512xf32> to vector<8x512xf32>
    %cst_112 = arith.constant 9.900000e-01 : f32
    %179 = vector.broadcast %cst_112 : f32 to vector<8x512xf32>
    %180 = arith.mulf %179, %176 : vector<8x512xf32>
    %181 = arith.addf %180, %178 : vector<8x512xf32>
    %cst_113 = arith.constant 1.000000e-01 : f32
    %182 = vector.broadcast %cst_113 : f32 to vector<8x512xf32>
    %183 = arith.cmpf oge, %181, %182 : vector<8x512xf32>
    %184 = arith.extui %183 : vector<8x512xi1> to vector<8x512xi32>
    %185 = arith.sitofp %184 : vector<8x512xi32> to vector<8x512xf32>
    %186 = arith.truncf %185 : vector<8x512xf32> to vector<8x512xbf16>
    %c3_114 = arith.constant 3 : index
    %c0_115 = arith.constant 0 : index
    %c0_116 = arith.constant 0 : index
    %187 = vector.load %arg9[%c3_114, %c0_115, %c0_116] : memref<8x8x512xbf16, #tpu.memory_space<vmem>>, vector<1x8x512xbf16>
    %188 = vector.shape_cast %187 : vector<1x8x512xbf16> to vector<8x512xbf16>
    %189 = vector.shape_cast %186 : vector<8x512xbf16> to vector<1x8x512xbf16>
    tpu.vector_store %arg9[%c3_114, %c0_115, %c0_116], %189 {strides = array<i32>} : memref<8x8x512xbf16, #tpu.memory_space<vmem>>, vector<1x8x512xbf16>,
    %cst_117 = arith.constant 0.000000e+00 : f32
    %190 = vector.broadcast %cst_117 : f32 to vector<8x512xf32>
    %191 = arith.select %183, %190, %181 : vector<8x512xi1>, vector<8x512xf32>
    %c4_118 = arith.constant 4 : index
    %c0_119 = arith.constant 0 : index
    %c0_120 = arith.constant 0 : index
    %192 = vector.load %arg7[%c4_118, %c0_119, %c0_120] : memref<8x8x512xf32, #tpu.memory_space<vmem>>, vector<1x8x512xf32>
    %193 = vector.shape_cast %192 : vector<1x8x512xf32> to vector<8x512xf32>
    %cst_121 = arith.constant 9.900000e-01 : f32
    %194 = vector.broadcast %cst_121 : f32 to vector<8x512xf32>
    %195 = arith.mulf %194, %191 : vector<8x512xf32>
    %196 = arith.addf %195, %193 : vector<8x512xf32>
    %cst_122 = arith.constant 1.000000e-01 : f32
    %197 = vector.broadcast %cst_122 : f32 to vector<8x512xf32>
    %198 = arith.cmpf oge, %196, %197 : vector<8x512xf32>
    %199 = arith.extui %198 : vector<8x512xi1> to vector<8x512xi32>
    %200 = arith.sitofp %199 : vector<8x512xi32> to vector<8x512xf32>
    %201 = arith.truncf %200 : vector<8x512xf32> to vector<8x512xbf16>
    %c4_123 = arith.constant 4 : index
    %c0_124 = arith.constant 0 : index
    %c0_125 = arith.constant 0 : index
    %202 = vector.load %arg9[%c4_123, %c0_124, %c0_125] : memref<8x8x512xbf16, #tpu.memory_space<vmem>>, vector<1x8x512xbf16>
    %203 = vector.shape_cast %202 : vector<1x8x512xbf16> to vector<8x512xbf16>
    %204 = vector.shape_cast %201 : vector<8x512xbf16> to vector<1x8x512xbf16>
    tpu.vector_store %arg9[%c4_123, %c0_124, %c0_125], %204 {strides = array<i32>} : memref<8x8x512xbf16, #tpu.memory_space<vmem>>, vector<1x8x512xbf16>,
    %cst_126 = arith.constant 0.000000e+00 : f32
    %205 = vector.broadcast %cst_126 : f32 to vector<8x512xf32>
    %206 = arith.select %198, %205, %196 : vector<8x512xi1>, vector<8x512xf32>
    %c5_127 = arith.constant 5 : index
    %c0_128 = arith.constant 0 : index
    %c0_129 = arith.constant 0 : index
    %207 = vector.load %arg7[%c5_127, %c0_128, %c0_129] : memref<8x8x512xf32, #tpu.memory_space<vmem>>, vector<1x8x512xf32>
    %208 = vector.shape_cast %207 : vector<1x8x512xf32> to vector<8x512xf32>
    %cst_130 = arith.constant 9.900000e-01 : f32
    %209 = vector.broadcast %cst_130 : f32 to vector<8x512xf32>
    %210 = arith.mulf %209, %206 : vector<8x512xf32>
    %211 = arith.addf %210, %208 : vector<8x512xf32>
    %cst_131 = arith.constant 1.000000e-01 : f32
    %212 = vector.broadcast %cst_131 : f32 to vector<8x512xf32>
    %213 = arith.cmpf oge, %211, %212 : vector<8x512xf32>
    %214 = arith.extui %213 : vector<8x512xi1> to vector<8x512xi32>
    %215 = arith.sitofp %214 : vector<8x512xi32> to vector<8x512xf32>
    %216 = arith.truncf %215 : vector<8x512xf32> to vector<8x512xbf16>
    %c5_132 = arith.constant 5 : index
    %c0_133 = arith.constant 0 : index
    %c0_134 = arith.constant 0 : index
    %217 = vector.load %arg9[%c5_132, %c0_133, %c0_134] : memref<8x8x512xbf16, #tpu.memory_space<vmem>>, vector<1x8x512xbf16>
    %218 = vector.shape_cast %217 : vector<1x8x512xbf16> to vector<8x512xbf16>
    %219 = vector.shape_cast %216 : vector<8x512xbf16> to vector<1x8x512xbf16>
    tpu.vector_store %arg9[%c5_132, %c0_133, %c0_134], %219 {strides = array<i32>} : memref<8x8x512xbf16, #tpu.memory_space<vmem>>, vector<1x8x512xbf16>,
    %cst_135 = arith.constant 0.000000e+00 : f32
    %220 = vector.broadcast %cst_135 : f32 to vector<8x512xf32>
    %221 = arith.select %213, %220, %211 : vector<8x512xi1>, vector<8x512xf32>
    %c6_136 = arith.constant 6 : index
    %c0_137 = arith.constant 0 : index
    %c0_138 = arith.constant 0 : index
    %222 = vector.load %arg7[%c6_136, %c0_137, %c0_138] : memref<8x8x512xf32, #tpu.memory_space<vmem>>, vector<1x8x512xf32>
    %223 = vector.shape_cast %222 : vector<1x8x512xf32> to vector<8x512xf32>
    %cst_139 = arith.constant 9.900000e-01 : f32
    %224 = vector.broadcast %cst_139 : f32 to vector<8x512xf32>
    %225 = arith.mulf %224, %221 : vector<8x512xf32>
    %226 = arith.addf %225, %223 : vector<8x512xf32>
    %cst_140 = arith.constant 1.000000e-01 : f32
    %227 = vector.broadcast %cst_140 : f32 to vector<8x512xf32>
    %228 = arith.cmpf oge, %226, %227 : vector<8x512xf32>
    %229 = arith.extui %228 : vector<8x512xi1> to vector<8x512xi32>
    %230 = arith.sitofp %229 : vector<8x512xi32> to vector<8x512xf32>
    %231 = arith.truncf %230 : vector<8x512xf32> to vector<8x512xbf16>
    %c6_141 = arith.constant 6 : index
    %c0_142 = arith.constant 0 : index
    %c0_143 = arith.constant 0 : index
    %232 = vector.load %arg9[%c6_141, %c0_142, %c0_143] : memref<8x8x512xbf16, #tpu.memory_space<vmem>>, vector<1x8x512xbf16>
    %233 = vector.shape_cast %232 : vector<1x8x512xbf16> to vector<8x512xbf16>
    %234 = vector.shape_cast %231 : vector<8x512xbf16> to vector<1x8x512xbf16>
    tpu.vector_store %arg9[%c6_141, %c0_142, %c0_143], %234 {strides = array<i32>} : memref<8x8x512xbf16, #tpu.memory_space<vmem>>, vector<1x8x512xbf16>,
    %cst_144 = arith.constant 0.000000e+00 : f32
    %235 = vector.broadcast %cst_144 : f32 to vector<8x512xf32>
    %236 = arith.select %228, %235, %226 : vector<8x512xi1>, vector<8x512xf32>
    %c7_145 = arith.constant 7 : index
    %c0_146 = arith.constant 0 : index
    %c0_147 = arith.constant 0 : index
    %237 = vector.load %arg7[%c7_145, %c0_146, %c0_147] : memref<8x8x512xf32, #tpu.memory_space<vmem>>, vector<1x8x512xf32>
    %238 = vector.shape_cast %237 : vector<1x8x512xf32> to vector<8x512xf32>
    %cst_148 = arith.constant 9.900000e-01 : f32
    %239 = vector.broadcast %cst_148 : f32 to vector<8x512xf32>
    %240 = arith.mulf %239, %236 : vector<8x512xf32>
    %241 = arith.addf %240, %238 : vector<8x512xf32>
    %cst_149 = arith.constant 1.000000e-01 : f32
    %242 = vector.broadcast %cst_149 : f32 to vector<8x512xf32>
    %243 = arith.cmpf oge, %241, %242 : vector<8x512xf32>
    %244 = arith.extui %243 : vector<8x512xi1> to vector<8x512xi32>
    %245 = arith.sitofp %244 : vector<8x512xi32> to vector<8x512xf32>
    %246 = arith.truncf %245 : vector<8x512xf32> to vector<8x512xbf16>
    %c7_150 = arith.constant 7 : index
    %c0_151 = arith.constant 0 : index
    %c0_152 = arith.constant 0 : index
    %247 = vector.load %arg9[%c7_150, %c0_151, %c0_152] : memref<8x8x512xbf16, #tpu.memory_space<vmem>>, vector<1x8x512xbf16>
    %248 = vector.shape_cast %247 : vector<1x8x512xbf16> to vector<8x512xbf16>
    %249 = vector.shape_cast %246 : vector<8x512xbf16> to vector<1x8x512xbf16>
    tpu.vector_store %arg9[%c7_150, %c0_151, %c0_152], %249 {strides = array<i32>} : memref<8x8x512xbf16, #tpu.memory_space<vmem>>, vector<1x8x512xbf16>,
    %c0_153 = arith.constant 0 : index
    %c0_154 = arith.constant 0 : index
    %c0_155 = arith.constant 0 : index
    %250 = vector.load %arg9[%c0_153, %c0_154, %c0_155] : memref<8x8x512xbf16, #tpu.memory_space<vmem>>, vector<8x8x512xbf16>
    %251 = vector.shape_cast %250 : vector<8x8x512xbf16> to vector<64x512xbf16>
    %c0_156 = arith.constant 0 : index
    %c0_157 = arith.constant 0 : index
    %252 = vector.load %arg4[%c0_156, %c0_157] : memref<512x512xbf16, #tpu.memory_space<vmem>>, vector<512x512xbf16>
    %cst_158 = arith.constant dense<0.000000e+00> : vector<64x512xf32>
    %253 = tpu.matmul %251, %252, %cst_158 {dimension_numbers = #tpu.dot_dimension_numbers<[1], [0], [0], [1], [0, 0, 1, 1], [], []>} : vector<64x512xbf16>, vector<512x512xbf16>, vector<64x512xf32> -> vector<64x512xf32>
    %254 = vector.shape_cast %253 : vector<64x512xf32> to vector<8x8x512xf32>
    %c0_159 = arith.constant 0 : index
    %c0_160 = arith.constant 0 : index
    %c0_161 = arith.constant 0 : index
    %255 = vector.load %arg7[%c0_159, %c0_160, %c0_161] : memref<8x8x512xf32, #tpu.memory_space<vmem>>, vector<8x8x512xf32>
    tpu.vector_store %arg7[%c0_159, %c0_160, %c0_161], %254 {strides = array<i32>} : memref<8x8x512xf32, #tpu.memory_space<vmem>>, vector<8x8x512xf32>,
    %cst_162 = arith.constant 0.000000e+00 : f32
    %256 = vector.broadcast %cst_162 : f32 to vector<8x512xf32>
    %c0_163 = arith.constant 0 : index
    %c0_164 = arith.constant 0 : index
    %c0_165 = arith.constant 0 : index
    %257 = vector.load %arg7[%c0_163, %c0_164, %c0_165] : memref<8x8x512xf32, #tpu.memory_space<vmem>>, vector<1x8x512xf32>
    %258 = vector.shape_cast %257 : vector<1x8x512xf32> to vector<8x512xf32>
    %cst_166 = arith.constant 9.900000e-01 : f32
    %259 = vector.broadcast %cst_166 : f32 to vector<8x512xf32>
    %260 = arith.mulf %259, %256 : vector<8x512xf32>
    %261 = arith.addf %260, %258 : vector<8x512xf32>
    %cst_167 = arith.constant 1.000000e-01 : f32
    %262 = vector.broadcast %cst_167 : f32 to vector<8x512xf32>
    %263 = arith.cmpf oge, %261, %262 : vector<8x512xf32>
    %264 = arith.extui %263 : vector<8x512xi1> to vector<8x512xi32>
    %265 = arith.sitofp %264 : vector<8x512xi32> to vector<8x512xf32>
    %266 = arith.truncf %265 : vector<8x512xf32> to vector<8x512xbf16>
    %c0_168 = arith.constant 0 : index
    %c0_169 = arith.constant 0 : index
    %c0_170 = arith.constant 0 : index
    %267 = vector.load %arg10[%c0_168, %c0_169, %c0_170] : memref<8x8x512xbf16, #tpu.memory_space<vmem>>, vector<1x8x512xbf16>
    %268 = vector.shape_cast %267 : vector<1x8x512xbf16> to vector<8x512xbf16>
    %269 = vector.shape_cast %266 : vector<8x512xbf16> to vector<1x8x512xbf16>
    tpu.vector_store %arg10[%c0_168, %c0_169, %c0_170], %269 {strides = array<i32>} : memref<8x8x512xbf16, #tpu.memory_space<vmem>>, vector<1x8x512xbf16>,
    %cst_171 = arith.constant 0.000000e+00 : f32
    %270 = vector.broadcast %cst_171 : f32 to vector<8x512xf32>
    %271 = arith.select %263, %270, %261 : vector<8x512xi1>, vector<8x512xf32>
    %c1_172 = arith.constant 1 : index
    %c0_173 = arith.constant 0 : index
    %c0_174 = arith.constant 0 : index
    %272 = vector.load %arg7[%c1_172, %c0_173, %c0_174] : memref<8x8x512xf32, #tpu.memory_space<vmem>>, vector<1x8x512xf32>
    %273 = vector.shape_cast %272 : vector<1x8x512xf32> to vector<8x512xf32>
    %cst_175 = arith.constant 9.900000e-01 : f32
    %274 = vector.broadcast %cst_175 : f32 to vector<8x512xf32>
    %275 = arith.mulf %274, %271 : vector<8x512xf32>
    %276 = arith.addf %275, %273 : vector<8x512xf32>
    %cst_176 = arith.constant 1.000000e-01 : f32
    %277 = vector.broadcast %cst_176 : f32 to vector<8x512xf32>
    %278 = arith.cmpf oge, %276, %277 : vector<8x512xf32>
    %279 = arith.extui %278 : vector<8x512xi1> to vector<8x512xi32>
    %280 = arith.sitofp %279 : vector<8x512xi32> to vector<8x512xf32>
    %281 = arith.truncf %280 : vector<8x512xf32> to vector<8x512xbf16>
    %c1_177 = arith.constant 1 : index
    %c0_178 = arith.constant 0 : index
    %c0_179 = arith.constant 0 : index
    %282 = vector.load %arg10[%c1_177, %c0_178, %c0_179] : memref<8x8x512xbf16, #tpu.memory_space<vmem>>, vector<1x8x512xbf16>
    %283 = vector.shape_cast %282 : vector<1x8x512xbf16> to vector<8x512xbf16>
    %284 = vector.shape_cast %281 : vector<8x512xbf16> to vector<1x8x512xbf16>
    tpu.vector_store %arg10[%c1_177, %c0_178, %c0_179], %284 {strides = array<i32>} : memref<8x8x512xbf16, #tpu.memory_space<vmem>>, vector<1x8x512xbf16>,
    %cst_180 = arith.constant 0.000000e+00 : f32
    %285 = vector.broadcast %cst_180 : f32 to vector<8x512xf32>
    %286 = arith.select %278, %285, %276 : vector<8x512xi1>, vector<8x512xf32>
    %c2_181 = arith.constant 2 : index
    %c0_182 = arith.constant 0 : index
    %c0_183 = arith.constant 0 : index
    %287 = vector.load %arg7[%c2_181, %c0_182, %c0_183] : memref<8x8x512xf32, #tpu.memory_space<vmem>>, vector<1x8x512xf32>
    %288 = vector.shape_cast %287 : vector<1x8x512xf32> to vector<8x512xf32>
    %cst_184 = arith.constant 9.900000e-01 : f32
    %289 = vector.broadcast %cst_184 : f32 to vector<8x512xf32>
    %290 = arith.mulf %289, %286 : vector<8x512xf32>
    %291 = arith.addf %290, %288 : vector<8x512xf32>
    %cst_185 = arith.constant 1.000000e-01 : f32
    %292 = vector.broadcast %cst_185 : f32 to vector<8x512xf32>
    %293 = arith.cmpf oge, %291, %292 : vector<8x512xf32>
    %294 = arith.extui %293 : vector<8x512xi1> to vector<8x512xi32>
    %295 = arith.sitofp %294 : vector<8x512xi32> to vector<8x512xf32>
    %296 = arith.truncf %295 : vector<8x512xf32> to vector<8x512xbf16>
    %c2_186 = arith.constant 2 : index
    %c0_187 = arith.constant 0 : index
    %c0_188 = arith.constant 0 : index
    %297 = vector.load %arg10[%c2_186, %c0_187, %c0_188] : memref<8x8x512xbf16, #tpu.memory_space<vmem>>, vector<1x8x512xbf16>
    %298 = vector.shape_cast %297 : vector<1x8x512xbf16> to vector<8x512xbf16>
    %299 = vector.shape_cast %296 : vector<8x512xbf16> to vector<1x8x512xbf16>
    tpu.vector_store %arg10[%c2_186, %c0_187, %c0_188], %299 {strides = array<i32>} : memref<8x8x512xbf16, #tpu.memory_space<vmem>>, vector<1x8x512xbf16>,
    %cst_189 = arith.constant 0.000000e+00 : f32
    %300 = vector.broadcast %cst_189 : f32 to vector<8x512xf32>
    %301 = arith.select %293, %300, %291 : vector<8x512xi1>, vector<8x512xf32>
    %c3_190 = arith.constant 3 : index
    %c0_191 = arith.constant 0 : index
    %c0_192 = arith.constant 0 : index
    %302 = vector.load %arg7[%c3_190, %c0_191, %c0_192] : memref<8x8x512xf32, #tpu.memory_space<vmem>>, vector<1x8x512xf32>
    %303 = vector.shape_cast %302 : vector<1x8x512xf32> to vector<8x512xf32>
    %cst_193 = arith.constant 9.900000e-01 : f32
    %304 = vector.broadcast %cst_193 : f32 to vector<8x512xf32>
    %305 = arith.mulf %304, %301 : vector<8x512xf32>
    %306 = arith.addf %305, %303 : vector<8x512xf32>
    %cst_194 = arith.constant 1.000000e-01 : f32
    %307 = vector.broadcast %cst_194 : f32 to vector<8x512xf32>
    %308 = arith.cmpf oge, %306, %307 : vector<8x512xf32>
    %309 = arith.extui %308 : vector<8x512xi1> to vector<8x512xi32>
    %310 = arith.sitofp %309 : vector<8x512xi32> to vector<8x512xf32>
    %311 = arith.truncf %310 : vector<8x512xf32> to vector<8x512xbf16>
    %c3_195 = arith.constant 3 : index
    %c0_196 = arith.constant 0 : index
    %c0_197 = arith.constant 0 : index
    %312 = vector.load %arg10[%c3_195, %c0_196, %c0_197] : memref<8x8x512xbf16, #tpu.memory_space<vmem>>, vector<1x8x512xbf16>
    %313 = vector.shape_cast %312 : vector<1x8x512xbf16> to vector<8x512xbf16>
    %314 = vector.shape_cast %311 : vector<8x512xbf16> to vector<1x8x512xbf16>
    tpu.vector_store %arg10[%c3_195, %c0_196, %c0_197], %314 {strides = array<i32>} : memref<8x8x512xbf16, #tpu.memory_space<vmem>>, vector<1x8x512xbf16>,
    %cst_198 = arith.constant 0.000000e+00 : f32
    %315 = vector.broadcast %cst_198 : f32 to vector<8x512xf32>
    %316 = arith.select %308, %315, %306 : vector<8x512xi1>, vector<8x512xf32>
    %c4_199 = arith.constant 4 : index
    %c0_200 = arith.constant 0 : index
    %c0_201 = arith.constant 0 : index
    %317 = vector.load %arg7[%c4_199, %c0_200, %c0_201] : memref<8x8x512xf32, #tpu.memory_space<vmem>>, vector<1x8x512xf32>
    %318 = vector.shape_cast %317 : vector<1x8x512xf32> to vector<8x512xf32>
    %cst_202 = arith.constant 9.900000e-01 : f32
    %319 = vector.broadcast %cst_202 : f32 to vector<8x512xf32>
    %320 = arith.mulf %319, %316 : vector<8x512xf32>
    %321 = arith.addf %320, %318 : vector<8x512xf32>
    %cst_203 = arith.constant 1.000000e-01 : f32
    %322 = vector.broadcast %cst_203 : f32 to vector<8x512xf32>
    %323 = arith.cmpf oge, %321, %322 : vector<8x512xf32>
    %324 = arith.extui %323 : vector<8x512xi1> to vector<8x512xi32>
    %325 = arith.sitofp %324 : vector<8x512xi32> to vector<8x512xf32>
    %326 = arith.truncf %325 : vector<8x512xf32> to vector<8x512xbf16>
    %c4_204 = arith.constant 4 : index
    %c0_205 = arith.constant 0 : index
    %c0_206 = arith.constant 0 : index
    %327 = vector.load %arg10[%c4_204, %c0_205, %c0_206] : memref<8x8x512xbf16, #tpu.memory_space<vmem>>, vector<1x8x512xbf16>
    %328 = vector.shape_cast %327 : vector<1x8x512xbf16> to vector<8x512xbf16>
    %329 = vector.shape_cast %326 : vector<8x512xbf16> to vector<1x8x512xbf16>
    tpu.vector_store %arg10[%c4_204, %c0_205, %c0_206], %329 {strides = array<i32>} : memref<8x8x512xbf16, #tpu.memory_space<vmem>>, vector<1x8x512xbf16>,
    %cst_207 = arith.constant 0.000000e+00 : f32
    %330 = vector.broadcast %cst_207 : f32 to vector<8x512xf32>
    %331 = arith.select %323, %330, %321 : vector<8x512xi1>, vector<8x512xf32>
    %c5_208 = arith.constant 5 : index
    %c0_209 = arith.constant 0 : index
    %c0_210 = arith.constant 0 : index
    %332 = vector.load %arg7[%c5_208, %c0_209, %c0_210] : memref<8x8x512xf32, #tpu.memory_space<vmem>>, vector<1x8x512xf32>
    %333 = vector.shape_cast %332 : vector<1x8x512xf32> to vector<8x512xf32>
    %cst_211 = arith.constant 9.900000e-01 : f32
    %334 = vector.broadcast %cst_211 : f32 to vector<8x512xf32>
    %335 = arith.mulf %334, %331 : vector<8x512xf32>
    %336 = arith.addf %335, %333 : vector<8x512xf32>
    %cst_212 = arith.constant 1.000000e-01 : f32
    %337 = vector.broadcast %cst_212 : f32 to vector<8x512xf32>
    %338 = arith.cmpf oge, %336, %337 : vector<8x512xf32>
    %339 = arith.extui %338 : vector<8x512xi1> to vector<8x512xi32>
    %340 = arith.sitofp %339 : vector<8x512xi32> to vector<8x512xf32>
    %341 = arith.truncf %340 : vector<8x512xf32> to vector<8x512xbf16>
    %c5_213 = arith.constant 5 : index
    %c0_214 = arith.constant 0 : index
    %c0_215 = arith.constant 0 : index
    %342 = vector.load %arg10[%c5_213, %c0_214, %c0_215] : memref<8x8x512xbf16, #tpu.memory_space<vmem>>, vector<1x8x512xbf16>
    %343 = vector.shape_cast %342 : vector<1x8x512xbf16> to vector<8x512xbf16>
    %344 = vector.shape_cast %341 : vector<8x512xbf16> to vector<1x8x512xbf16>
    tpu.vector_store %arg10[%c5_213, %c0_214, %c0_215], %344 {strides = array<i32>} : memref<8x8x512xbf16, #tpu.memory_space<vmem>>, vector<1x8x512xbf16>,
    %cst_216 = arith.constant 0.000000e+00 : f32
    %345 = vector.broadcast %cst_216 : f32 to vector<8x512xf32>
    %346 = arith.select %338, %345, %336 : vector<8x512xi1>, vector<8x512xf32>
    %c6_217 = arith.constant 6 : index
    %c0_218 = arith.constant 0 : index
    %c0_219 = arith.constant 0 : index
    %347 = vector.load %arg7[%c6_217, %c0_218, %c0_219] : memref<8x8x512xf32, #tpu.memory_space<vmem>>, vector<1x8x512xf32>
    %348 = vector.shape_cast %347 : vector<1x8x512xf32> to vector<8x512xf32>
    %cst_220 = arith.constant 9.900000e-01 : f32
    %349 = vector.broadcast %cst_220 : f32 to vector<8x512xf32>
    %350 = arith.mulf %349, %346 : vector<8x512xf32>
    %351 = arith.addf %350, %348 : vector<8x512xf32>
    %cst_221 = arith.constant 1.000000e-01 : f32
    %352 = vector.broadcast %cst_221 : f32 to vector<8x512xf32>
    %353 = arith.cmpf oge, %351, %352 : vector<8x512xf32>
    %354 = arith.extui %353 : vector<8x512xi1> to vector<8x512xi32>
    %355 = arith.sitofp %354 : vector<8x512xi32> to vector<8x512xf32>
    %356 = arith.truncf %355 : vector<8x512xf32> to vector<8x512xbf16>
    %c6_222 = arith.constant 6 : index
    %c0_223 = arith.constant 0 : index
    %c0_224 = arith.constant 0 : index
    %357 = vector.load %arg10[%c6_222, %c0_223, %c0_224] : memref<8x8x512xbf16, #tpu.memory_space<vmem>>, vector<1x8x512xbf16>
    %358 = vector.shape_cast %357 : vector<1x8x512xbf16> to vector<8x512xbf16>
    %359 = vector.shape_cast %356 : vector<8x512xbf16> to vector<1x8x512xbf16>
    tpu.vector_store %arg10[%c6_222, %c0_223, %c0_224], %359 {strides = array<i32>} : memref<8x8x512xbf16, #tpu.memory_space<vmem>>, vector<1x8x512xbf16>,
    %cst_225 = arith.constant 0.000000e+00 : f32
    %360 = vector.broadcast %cst_225 : f32 to vector<8x512xf32>
    %361 = arith.select %353, %360, %351 : vector<8x512xi1>, vector<8x512xf32>
    %c7_226 = arith.constant 7 : index
    %c0_227 = arith.constant 0 : index
    %c0_228 = arith.constant 0 : index
    %362 = vector.load %arg7[%c7_226, %c0_227, %c0_228] : memref<8x8x512xf32, #tpu.memory_space<vmem>>, vector<1x8x512xf32>
    %363 = vector.shape_cast %362 : vector<1x8x512xf32> to vector<8x512xf32>
    %cst_229 = arith.constant 9.900000e-01 : f32
    %364 = vector.broadcast %cst_229 : f32 to vector<8x512xf32>
    %365 = arith.mulf %364, %361 : vector<8x512xf32>
    %366 = arith.addf %365, %363 : vector<8x512xf32>
    %cst_230 = arith.constant 1.000000e-01 : f32
    %367 = vector.broadcast %cst_230 : f32 to vector<8x512xf32>
    %368 = arith.cmpf oge, %366, %367 : vector<8x512xf32>
    %369 = arith.extui %368 : vector<8x512xi1> to vector<8x512xi32>
    %370 = arith.sitofp %369 : vector<8x512xi32> to vector<8x512xf32>
    %371 = arith.truncf %370 : vector<8x512xf32> to vector<8x512xbf16>
    %c7_231 = arith.constant 7 : index
    %c0_232 = arith.constant 0 : index
    %c0_233 = arith.constant 0 : index
    %372 = vector.load %arg10[%c7_231, %c0_232, %c0_233] : memref<8x8x512xbf16, #tpu.memory_space<vmem>>, vector<1x8x512xbf16>
    %373 = vector.shape_cast %372 : vector<1x8x512xbf16> to vector<8x512xbf16>
    %374 = vector.shape_cast %371 : vector<8x512xbf16> to vector<1x8x512xbf16>
    tpu.vector_store %arg10[%c7_231, %c0_232, %c0_233], %374 {strides = array<i32>} : memref<8x8x512xbf16, #tpu.memory_space<vmem>>, vector<1x8x512xbf16>,
    %c0_234 = arith.constant 0 : index
    %c0_235 = arith.constant 0 : index
    %c0_236 = arith.constant 0 : index
    %375 = vector.load %arg10[%c0_234, %c0_235, %c0_236] : memref<8x8x512xbf16, #tpu.memory_space<vmem>>, vector<8x8x512xbf16>
    %376 = vector.shape_cast %375 : vector<8x8x512xbf16> to vector<64x512xbf16>
    %c0_237 = arith.constant 0 : index
    %c0_238 = arith.constant 0 : index
    %377 = vector.load %arg5[%c0_237, %c0_238] : memref<512x128xbf16, #tpu.memory_space<vmem>>, vector<512x128xbf16>
    %cst_239 = arith.constant dense<0.000000e+00> : vector<64x128xf32>
    %378 = tpu.matmul %376, %377, %cst_239 {dimension_numbers = #tpu.dot_dimension_numbers<[1], [0], [0], [1], [0, 0, 1, 1], [], []>} : vector<64x512xbf16>, vector<512x128xbf16>, vector<64x128xf32> -> vector<64x128xf32>
    %379 = vector.shape_cast %378 : vector<64x128xf32> to vector<8x8x128xf32>
    %c0_240 = arith.constant 0 : index
    %c0_241 = arith.constant 0 : index
    %c0_242 = arith.constant 0 : index
    %380 = vector.load %arg7[%c0_240, %c0_241, %c0_242] : memref<8x8x512xf32, #tpu.memory_space<vmem>>, vector<8x8x128xf32>
    tpu.vector_store %arg7[%c0_240, %c0_241, %c0_242], %379 {strides = array<i32>} : memref<8x8x512xf32, #tpu.memory_space<vmem>>, vector<8x8x128xf32>,
    %cst_243 = arith.constant 0.000000e+00 : f32
    %381 = vector.broadcast %cst_243 : f32 to vector<8x128xf32>
    %c0_244 = arith.constant 0 : index
    %c0_245 = arith.constant 0 : index
    %c0_246 = arith.constant 0 : index
    %382 = vector.load %arg7[%c0_244, %c0_245, %c0_246] : memref<8x8x512xf32, #tpu.memory_space<vmem>>, vector<1x8x128xf32>
    %383 = vector.shape_cast %382 : vector<1x8x128xf32> to vector<8x128xf32>
    %cst_247 = arith.constant 9.900000e-01 : f32
    %384 = vector.broadcast %cst_247 : f32 to vector<8x128xf32>
    %385 = arith.mulf %384, %381 : vector<8x128xf32>
    %386 = arith.addf %385, %383 : vector<8x128xf32>
    %cst_248 = arith.constant 1.000000e+05 : f32
    %387 = vector.broadcast %cst_248 : f32 to vector<8x128xf32>
    %388 = arith.cmpf oge, %386, %387 : vector<8x128xf32>
    %c0_249 = arith.constant 0 : index
    %c0_250 = arith.constant 0 : index
    %c0_251 = arith.constant 0 : index
    %389 = vector.load %arg6[%c0_249, %c0_250, %c0_251] : memref<8x8x128xf32, #tpu.memory_space<vmem>>, vector<1x8x128xf32>
    %390 = vector.shape_cast %389 : vector<1x8x128xf32> to vector<8x128xf32>
    %391 = vector.shape_cast %386 : vector<8x128xf32> to vector<1x8x128xf32>
    tpu.vector_store %arg6[%c0_249, %c0_250, %c0_251], %391 {strides = array<i32>} : memref<8x8x128xf32, #tpu.memory_space<vmem>>, vector<1x8x128xf32>,
    %cst_252 = arith.constant 0.000000e+00 : f32
    %392 = vector.broadcast %cst_252 : f32 to vector<8x128xf32>
    %393 = arith.select %388, %392, %386 : vector<8x128xi1>, vector<8x128xf32>
    %c1_253 = arith.constant 1 : index
    %c0_254 = arith.constant 0 : index
    %c0_255 = arith.constant 0 : index
    %394 = vector.load %arg7[%c1_253, %c0_254, %c0_255] : memref<8x8x512xf32, #tpu.memory_space<vmem>>, vector<1x8x128xf32>
    %395 = vector.shape_cast %394 : vector<1x8x128xf32> to vector<8x128xf32>
    %cst_256 = arith.constant 9.900000e-01 : f32
    %396 = vector.broadcast %cst_256 : f32 to vector<8x128xf32>
    %397 = arith.mulf %396, %393 : vector<8x128xf32>
    %398 = arith.addf %397, %395 : vector<8x128xf32>
    %cst_257 = arith.constant 1.000000e+05 : f32
    %399 = vector.broadcast %cst_257 : f32 to vector<8x128xf32>
    %400 = arith.cmpf oge, %398, %399 : vector<8x128xf32>
    %c1_258 = arith.constant 1 : index
    %c0_259 = arith.constant 0 : index
    %c0_260 = arith.constant 0 : index
    %401 = vector.load %arg6[%c1_258, %c0_259, %c0_260] : memref<8x8x128xf32, #tpu.memory_space<vmem>>, vector<1x8x128xf32>
    %402 = vector.shape_cast %401 : vector<1x8x128xf32> to vector<8x128xf32>
    %403 = vector.shape_cast %398 : vector<8x128xf32> to vector<1x8x128xf32>
    tpu.vector_store %arg6[%c1_258, %c0_259, %c0_260], %403 {strides = array<i32>} : memref<8x8x128xf32, #tpu.memory_space<vmem>>, vector<1x8x128xf32>,
    %cst_261 = arith.constant 0.000000e+00 : f32
    %404 = vector.broadcast %cst_261 : f32 to vector<8x128xf32>
    %405 = arith.select %400, %404, %398 : vector<8x128xi1>, vector<8x128xf32>
    %c2_262 = arith.constant 2 : index
    %c0_263 = arith.constant 0 : index
    %c0_264 = arith.constant 0 : index
    %406 = vector.load %arg7[%c2_262, %c0_263, %c0_264] : memref<8x8x512xf32, #tpu.memory_space<vmem>>, vector<1x8x128xf32>
    %407 = vector.shape_cast %406 : vector<1x8x128xf32> to vector<8x128xf32>
    %cst_265 = arith.constant 9.900000e-01 : f32
    %408 = vector.broadcast %cst_265 : f32 to vector<8x128xf32>
    %409 = arith.mulf %408, %405 : vector<8x128xf32>
    %410 = arith.addf %409, %407 : vector<8x128xf32>
    %cst_266 = arith.constant 1.000000e+05 : f32
    %411 = vector.broadcast %cst_266 : f32 to vector<8x128xf32>
    %412 = arith.cmpf oge, %410, %411 : vector<8x128xf32>
    %c2_267 = arith.constant 2 : index
    %c0_268 = arith.constant 0 : index
    %c0_269 = arith.constant 0 : index
    %413 = vector.load %arg6[%c2_267, %c0_268, %c0_269] : memref<8x8x128xf32, #tpu.memory_space<vmem>>, vector<1x8x128xf32>
    %414 = vector.shape_cast %413 : vector<1x8x128xf32> to vector<8x128xf32>
    %415 = vector.shape_cast %410 : vector<8x128xf32> to vector<1x8x128xf32>
    tpu.vector_store %arg6[%c2_267, %c0_268, %c0_269], %415 {strides = array<i32>} : memref<8x8x128xf32, #tpu.memory_space<vmem>>, vector<1x8x128xf32>,
    %cst_270 = arith.constant 0.000000e+00 : f32
    %416 = vector.broadcast %cst_270 : f32 to vector<8x128xf32>
    %417 = arith.select %412, %416, %410 : vector<8x128xi1>, vector<8x128xf32>
    %c3_271 = arith.constant 3 : index
    %c0_272 = arith.constant 0 : index
    %c0_273 = arith.constant 0 : index
    %418 = vector.load %arg7[%c3_271, %c0_272, %c0_273] : memref<8x8x512xf32, #tpu.memory_space<vmem>>, vector<1x8x128xf32>
    %419 = vector.shape_cast %418 : vector<1x8x128xf32> to vector<8x128xf32>
    %cst_274 = arith.constant 9.900000e-01 : f32
    %420 = vector.broadcast %cst_274 : f32 to vector<8x128xf32>
    %421 = arith.mulf %420, %417 : vector<8x128xf32>
    %422 = arith.addf %421, %419 : vector<8x128xf32>
    %cst_275 = arith.constant 1.000000e+05 : f32
    %423 = vector.broadcast %cst_275 : f32 to vector<8x128xf32>
    %424 = arith.cmpf oge, %422, %423 : vector<8x128xf32>
    %c3_276 = arith.constant 3 : index
    %c0_277 = arith.constant 0 : index
    %c0_278 = arith.constant 0 : index
    %425 = vector.load %arg6[%c3_276, %c0_277, %c0_278] : memref<8x8x128xf32, #tpu.memory_space<vmem>>, vector<1x8x128xf32>
    %426 = vector.shape_cast %425 : vector<1x8x128xf32> to vector<8x128xf32>
    %427 = vector.shape_cast %422 : vector<8x128xf32> to vector<1x8x128xf32>
    tpu.vector_store %arg6[%c3_276, %c0_277, %c0_278], %427 {strides = array<i32>} : memref<8x8x128xf32, #tpu.memory_space<vmem>>, vector<1x8x128xf32>,
    %cst_279 = arith.constant 0.000000e+00 : f32
    %428 = vector.broadcast %cst_279 : f32 to vector<8x128xf32>
    %429 = arith.select %424, %428, %422 : vector<8x128xi1>, vector<8x128xf32>
    %c4_280 = arith.constant 4 : index
    %c0_281 = arith.constant 0 : index
    %c0_282 = arith.constant 0 : index
    %430 = vector.load %arg7[%c4_280, %c0_281, %c0_282] : memref<8x8x512xf32, #tpu.memory_space<vmem>>, vector<1x8x128xf32>
    %431 = vector.shape_cast %430 : vector<1x8x128xf32> to vector<8x128xf32>
    %cst_283 = arith.constant 9.900000e-01 : f32
    %432 = vector.broadcast %cst_283 : f32 to vector<8x128xf32>
    %433 = arith.mulf %432, %429 : vector<8x128xf32>
    %434 = arith.addf %433, %431 : vector<8x128xf32>
    %cst_284 = arith.constant 1.000000e+05 : f32
    %435 = vector.broadcast %cst_284 : f32 to vector<8x128xf32>
    %436 = arith.cmpf oge, %434, %435 : vector<8x128xf32>
    %c4_285 = arith.constant 4 : index
    %c0_286 = arith.constant 0 : index
    %c0_287 = arith.constant 0 : index
    %437 = vector.load %arg6[%c4_285, %c0_286, %c0_287] : memref<8x8x128xf32, #tpu.memory_space<vmem>>, vector<1x8x128xf32>
    %438 = vector.shape_cast %437 : vector<1x8x128xf32> to vector<8x128xf32>
    %439 = vector.shape_cast %434 : vector<8x128xf32> to vector<1x8x128xf32>
    tpu.vector_store %arg6[%c4_285, %c0_286, %c0_287], %439 {strides = array<i32>} : memref<8x8x128xf32, #tpu.memory_space<vmem>>, vector<1x8x128xf32>,
    %cst_288 = arith.constant 0.000000e+00 : f32
    %440 = vector.broadcast %cst_288 : f32 to vector<8x128xf32>
    %441 = arith.select %436, %440, %434 : vector<8x128xi1>, vector<8x128xf32>
    %c5_289 = arith.constant 5 : index
    %c0_290 = arith.constant 0 : index
    %c0_291 = arith.constant 0 : index
    %442 = vector.load %arg7[%c5_289, %c0_290, %c0_291] : memref<8x8x512xf32, #tpu.memory_space<vmem>>, vector<1x8x128xf32>
    %443 = vector.shape_cast %442 : vector<1x8x128xf32> to vector<8x128xf32>
    %cst_292 = arith.constant 9.900000e-01 : f32
    %444 = vector.broadcast %cst_292 : f32 to vector<8x128xf32>
    %445 = arith.mulf %444, %441 : vector<8x128xf32>
    %446 = arith.addf %445, %443 : vector<8x128xf32>
    %cst_293 = arith.constant 1.000000e+05 : f32
    %447 = vector.broadcast %cst_293 : f32 to vector<8x128xf32>
    %448 = arith.cmpf oge, %446, %447 : vector<8x128xf32>
    %c5_294 = arith.constant 5 : index
    %c0_295 = arith.constant 0 : index
    %c0_296 = arith.constant 0 : index
    %449 = vector.load %arg6[%c5_294, %c0_295, %c0_296] : memref<8x8x128xf32, #tpu.memory_space<vmem>>, vector<1x8x128xf32>
    %450 = vector.shape_cast %449 : vector<1x8x128xf32> to vector<8x128xf32>
    %451 = vector.shape_cast %446 : vector<8x128xf32> to vector<1x8x128xf32>
    tpu.vector_store %arg6[%c5_294, %c0_295, %c0_296], %451 {strides = array<i32>} : memref<8x8x128xf32, #tpu.memory_space<vmem>>, vector<1x8x128xf32>,
    %cst_297 = arith.constant 0.000000e+00 : f32
    %452 = vector.broadcast %cst_297 : f32 to vector<8x128xf32>
    %453 = arith.select %448, %452, %446 : vector<8x128xi1>, vector<8x128xf32>
    %c6_298 = arith.constant 6 : index
    %c0_299 = arith.constant 0 : index
    %c0_300 = arith.constant 0 : index
    %454 = vector.load %arg7[%c6_298, %c0_299, %c0_300] : memref<8x8x512xf32, #tpu.memory_space<vmem>>, vector<1x8x128xf32>
    %455 = vector.shape_cast %454 : vector<1x8x128xf32> to vector<8x128xf32>
    %cst_301 = arith.constant 9.900000e-01 : f32
    %456 = vector.broadcast %cst_301 : f32 to vector<8x128xf32>
    %457 = arith.mulf %456, %453 : vector<8x128xf32>
    %458 = arith.addf %457, %455 : vector<8x128xf32>
    %cst_302 = arith.constant 1.000000e+05 : f32
    %459 = vector.broadcast %cst_302 : f32 to vector<8x128xf32>
    %460 = arith.cmpf oge, %458, %459 : vector<8x128xf32>
    %c6_303 = arith.constant 6 : index
    %c0_304 = arith.constant 0 : index
    %c0_305 = arith.constant 0 : index
    %461 = vector.load %arg6[%c6_303, %c0_304, %c0_305] : memref<8x8x128xf32, #tpu.memory_space<vmem>>, vector<1x8x128xf32>
    %462 = vector.shape_cast %461 : vector<1x8x128xf32> to vector<8x128xf32>
    %463 = vector.shape_cast %458 : vector<8x128xf32> to vector<1x8x128xf32>
    tpu.vector_store %arg6[%c6_303, %c0_304, %c0_305], %463 {strides = array<i32>} : memref<8x8x128xf32, #tpu.memory_space<vmem>>, vector<1x8x128xf32>,
    %cst_306 = arith.constant 0.000000e+00 : f32
    %464 = vector.broadcast %cst_306 : f32 to vector<8x128xf32>
    %465 = arith.select %460, %464, %458 : vector<8x128xi1>, vector<8x128xf32>
    %c7_307 = arith.constant 7 : index
    %c0_308 = arith.constant 0 : index
    %c0_309 = arith.constant 0 : index
    %466 = vector.load %arg7[%c7_307, %c0_308, %c0_309] : memref<8x8x512xf32, #tpu.memory_space<vmem>>, vector<1x8x128xf32>
    %467 = vector.shape_cast %466 : vector<1x8x128xf32> to vector<8x128xf32>
    %cst_310 = arith.constant 9.900000e-01 : f32
    %468 = vector.broadcast %cst_310 : f32 to vector<8x128xf32>
    %469 = arith.mulf %468, %465 : vector<8x128xf32>
    %470 = arith.addf %469, %467 : vector<8x128xf32>
    %c7_311 = arith.constant 7 : index
    %c0_312 = arith.constant 0 : index
    %c0_313 = arith.constant 0 : index
    %471 = vector.load %arg6[%c7_311, %c0_312, %c0_313] : memref<8x8x128xf32, #tpu.memory_space<vmem>>, vector<1x8x128xf32>
    %472 = vector.shape_cast %471 : vector<1x8x128xf32> to vector<8x128xf32>
    %473 = vector.shape_cast %470 : vector<8x128xf32> to vector<1x8x128xf32>
    tpu.vector_store %arg6[%c7_311, %c0_312, %c0_313], %473 {strides = array<i32>} : memref<8x8x128xf32, #tpu.memory_space<vmem>>, vector<1x8x128xf32>,
    return
  }
  func.func @transform_0(%arg0: i32) -> (i32, i32, i32) {
    %c0_i32 = arith.constant 0 : i32
    %c0_i32_0 = arith.constant 0 : i32
    %c0_i32_1 = arith.constant 0 : i32
    return %c0_i32, %arg0, %c0_i32_0 : i32, i32, i32
  }
  func.func @transform_1(%arg0: i32) -> (i32, i32) {
    %c0_i32 = arith.constant 0 : i32
    %c0_i32_0 = arith.constant 0 : i32
    %c0_i32_1 = arith.constant 0 : i32
    return %c0_i32, %c0_i32_0 : i32, i32
  }
  func.func @transform_2(%arg0: i32) -> (i32, i32) {
    %c0_i32 = arith.constant 0 : i32
    %c0_i32_0 = arith.constant 0 : i32
    %c0_i32_1 = arith.constant 0 : i32
    return %c0_i32, %c0_i32_0 : i32, i32
  }
  func.func @transform_3(%arg0: i32) -> (i32, i32) {
    %c0_i32 = arith.constant 0 : i32
    %c0_i32_0 = arith.constant 0 : i32
    %c0_i32_1 = arith.constant 0 : i32
    return %c0_i32, %c0_i32_0 : i32, i32
  }
  func.func @transform_4(%arg0: i32) -> (i32, i32) {
    %c0_i32 = arith.constant 0 : i32
    %c0_i32_0 = arith.constant 0 : i32
    %c0_i32_1 = arith.constant 0 : i32
    return %c0_i32, %c0_i32_0 : i32, i32
  }
  func.func @transform_5(%arg0: i32) -> (i32, i32, i32) {
    %c0_i32 = arith.constant 0 : i32
    %c0_i32_0 = arith.constant 0 : i32
    %c0_i32_1 = arith.constant 0 : i32
    return %c0_i32, %arg0, %c0_i32_0 : i32, i32, i32
  }
}

</mosaic_0001>

<llo_original>
// kernel: snn_forward.1
$region0: #{snn_forward.1}
  #allocation0 [shape = 'u32[]', space=smem, size = 0x4, offset = 0x4, fixed_abs, tag = 'smem constant byte address 0x4 - core index']
  #allocation1 [shape = 'u32[72,128]{1,0:T(1,128)}', space=vmem, size = 0x9000, scoped, tag = 'internal scratch']
  #allocation2 [shape = 'f32[8,8,512]{2,1,0:T(8,128)}', space=vmem, size = 0x20000, scoped, tag = 'scratch operand']
  #allocation3 [shape = 'bf16[8,8,128]{2,1,0:T(8,128)(2,1)}', space=vmem, size = 0x4000, scoped, tag = 'scratch operand']
  #allocation4 [shape = 'bf16[8,8,512]{2,1,0:T(8,128)(2,1)}', space=vmem, size = 0x10000, scoped, tag = 'scratch operand']
  #allocation5 [shape = 'bf16[8,8,512]{2,1,0:T(8,128)(2,1)}', space=vmem, size = 0x10000, scoped, tag = 'scratch operand']
  %s0 = inlined_call_operand.vmem [shape: bf16[8,8,2432], index: 0, kind: input, shape index: {}]
  %s1 = inlined_call_operand.vmem [shape: bf16[2432,128], index: 1, kind: input, shape index: {}]
  %s2 = inlined_call_operand.hbm [shape: bf16[128,512], index: 2, kind: input, shape index: {}]
  %s3 = inlined_call_operand.hbm [shape: bf16[512,512], index: 3, kind: input, shape index: {}]
  %s4 = inlined_call_operand.hbm [shape: bf16[512,128], index: 4, kind: input, shape index: {}]
  %s5 = inlined_call_operand.vmem [shape: f32[8,8,128], index: 5, kind: output, shape index: {}]
  %s6 = sld [smem:[#allocation0]]
  $region42: #{snn_forward.1} parent=0
    _
  %s8 = ssub.s32 1, %s6
  %s9 = scalar_select 0, %s8, %s6
  $region1: #{snn_forward.1} parent=0
    #allocation6 [shape = 'u8[131072]{0}', space=vmem, size = 0x20000, scoped, tag = 'input window, operand 2, single buffered']
    #allocation7 [shape = 's32[1]{0}', space=sflag, size = 0x4, scoped, tag = 'scoped memory for snn_forward.1']
    #allocation8 [shape = 'u8[524288]{0}', space=vmem, size = 0x80000, scoped, tag = 'input window, operand 3, single buffered']
    #allocation9 [shape = 's32[1]{0}', space=sflag, size = 0x4, scoped, tag = 'scoped memory for snn_forward.1']
    #allocation10 [shape = 'u8[131072]{0}', space=vmem, size = 0x20000, scoped, tag = 'input window, operand 4, single buffered']
    %10 = vsyncpa [#allocation7], 0
    %11 = vsyncpa [#allocation9], 0
    // Predicated region
    $region2: #{snn_forward.1} parent=1 // pred_check
      _
    $region3: #{snn_forward.1} parent=1 // pred_check_branch
      %13 = sbr.rel (0) target = $region5
    $region4: #{snn_forward.1} parent=1 // pred_region
      _
    $region5: #{snn_forward.1} parent=1 // pred_fallthru
      _
    // Predicated region
    $region6: #{snn_forward.1} parent=1 // pred_check
      _
    $region7: #{snn_forward.1} parent=1 // pred_check_branch
      %15 = sbr.rel (0) target = $region9
    $region8: #{snn_forward.1} parent=1 // pred_region
      _
    $region9: #{snn_forward.1} parent=1 // pred_fallthru
      _
    // Predicated region
    $region10: #{snn_forward.1} parent=1 // pred_check
      _
    $region11: #{snn_forward.1} parent=1 // pred_check_branch
      %17 = sbr.rel (0) target = $region13
    $region12: #{snn_forward.1} parent=1 // pred_region
      %19 = vsyncadd [#allocation7], 0
      %s20 = sshll.u32 %s2, 4
      %s21 = int_to_ptr.hbm [resolvable:$true] %s20
      %s22 = sshll.u32 [#allocation6], 4
      %s23 = int_to_ptr.vmem [resolvable:$true] %s22
      %28 = dma.hbm_to_vmem [thread:$0]  %s21, 4096, %s23, [#allocation7], 256, 256, 16
    $region13: #{snn_forward.1} parent=1 // pred_fallthru
      _
    // Predicated region
    $region14: #{snn_forward.1} parent=1 // pred_check
      _
    $region15: #{snn_forward.1} parent=1 // pred_check_branch
      %30 = sbr.rel (0) target = $region17
    $region16: #{snn_forward.1} parent=1 // pred_region
      %32 = vsyncadd [#allocation9], 0
      %s33 = sshll.u32 %s3, 4
      %s34 = int_to_ptr.hbm [resolvable:$true] %s33
      %s35 = sshll.u32 [#allocation8], 4
      %s36 = int_to_ptr.vmem [resolvable:$true] %s35
      %41 = dma.hbm_to_vmem [thread:$0]  %s34, 16384, %s36, [#allocation9], 256, 256, 16
    $region17: #{snn_forward.1} parent=1 // pred_fallthru
      _
    // Predicated region
    $region18: #{snn_forward.1} parent=1 // pred_check
      _
    $region19: #{snn_forward.1} parent=1 // pred_check_branch
      %43 = sbr.rel (0) target = $region21
    $region20: #{snn_forward.1} parent=1 // pred_region
      %45 = vsyncadd [#allocation9], 0
      %s46 = sshll.u32 %s4, 4
      %s47 = int_to_ptr.hbm [resolvable:$true] %s46
      %s48 = sshll.u32 [#allocation10], 4
      %s49 = int_to_ptr.vmem [resolvable:$true] %s48
      %54 = dma.hbm_to_vmem [thread:$0]  %s47, 4096, %s49, [#allocation9], 64, 64, 4
    $region21: #{snn_forward.1} parent=1 // pred_fallthru
      _
    // Predicated region
    $region22: #{snn_forward.1} parent=1 // pred_check
      _
    $region23: #{snn_forward.1} parent=1 // pred_check_branch
      %56 = sbr.rel (0) target = $region25
    $region24: #{snn_forward.1} parent=1 // pred_region
      %58 = dma.done [#allocation7], 4096
    $region25: #{snn_forward.1} parent=1 // pred_fallthru
      _
    // Predicated region
    $region26: #{snn_forward.1} parent=1 // pred_check
      _
    $region27: #{snn_forward.1} parent=1 // pred_check_branch
      %60 = sbr.rel (0) target = $region29
    $region28: #{snn_forward.1} parent=1 // pred_region
      %62 = dma.done [#allocation9], 16384
    $region29: #{snn_forward.1} parent=1 // pred_fallthru
      _
    // Predicated region
    $region30: #{snn_forward.1} parent=1 // pred_check
      _
    $region31: #{snn_forward.1} parent=1 // pred_check_branch
      %64 = sbr.rel (0) target = $region33
    $region32: #{snn_forward.1} parent=1 // pred_region
      %66 = dma.done [#allocation9], 4096
    $region33: #{snn_forward.1} parent=1 // pred_fallthru
      _
    %v67 = vld [vmem:[%s0] sm:$0xff]
    %v68 = vld [vmem:[%s0 + $0x8] sm:$0xff]
    %v69 = vld [vmem:[%s0 + $0x10] sm:$0xff]
    %v70 = vld [vmem:[%s0 + $0x18] sm:$0xff]
    %v71 = vld [vmem:[%s0 + $0x20] sm:$0xff]
    %v72 = vld [vmem:[%s0 + $0x28] sm:$0xff]
    %v73 = vld [vmem:[%s0 + $0x30] sm:$0xff]
    %v74 = vld [vmem:[%s0 + $0x38] sm:$0xff]
    %v75 = vld [vmem:[%s0 + $0x40] sm:$0xff]
    %v76 = vld [vmem:[%s0 + $0x48] sm:$0xf]
    %v77 = vld [vmem:[%s0 + $0x4c] sm:$0xff]
    %v78 = vld [vmem:[%s0 + $0x54] sm:$0xff]
    %v79 = vld [vmem:[%s0 + $0x5c] sm:$0xff]
    %v80 = vld [vmem:[%s0 + $0x64] sm:$0xff]
    %v81 = vld [vmem:[%s0 + $0x6c] sm:$0xff]
    %v82 = vld [vmem:[%s0 + $0x74] sm:$0xff]
    %v83 = vld [vmem:[%s0 + $0x7c] sm:$0xff]
    %v84 = vld [vmem:[%s0 + $0x84] sm:$0xff]
    %v85 = vld [vmem:[%s0 + $0x8c] sm:$0xff]
    %v86 = vld [vmem:[%s0 + $0x94] sm:$0xf]
    %v87 = vld [vmem:[%s0 + $0x98] sm:$0xff]
    %v88 = vld [vmem:[%s0 + $0xa0] sm:$0xff]
    %v89 = vld [vmem:[%s0 + $0xa8] sm:$0xff]
    %v90 = vld [vmem:[%s0 + $0xb0] sm:$0xff]
    %v91 = vld [vmem:[%s0 + $0xb8] sm:$0xff]
    %v92 = vld [vmem:[%s0 + $0xc0] sm:$0xff]
    %v93 = vld [vmem:[%s0 + $0xc8] sm:$0xff]
    %v94 = vld [vmem:[%s0 + $0xd0] sm:$0xff]
    %v95 = vld [vmem:[%s0 + $0xd8] sm:$0xff]
    %v96 = vld [vmem:[%s0 + $0xe0] sm:$0xf]
    %v97 = vld [vmem:[%s0 + $0xe4] sm:$0xff]
    %v98 = vld [vmem:[%s0 + $0xec] sm:$0xff]
    %v99 = vld [vmem:[%s0 + $0xf4] sm:$0xff]
    %v100 = vld [vmem:[%s0 + $0xfc] sm:$0xff]
    %v101 = vld [vmem:[%s0 + $0x104] sm:$0xff]
    %v102 = vld [vmem:[%s0 + $0x10c] sm:$0xff]
    %v103 = vld [vmem:[%s0 + $0x114] sm:$0xff]
    %v104 = vld [vmem:[%s0 + $0x11c] sm:$0xff]
    %v105 = vld [vmem:[%s0 + $0x124] sm:$0xff]
    %v106 = vld [vmem:[%s0 + $0x12c] sm:$0xf]
    %v107 = vld [vmem:[%s0 + $0x130] sm:$0xff]
    %v108 = vld [vmem:[%s0 + $0x138] sm:$0xff]
    %v109 = vld [vmem:[%s0 + $0x140] sm:$0xff]
    %v110 = vld [vmem:[%s0 + $0x148] sm:$0xff]
    %v111 = vld [vmem:[%s0 + $0x150] sm:$0xff]
    %v112 = vld [vmem:[%s0 + $0x158] sm:$0xff]
    %v113 = vld [vmem:[%s0 + $0x160] sm:$0xff]
    %v114 = vld [vmem:[%s0 + $0x168] sm:$0xff]
    %v115 = vld [vmem:[%s0 + $0x170] sm:$0xff]
    %v116 = vld [vmem:[%s0 + $0x178] sm:$0xf]
    %v117 = vld [vmem:[%s0 + $0x17c] sm:$0xff]
    %v118 = vld [vmem:[%s0 + $0x184] sm:$0xff]
    %v119 = vld [vmem:[%s0 + $0x18c] sm:$0xff]
    %v120 = vld [vmem:[%s0 + $0x194] sm:$0xff]
    %v121 = vld [vmem:[%s0 + $0x19c] sm:$0xff]
    %v122 = vld [vmem:[%s0 + $0x1a4] sm:$0xff]
    %v123 = vld [vmem:[%s0 + $0x1ac] sm:$0xff]
    %v124 = vld [vmem:[%s0 + $0x1b4] sm:$0xff]
    %v125 = vld [vmem:[%s0 + $0x1bc] sm:$0xff]
    %v126 = vld [vmem:[%s0 + $0x1c4] sm:$0xf]
    %v127 = vld [vmem:[%s0 + $0x1c8] sm:$0xff]
    %v128 = vld [vmem:[%s0 + $0x1d0] sm:$0xff]
    %v129 = vld [vmem:[%s0 + $0x1d8] sm:$0xff]
    %v130 = vld [vmem:[%s0 + $0x1e0] sm:$0xff]
    %v131 = vld [vmem:[%s0 + $0x1e8] sm:$0xff]
    %v132 = vld [vmem:[%s0 + $0x1f0] sm:$0xff]
    %v133 = vld [vmem:[%s0 + $0x1f8] sm:$0xff]
    %v134 = vld [vmem:[%s0 + $0x200] sm:$0xff]
    %v135 = vld [vmem:[%s0 + $0x208] sm:$0xff]
    %v136 = vld [vmem:[%s0 + $0x210] sm:$0xf]
    %v137 = vld [vmem:[%s0 + $0x214] sm:$0xff]
    %v138 = vld [vmem:[%s0 + $0x21c] sm:$0xff]
    %v139 = vld [vmem:[%s0 + $0x224] sm:$0xff]
    %v140 = vld [vmem:[%s0 + $0x22c] sm:$0xff]
    %v141 = vld [vmem:[%s0 + $0x234] sm:$0xff]
    %v142 = vld [vmem:[%s0 + $0x23c] sm:$0xff]
    %v143 = vld [vmem:[%s0 + $0x244] sm:$0xff]
    %v144 = vld [vmem:[%s0 + $0x24c] sm:$0xff]
    %v145 = vld [vmem:[%s0 + $0x254] sm:$0xff]
    %v146 = vld [vmem:[%s0 + $0x25c] sm:$0xf]
    %v147 = vld [vmem:[%s1] sm:$0xf]
    %v148 = vld [vmem:[%s1 + $0x4] sm:$0xf]
    %v149 = vld [vmem:[%s1 + $0x8] sm:$0xf]
    %v150 = vld [vmem:[%s1 + $0xc] sm:$0xf]
    %v151 = vld [vmem:[%s1 + $0x10] sm:$0xf]
    %v152 = vld [vmem:[%s1 + $0x14] sm:$0xf]
    %v153 = vld [vmem:[%s1 + $0x18] sm:$0xf]
    %v154 = vld [vmem:[%s1 + $0x1c] sm:$0xf]
    %v155 = vld [vmem:[%s1 + $0x20] sm:$0xf]
    %v156 = vld [vmem:[%s1 + $0x24] sm:$0xf]
    %v157 = vld [vmem:[%s1 + $0x28] sm:$0xf]
    %v158 = vld [vmem:[%s1 + $0x2c] sm:$0xf]
    %v159 = vld [vmem:[%s1 + $0x30] sm:$0xf]
    %v160 = vld [vmem:[%s1 + $0x34] sm:$0xf]
    %v161 = vld [vmem:[%s1 + $0x38] sm:$0xf]
    %v162 = vld [vmem:[%s1 + $0x3c] sm:$0xf]
    %v163 = vld [vmem:[%s1 + $0x40] sm:$0xf]
    %v164 = vld [vmem:[%s1 + $0x44] sm:$0xf]
    %v165 = vld [vmem:[%s1 + $0x48] sm:$0xf]
    %v166 = vld [vmem:[%s1 + $0x4c] sm:$0xf]
    %v167 = vld [vmem:[%s1 + $0x50] sm:$0xf]
    %v168 = vld [vmem:[%s1 + $0x54] sm:$0xf]
    %v169 = vld [vmem:[%s1 + $0x58] sm:$0xf]
    %v170 = vld [vmem:[%s1 + $0x5c] sm:$0xf]
    %v171 = vld [vmem:[%s1 + $0x60] sm:$0xf]
    %v172 = vld [vmem:[%s1 + $0x64] sm:$0xf]
    %v173 = vld [vmem:[%s1 + $0x68] sm:$0xf]
    %v174 = vld [vmem:[%s1 + $0x6c] sm:$0xf]
    %v175 = vld [vmem:[%s1 + $0x70] sm:$0xf]
    %v176 = vld [vmem:[%s1 + $0x74] sm:$0xf]
    %v177 = vld [vmem:[%s1 + $0x78] sm:$0xf]
    %v178 = vld [vmem:[%s1 + $0x7c] sm:$0xf]
    %v179 = vld [vmem:[%s1 + $0x80] sm:$0xf]
    %v180 = vld [vmem:[%s1 + $0x84] sm:$0xf]
    %v181 = vld [vmem:[%s1 + $0x88] sm:$0xf]
    %v182 = vld [vmem:[%s1 + $0x8c] sm:$0xf]
    %v183 = vld [vmem:[%s1 + $0x90] sm:$0xf]
    %v184 = vld [vmem:[%s1 + $0x94] sm:$0xf]
    %v185 = vld [vmem:[%s1 + $0x98] sm:$0xf]
    %v186 = vld [vmem:[%s1 + $0x9c] sm:$0xf]
    %v187 = vld [vmem:[%s1 + $0xa0] sm:$0xf]
    %v188 = vld [vmem:[%s1 + $0xa4] sm:$0xf]
    %v189 = vld [vmem:[%s1 + $0xa8] sm:$0xf]
    %v190 = vld [vmem:[%s1 + $0xac] sm:$0xf]
    %v191 = vld [vmem:[%s1 + $0xb0] sm:$0xf]
    %v192 = vld [vmem:[%s1 + $0xb4] sm:$0xf]
    %v193 = vld [vmem:[%s1 + $0xb8] sm:$0xf]
    %v194 = vld [vmem:[%s1 + $0xbc] sm:$0xf]
    %v195 = vld [vmem:[%s1 + $0xc0] sm:$0xf]
    %v196 = vld [vmem:[%s1 + $0xc4] sm:$0xf]
    %v197 = vld [vmem:[%s1 + $0xc8] sm:$0xf]
    %v198 = vld [vmem:[%s1 + $0xcc] sm:$0xf]
    %v199 = vld [vmem:[%s1 + $0xd0] sm:$0xf]
    %v200 = vld [vmem:[%s1 + $0xd4] sm:$0xf]
    %v201 = vld [vmem:[%s1 + $0xd8] sm:$0xf]
    %v202 = vld [vmem:[%s1 + $0xdc] sm:$0xf]
    %v203 = vld [vmem:[%s1 + $0xe0] sm:$0xf]
    %v204 = vld [vmem:[%s1 + $0xe4] sm:$0xf]
    %v205 = vld [vmem:[%s1 + $0xe8] sm:$0xf]
    %v206 = vld [vmem:[%s1 + $0xec] sm:$0xf]
    %v207 = vld [vmem:[%s1 + $0xf0] sm:$0xf]
    %v208 = vld [vmem:[%s1 + $0xf4] sm:$0xf]
    %v209 = vld [vmem:[%s1 + $0xf8] sm:$0xf]
    %v210 = vld [vmem:[%s1 + $0xfc] sm:$0xf]
    %v211 = vld [vmem:[%s1 + $0x100] sm:$0xf]
    %v212 = vld [vmem:[%s1 + $0x104] sm:$0xf]
    %v213 = vld [vmem:[%s1 + $0x108] sm:$0xf]
    %v214 = vld [vmem:[%s1 + $0x10c] sm:$0xf]
    %v215 = vld [vmem:[%s1 + $0x110] sm:$0xf]
    %v216 = vld [vmem:[%s1 + $0x114] sm:$0xf]
    %v217 = vld [vmem:[%s1 + $0x118] sm:$0xf]
    %v218 = vld [vmem:[%s1 + $0x11c] sm:$0xf]
    %v219 = vld [vmem:[%s1 + $0x120] sm:$0xf]
    %v220 = vld [vmem:[%s1 + $0x124] sm:$0xf]
    %v221 = vld [vmem:[%s1 + $0x128] sm:$0xf]
    %v222 = vld [vmem:[%s1 + $0x12c] sm:$0xf]
    %v223 = vld [vmem:[%s1 + $0x130] sm:$0xf]
    %v224 = vld [vmem:[%s1 + $0x134] sm:$0xf]
    %v225 = vld [vmem:[%s1 + $0x138] sm:$0xf]
    %v226 = vld [vmem:[%s1 + $0x13c] sm:$0xf]
    %v227 = vld [vmem:[%s1 + $0x140] sm:$0xf]
    %v228 = vld [vmem:[%s1 + $0x144] sm:$0xf]
    %v229 = vld [vmem:[%s1 + $0x148] sm:$0xf]
    %v230 = vld [vmem:[%s1 + $0x14c] sm:$0xf]
    %v231 = vld [vmem:[%s1 + $0x150] sm:$0xf]
    %v232 = vld [vmem:[%s1 + $0x154] sm:$0xf]
    %v233 = vld [vmem:[%s1 + $0x158] sm:$0xf]
    %v234 = vld [vmem:[%s1 + $0x15c] sm:$0xf]
    %v235 = vld [vmem:[%s1 + $0x160] sm:$0xf]
    %v236 = vld [vmem:[%s1 + $0x164] sm:$0xf]
    %v237 = vld [vmem:[%s1 + $0x168] sm:$0xf]
    %v238 = vld [vmem:[%s1 + $0x16c] sm:$0xf]
    %v239 = vld [vmem:[%s1 + $0x170] sm:$0xf]
    %v240 = vld [vmem:[%s1 + $0x174] sm:$0xf]
    %v241 = vld [vmem:[%s1 + $0x178] sm:$0xf]
    %v242 = vld [vmem:[%s1 + $0x17c] sm:$0xf]
    %v243 = vld [vmem:[%s1 + $0x180] sm:$0xf]
    %v244 = vld [vmem:[%s1 + $0x184] sm:$0xf]
    %v245 = vld [vmem:[%s1 + $0x188] sm:$0xf]
    %v246 = vld [vmem:[%s1 + $0x18c] sm:$0xf]
    %v247 = vld [vmem:[%s1 + $0x190] sm:$0xf]
    %v248 = vld [vmem:[%s1 + $0x194] sm:$0xf]
    %v249 = vld [vmem:[%s1 + $0x198] sm:$0xf]
    %v250 = vld [vmem:[%s1 + $0x19c] sm:$0xf]
    %v251 = vld [vmem:[%s1 + $0x1a0] sm:$0xf]
    %v252 = vld [vmem:[%s1 + $0x1a4] sm:$0xf]
    %v253 = vld [vmem:[%s1 + $0x1a8] sm:$0xf]
    %v254 = vld [vmem:[%s1 + $0x1ac] sm:$0xf]
    %v255 = vld [vmem:[%s1 + $0x1b0] sm:$0xf]
    %v256 = vld [vmem:[%s1 + $0x1b4] sm:$0xf]
    %v257 = vld [vmem:[%s1 + $0x1b8] sm:$0xf]
    %v258 = vld [vmem:[%s1 + $0x1bc] sm:$0xf]
    %v259 = vld [vmem:[%s1 + $0x1c0] sm:$0xf]
    %v260 = vld [vmem:[%s1 + $0x1c4] sm:$0xf]
    %v261 = vld [vmem:[%s1 + $0x1c8] sm:$0xf]
    %v262 = vld [vmem:[%s1 + $0x1cc] sm:$0xf]
    %v263 = vld [vmem:[%s1 + $0x1d0] sm:$0xf]
    %v264 = vld [vmem:[%s1 + $0x1d4] sm:$0xf]
    %v265 = vld [vmem:[%s1 + $0x1d8] sm:$0xf]
    %v266 = vld [vmem:[%s1 + $0x1dc] sm:$0xf]
    %v267 = vld [vmem:[%s1 + $0x1e0] sm:$0xf]
    %v268 = vld [vmem:[%s1 + $0x1e4] sm:$0xf]
    %v269 = vld [vmem:[%s1 + $0x1e8] sm:$0xf]
    %v270 = vld [vmem:[%s1 + $0x1ec] sm:$0xf]
    %v271 = vld [vmem:[%s1 + $0x1f0] sm:$0xf]
    %v272 = vld [vmem:[%s1 + $0x1f4] sm:$0xf]
    %v273 = vld [vmem:[%s1 + $0x1f8] sm:$0xf]
    %v274 = vld [vmem:[%s1 + $0x1fc] sm:$0xf]
    %v275 = vld [vmem:[%s1 + $0x200] sm:$0xf]
    %v276 = vld [vmem:[%s1 + $0x204] sm:$0xf]
    %v277 = vld [vmem:[%s1 + $0x208] sm:$0xf]
    %v278 = vld [vmem:[%s1 + $0x20c] sm:$0xf]
    %v279 = vld [vmem:[%s1 + $0x210] sm:$0xf]
    %v280 = vld [vmem:[%s1 + $0x214] sm:$0xf]
    %v281 = vld [vmem:[%s1 + $0x218] sm:$0xf]
    %v282 = vld [vmem:[%s1 + $0x21c] sm:$0xf]
    %v283 = vld [vmem:[%s1 + $0x220] sm:$0xf]
    %v284 = vld [vmem:[%s1 + $0x224] sm:$0xf]
    %v285 = vld [vmem:[%s1 + $0x228] sm:$0xf]
    %v286 = vld [vmem:[%s1 + $0x22c] sm:$0xf]
    %v287 = vld [vmem:[%s1 + $0x230] sm:$0xf]
    %v288 = vld [vmem:[%s1 + $0x234] sm:$0xf]
    %v289 = vld [vmem:[%s1 + $0x238] sm:$0xf]
    %v290 = vld [vmem:[%s1 + $0x23c] sm:$0xf]
    %v291 = vld [vmem:[%s1 + $0x240] sm:$0xf]
    %v292 = vld [vmem:[%s1 + $0x244] sm:$0xf]
    %v293 = vld [vmem:[%s1 + $0x248] sm:$0xf]
    %v294 = vld [vmem:[%s1 + $0x24c] sm:$0xf]
    %v295 = vld [vmem:[%s1 + $0x250] sm:$0xf]
    %v296 = vld [vmem:[%s1 + $0x254] sm:$0xf]
    %v297 = vld [vmem:[%s1 + $0x258] sm:$0xf]
    %v298 = vld [vmem:[%s1 + $0x25c] sm:$0xf]
    %v299 = vld [vmem:[%s1 + $0x260] sm:$0xf]
    %v300 = vld [vmem:[%s1 + $0x264] sm:$0xf]
    %v301 = vld [vmem:[%s1 + $0x268] sm:$0xf]
    %v302 = vld [vmem:[%s1 + $0x26c] sm:$0xf]
    %v303 = vld [vmem:[%s1 + $0x270] sm:$0xf]
    %v304 = vld [vmem:[%s1 + $0x274] sm:$0xf]
    %v305 = vld [vmem:[%s1 + $0x278] sm:$0xf]
    %v306 = vld [vmem:[%s1 + $0x27c] sm:$0xf]
    %v307 = vld [vmem:[%s1 + $0x280] sm:$0xf]
    %v308 = vld [vmem:[%s1 + $0x284] sm:$0xf]
    %v309 = vld [vmem:[%s1 + $0x288] sm:$0xf]
    %v310 = vld [vmem:[%s1 + $0x28c] sm:$0xf]
    %v311 = vld [vmem:[%s1 + $0x290] sm:$0xf]
    %v312 = vld [vmem:[%s1 + $0x294] sm:$0xf]
    %v313 = vld [vmem:[%s1 + $0x298] sm:$0xf]
    %v314 = vld [vmem:[%s1 + $0x29c] sm:$0xf]
    %v315 = vld [vmem:[%s1 + $0x2a0] sm:$0xf]
    %v316 = vld [vmem:[%s1 + $0x2a4] sm:$0xf]
    %v317 = vld [vmem:[%s1 + $0x2a8] sm:$0xf]
    %v318 = vld [vmem:[%s1 + $0x2ac] sm:$0xf]
    %v319 = vld [vmem:[%s1 + $0x2b0] sm:$0xf]
    %v320 = vld [vmem:[%s1 + $0x2b4] sm:$0xf]
    %v321 = vld [vmem:[%s1 + $0x2b8] sm:$0xf]
    %v322 = vld [vmem:[%s1 + $0x2bc] sm:$0xf]
    %v323 = vld [vmem:[%s1 + $0x2c0] sm:$0xf]
    %v324 = vld [vmem:[%s1 + $0x2c4] sm:$0xf]
    %v325 = vld [vmem:[%s1 + $0x2c8] sm:$0xf]
    %v326 = vld [vmem:[%s1 + $0x2cc] sm:$0xf]
    %v327 = vld [vmem:[%s1 + $0x2d0] sm:$0xf]
    %v328 = vld [vmem:[%s1 + $0x2d4] sm:$0xf]
    %v329 = vld [vmem:[%s1 + $0x2d8] sm:$0xf]
    %v330 = vld [vmem:[%s1 + $0x2dc] sm:$0xf]
    %v331 = vld [vmem:[%s1 + $0x2e0] sm:$0xf]
    %v332 = vld [vmem:[%s1 + $0x2e4] sm:$0xf]
    %v333 = vld [vmem:[%s1 + $0x2e8] sm:$0xf]
    %v334 = vld [vmem:[%s1 + $0x2ec] sm:$0xf]
    %v335 = vld [vmem:[%s1 + $0x2f0] sm:$0xf]
    %v336 = vld [vmem:[%s1 + $0x2f4] sm:$0xf]
    %v337 = vld [vmem:[%s1 + $0x2f8] sm:$0xf]
    %v338 = vld [vmem:[%s1 + $0x2fc] sm:$0xf]
    %v339 = vld [vmem:[%s1 + $0x300] sm:$0xf]
    %v340 = vld [vmem:[%s1 + $0x304] sm:$0xf]
    %v341 = vld [vmem:[%s1 + $0x308] sm:$0xf]
    %v342 = vld [vmem:[%s1 + $0x30c] sm:$0xf]
    %v343 = vld [vmem:[%s1 + $0x310] sm:$0xf]
    %v344 = vld [vmem:[%s1 + $0x314] sm:$0xf]
    %v345 = vld [vmem:[%s1 + $0x318] sm:$0xf]
    %v346 = vld [vmem:[%s1 + $0x31c] sm:$0xf]
    %v347 = vld [vmem:[%s1 + $0x320] sm:$0xf]
    %v348 = vld [vmem:[%s1 + $0x324] sm:$0xf]
    %v349 = vld [vmem:[%s1 + $0x328] sm:$0xf]
    %v350 = vld [vmem:[%s1 + $0x32c] sm:$0xf]
    %v351 = vld [vmem:[%s1 + $0x330] sm:$0xf]
    %v352 = vld [vmem:[%s1 + $0x334] sm:$0xf]
    %v353 = vld [vmem:[%s1 + $0x338] sm:$0xf]
    %v354 = vld [vmem:[%s1 + $0x33c] sm:$0xf]
    %v355 = vld [vmem:[%s1 + $0x340] sm:$0xf]
    %v356 = vld [vmem:[%s1 + $0x344] sm:$0xf]
    %v357 = vld [vmem:[%s1 + $0x348] sm:$0xf]
    %v358 = vld [vmem:[%s1 + $0x34c] sm:$0xf]
    %v359 = vld [vmem:[%s1 + $0x350] sm:$0xf]
    %v360 = vld [vmem:[%s1 + $0x354] sm:$0xf]
    %v361 = vld [vmem:[%s1 + $0x358] sm:$0xf]
    %v362 = vld [vmem:[%s1 + $0x35c] sm:$0xf]
    %v363 = vld [vmem:[%s1 + $0x360] sm:$0xf]
    %v364 = vld [vmem:[%s1 + $0x364] sm:$0xf]
    %v365 = vld [vmem:[%s1 + $0x368] sm:$0xf]
    %v366 = vld [vmem:[%s1 + $0x36c] sm:$0xf]
    %v367 = vld [vmem:[%s1 + $0x370] sm:$0xf]
    %v368 = vld [vmem:[%s1 + $0x374] sm:$0xf]
    %v369 = vld [vmem:[%s1 + $0x378] sm:$0xf]
    %v370 = vld [vmem:[%s1 + $0x37c] sm:$0xf]
    %v371 = vld [vmem:[%s1 + $0x380] sm:$0xf]
    %v372 = vld [vmem:[%s1 + $0x384] sm:$0xf]
    %v373 = vld [vmem:[%s1 + $0x388] sm:$0xf]
    %v374 = vld [vmem:[%s1 + $0x38c] sm:$0xf]
    %v375 = vld [vmem:[%s1 + $0x390] sm:$0xf]
    %v376 = vld [vmem:[%s1 + $0x394] sm:$0xf]
    %v377 = vld [vmem:[%s1 + $0x398] sm:$0xf]
    %v378 = vld [vmem:[%s1 + $0x39c] sm:$0xf]
    %v379 = vld [vmem:[%s1 + $0x3a0] sm:$0xf]
    %v380 = vld [vmem:[%s1 + $0x3a4] sm:$0xf]
    %v381 = vld [vmem:[%s1 + $0x3a8] sm:$0xf]
    %v382 = vld [vmem:[%s1 + $0x3ac] sm:$0xf]
    %v383 = vld [vmem:[%s1 + $0x3b0] sm:$0xf]
    %v384 = vld [vmem:[%s1 + $0x3b4] sm:$0xf]
    %v385 = vld [vmem:[%s1 + $0x3b8] sm:$0xf]
    %v386 = vld [vmem:[%s1 + $0x3bc] sm:$0xf]
    %v387 = vld [vmem:[%s1 + $0x3c0] sm:$0xf]
    %v388 = vld [vmem:[%s1 + $0x3c4] sm:$0xf]
    %v389 = vld [vmem:[%s1 + $0x3c8] sm:$0xf]
    %v390 = vld [vmem:[%s1 + $0x3cc] sm:$0xf]
    %v391 = vld [vmem:[%s1 + $0x3d0] sm:$0xf]
    %v392 = vld [vmem:[%s1 + $0x3d4] sm:$0xf]
    %v393 = vld [vmem:[%s1 + $0x3d8] sm:$0xf]
    %v394 = vld [vmem:[%s1 + $0x3dc] sm:$0xf]
    %v395 = vld [vmem:[%s1 + $0x3e0] sm:$0xf]
    %v396 = vld [vmem:[%s1 + $0x3e4] sm:$0xf]
    %v397 = vld [vmem:[%s1 + $0x3e8] sm:$0xf]
    %v398 = vld [vmem:[%s1 + $0x3ec] sm:$0xf]
    %v399 = vld [vmem:[%s1 + $0x3f0] sm:$0xf]
    %v400 = vld [vmem:[%s1 + $0x3f4] sm:$0xf]
    %v401 = vld [vmem:[%s1 + $0x3f8] sm:$0xf]
    %v402 = vld [vmem:[%s1 + $0x3fc] sm:$0xf]
    %v403 = vld [vmem:[%s1 + $0x400] sm:$0xf]
    %v404 = vld [vmem:[%s1 + $0x404] sm:$0xf]
    %v405 = vld [vmem:[%s1 + $0x408] sm:$0xf]
    %v406 = vld [vmem:[%s1 + $0x40c] sm:$0xf]
    %v407 = vld [vmem:[%s1 + $0x410] sm:$0xf]
    %v408 = vld [vmem:[%s1 + $0x414] sm:$0xf]
    %v409 = vld [vmem:[%s1 + $0x418] sm:$0xf]
    %v410 = vld [vmem:[%s1 + $0x41c] sm:$0xf]
    %v411 = vld [vmem:[%s1 + $0x420] sm:$0xf]
    %v412 = vld [vmem:[%s1 + $0x424] sm:$0xf]
    %v413 = vld [vmem:[%s1 + $0x428] sm:$0xf]
    %v414 = vld [vmem:[%s1 + $0x42c] sm:$0xf]
    %v415 = vld [vmem:[%s1 + $0x430] sm:$0xf]
    %v416 = vld [vmem:[%s1 + $0x434] sm:$0xf]
    %v417 = vld [vmem:[%s1 + $0x438] sm:$0xf]
    %v418 = vld [vmem:[%s1 + $0x43c] sm:$0xf]
    %v419 = vld [vmem:[%s1 + $0x440] sm:$0xf]
    %v420 = vld [vmem:[%s1 + $0x444] sm:$0xf]
    %v421 = vld [vmem:[%s1 + $0x448] sm:$0xf]
    %v422 = vld [vmem:[%s1 + $0x44c] sm:$0xf]
    %v423 = vld [vmem:[%s1 + $0x450] sm:$0xf]
    %v424 = vld [vmem:[%s1 + $0x454] sm:$0xf]
    %v425 = vld [vmem:[%s1 + $0x458] sm:$0xf]
    %v426 = vld [vmem:[%s1 + $0x45c] sm:$0xf]
    %v427 = vld [vmem:[%s1 + $0x460] sm:$0xf]
    %v428 = vld [vmem:[%s1 + $0x464] sm:$0xf]
    %v429 = vld [vmem:[%s1 + $0x468] sm:$0xf]
    %v430 = vld [vmem:[%s1 + $0x46c] sm:$0xf]
    %v431 = vld [vmem:[%s1 + $0x470] sm:$0xf]
    %v432 = vld [vmem:[%s1 + $0x474] sm:$0xf]
    %v433 = vld [vmem:[%s1 + $0x478] sm:$0xf]
    %v434 = vld [vmem:[%s1 + $0x47c] sm:$0xf]
    %v435 = vld [vmem:[%s1 + $0x480] sm:$0xf]
    %v436 = vld [vmem:[%s1 + $0x484] sm:$0xf]
    %v437 = vld [vmem:[%s1 + $0x488] sm:$0xf]
    %v438 = vld [vmem:[%s1 + $0x48c] sm:$0xf]
    %v439 = vld [vmem:[%s1 + $0x490] sm:$0xf]
    %v440 = vld [vmem:[%s1 + $0x494] sm:$0xf]
    %v441 = vld [vmem:[%s1 + $0x498] sm:$0xf]
    %v442 = vld [vmem:[%s1 + $0x49c] sm:$0xf]
    %v443 = vld [vmem:[%s1 + $0x4a0] sm:$0xf]
    %v444 = vld [vmem:[%s1 + $0x4a4] sm:$0xf]
    %v445 = vld [vmem:[%s1 + $0x4a8] sm:$0xf]
    %v446 = vld [vmem:[%s1 + $0x4ac] sm:$0xf]
    %v447 = vld [vmem:[%s1 + $0x4b0] sm:$0xf]
    %v448 = vld [vmem:[%s1 + $0x4b4] sm:$0xf]
    %v449 = vld [vmem:[%s1 + $0x4b8] sm:$0xf]
    %v450 = vld [vmem:[%s1 + $0x4bc] sm:$0xf]
    %v531 = vunpack.c.l.b16 %v67
    %v532 = vunpack.c.h.b16 %v67
    %v533 = vunpack.c.l.b16 %v68
    %v534 = vunpack.c.h.b16 %v68
    %v535 = vunpack.c.l.b16 %v69
    %v536 = vunpack.c.h.b16 %v69
    %v537 = vunpack.c.l.b16 %v70
    %v538 = vunpack.c.h.b16 %v70
    %v539 = vunpack.c.l.b16 %v71
    %v540 = vunpack.c.h.b16 %v71
    %v541 = vunpack.c.l.b16 %v72
    %v542 = vunpack.c.h.b16 %v72
    %v543 = vunpack.c.l.b16 %v73
    %v544 = vunpack.c.h.b16 %v73
    %v545 = vunpack.c.l.b16 %v74
    %v546 = vunpack.c.h.b16 %v74
    %v547 = vunpack.c.l.b16 %v75
    %v548 = vunpack.c.h.b16 %v75
    %v549 = vunpack.c.l.b16 %v76
    %v550 = vunpack.c.l.b16 %v77
    %v551 = vunpack.c.h.b16 %v77
    %v552 = vunpack.c.l.b16 %v78
    %v553 = vunpack.c.h.b16 %v78
    %v554 = vunpack.c.l.b16 %v79
    %v555 = vunpack.c.h.b16 %v79
    %v556 = vunpack.c.l.b16 %v80
    %v557 = vunpack.c.h.b16 %v80
    %v558 = vunpack.c.l.b16 %v81
    %v559 = vunpack.c.h.b16 %v81
    %v560 = vunpack.c.l.b16 %v82
    %v561 = vunpack.c.h.b16 %v82
    %v562 = vunpack.c.l.b16 %v83
    %v563 = vunpack.c.h.b16 %v83
    %v564 = vunpack.c.l.b16 %v84
    %v565 = vunpack.c.h.b16 %v84
    %v566 = vunpack.c.l.b16 %v85
    %v567 = vunpack.c.h.b16 %v85
    %v568 = vunpack.c.l.b16 %v86
    %v569 = vunpack.c.l.b16 %v87
    %v570 = vunpack.c.h.b16 %v87
    %v571 = vunpack.c.l.b16 %v88
    %v572 = vunpack.c.h.b16 %v88
    %v573 = vunpack.c.l.b16 %v89
    %v574 = vunpack.c.h.b16 %v89
    %v575 = vunpack.c.l.b16 %v90
    %v576 = vunpack.c.h.b16 %v90
    %v577 = vunpack.c.l.b16 %v91
    %v578 = vunpack.c.h.b16 %v91
    %v579 = vunpack.c.l.b16 %v92
    %v580 = vunpack.c.h.b16 %v92
    %v581 = vunpack.c.l.b16 %v93
    %v582 = vunpack.c.h.b16 %v93
    %v583 = vunpack.c.l.b16 %v94
    %v584 = vunpack.c.h.b16 %v94
    %v585 = vunpack.c.l.b16 %v95
    %v586 = vunpack.c.h.b16 %v95
    %v587 = vunpack.c.l.b16 %v96
    %v588 = vunpack.c.l.b16 %v97
    %v589 = vunpack.c.h.b16 %v97
    %v590 = vunpack.c.l.b16 %v98
    %v591 = vunpack.c.h.b16 %v98
    %v592 = vunpack.c.l.b16 %v99
    %v593 = vunpack.c.h.b16 %v99
    %v594 = vunpack.c.l.b16 %v100
    %v595 = vunpack.c.h.b16 %v100
    %v596 = vunpack.c.l.b16 %v101
    %v597 = vunpack.c.h.b16 %v101
    %v598 = vunpack.c.l.b16 %v102
    %v599 = vunpack.c.h.b16 %v102
    %v600 = vunpack.c.l.b16 %v103
    %v601 = vunpack.c.h.b16 %v103
    %v602 = vunpack.c.l.b16 %v104
    %v603 = vunpack.c.h.b16 %v104
    %v604 = vunpack.c.l.b16 %v105
    %v605 = vunpack.c.h.b16 %v105
    %v606 = vunpack.c.l.b16 %v106
    %v607 = vunpack.c.l.b16 %v107
    %v608 = vunpack.c.h.b16 %v107
    %v609 = vunpack.c.l.b16 %v108
    %v610 = vunpack.c.h.b16 %v108
    %v611 = vunpack.c.l.b16 %v109
    %v612 = vunpack.c.h.b16 %v109
    %v613 = vunpack.c.l.b16 %v110
    %v614 = vunpack.c.h.b16 %v110
    %v615 = vunpack.c.l.b16 %v111
    %v616 = vunpack.c.h.b16 %v111
    %v617 = vunpack.c.l.b16 %v112
    %v618 = vunpack.c.h.b16 %v112
    %v619 = vunpack.c.l.b16 %v113
    %v620 = vunpack.c.h.b16 %v113
    %v621 = vunpack.c.l.b16 %v114
    %v622 = vunpack.c.h.b16 %v114
    %v623 = vunpack.c.l.b16 %v115
    %v624 = vunpack.c.h.b16 %v115
    %v625 = vunpack.c.l.b16 %v116
    %v626 = vunpack.c.l.b16 %v117
    %v627 = vunpack.c.h.b16 %v117
    %v628 = vunpack.c.l.b16 %v118
    %v629 = vunpack.c.h.b16 %v118
    %v630 = vunpack.c.l.b16 %v119
    %v631 = vunpack.c.h.b16 %v119
    %v632 = vunpack.c.l.b16 %v120
    %v633 = vunpack.c.h.b16 %v120
    %v634 = vunpack.c.l.b16 %v121
    %v635 = vunpack.c.h.b16 %v121
    %v636 = vunpack.c.l.b16 %v122
    %v637 = vunpack.c.h.b16 %v122
    %v638 = vunpack.c.l.b16 %v123
    %v639 = vunpack.c.h.b16 %v123
    %v640 = vunpack.c.l.b16 %v124
    %v641 = vunpack.c.h.b16 %v124
    %v642 = vunpack.c.l.b16 %v125
    %v643 = vunpack.c.h.b16 %v125
    %v644 = vunpack.c.l.b16 %v126
    %v645 = vunpack.c.l.b16 %v127
    %v646 = vunpack.c.h.b16 %v127
    %v647 = vunpack.c.l.b16 %v128
    %v648 = vunpack.c.h.b16 %v128
    %v649 = vunpack.c.l.b16 %v129
    %v650 = vunpack.c.h.b16 %v129
    %v651 = vunpack.c.l.b16 %v130
    %v652 = vunpack.c.h.b16 %v130
    %v653 = vunpack.c.l.b16 %v131
    %v654 = vunpack.c.h.b16 %v131
    %v655 = vunpack.c.l.b16 %v132
    %v656 = vunpack.c.h.b16 %v132
    %v657 = vunpack.c.l.b16 %v133
    %v658 = vunpack.c.h.b16 %v133
    %v659 = vunpack.c.l.b16 %v134
    %v660 = vunpack.c.h.b16 %v134
    %v661 = vunpack.c.l.b16 %v135
    %v662 = vunpack.c.h.b16 %v135
    %v663 = vunpack.c.l.b16 %v136
    %v664 = vunpack.c.l.b16 %v137
    %v665 = vunpack.c.h.b16 %v137
    %v666 = vunpack.c.l.b16 %v138
    %v667 = vunpack.c.h.b16 %v138
    %v668 = vunpack.c.l.b16 %v139
    %v669 = vunpack.c.h.b16 %v139
    %v670 = vunpack.c.l.b16 %v140
    %v671 = vunpack.c.h.b16 %v140
    %v672 = vunpack.c.l.b16 %v141
    %v673 = vunpack.c.h.b16 %v141
    %v674 = vunpack.c.l.b16 %v142
    %v675 = vunpack.c.h.b16 %v142
    %v676 = vunpack.c.l.b16 %v143
    %v677 = vunpack.c.h.b16 %v143
    %v678 = vunpack.c.l.b16 %v144
    %v679 = vunpack.c.h.b16 %v144
    %v680 = vunpack.c.l.b16 %v145
    %v681 = vunpack.c.h.b16 %v145
    %v682 = vunpack.c.l.b16 %v146
    %v683 = vpack.c.b16 %v550, %v531
    %v684 = vpack.c.b16 %v551, %v532
    %v685 = vpack.c.b16 %v552, %v533
    %v686 = vpack.c.b16 %v553, %v534
    %v687 = vpack.c.b16 %v554, %v535
    %v688 = vpack.c.b16 %v555, %v536
    %v689 = vpack.c.b16 %v556, %v537
    %v690 = vpack.c.b16 %v557, %v538
    %v691 = vpack.c.b16 %v558, %v539
    %v692 = vpack.c.b16 %v559, %v540
    %v693 = vpack.c.b16 %v560, %v541
    %v694 = vpack.c.b16 %v561, %v542
    %v695 = vpack.c.b16 %v562, %v543
    %v696 = vpack.c.b16 %v563, %v544
    %v697 = vpack.c.b16 %v564, %v545
    %v698 = vpack.c.b16 %v565, %v546
    %v699 = vpack.c.b16 %v566, %v547
    %v700 = vpack.c.b16 %v567, %v548
    %v701 = vpack.c.b16 %v568, %v549
    %v702 = vpack.c.b16 %v588, %v569
    %v703 = vpack.c.b16 %v589, %v570
    %v704 = vpack.c.b16 %v590, %v571
    %v705 = vpack.c.b16 %v591, %v572
    %v706 = vpack.c.b16 %v592, %v573
    %v707 = vpack.c.b16 %v593, %v574
    %v708 = vpack.c.b16 %v594, %v575
    %v709 = vpack.c.b16 %v595, %v576
    %v710 = vpack.c.b16 %v596, %v577
    %v711 = vpack.c.b16 %v597, %v578
    %v712 = vpack.c.b16 %v598, %v579
    %v713 = vpack.c.b16 %v599, %v580
    %v714 = vpack.c.b16 %v600, %v581
    %v715 = vpack.c.b16 %v601, %v582
    %v716 = vpack.c.b16 %v602, %v583
    %v717 = vpack.c.b16 %v603, %v584
    %v718 = vpack.c.b16 %v604, %v585
    %v719 = vpack.c.b16 %v605, %v586
    %v720 = vpack.c.b16 %v606, %v587
    %v721 = vpack.c.b16 %v626, %v607
    %v722 = vpack.c.b16 %v627, %v608
    %v723 = vpack.c.b16 %v628, %v609
    %v724 = vpack.c.b16 %v629, %v610
    %v725 = vpack.c.b16 %v630, %v611
    %v726 = vpack.c.b16 %v631, %v612
    %v727 = vpack.c.b16 %v632, %v613
    %v728 = vpack.c.b16 %v633, %v614
    %v729 = vpack.c.b16 %v634, %v615
    %v730 = vpack.c.b16 %v635, %v616
    %v731 = vpack.c.b16 %v636, %v617
    %v732 = vpack.c.b16 %v637, %v618
    %v733 = vpack.c.b16 %v638, %v619
    %v734 = vpack.c.b16 %v639, %v620
    %v735 = vpack.c.b16 %v640, %v621
    %v736 = vpack.c.b16 %v641, %v622
    %v737 = vpack.c.b16 %v642, %v623
    %v738 = vpack.c.b16 %v643, %v624
    %v739 = vpack.c.b16 %v644, %v625
    %v740 = vpack.c.b16 %v664, %v645
    %v741 = vpack.c.b16 %v665, %v646
    %v742 = vpack.c.b16 %v666, %v647
    %v743 = vpack.c.b16 %v667, %v648
    %v744 = vpack.c.b16 %v668, %v649
    %v745 = vpack.c.b16 %v669, %v650
    %v746 = vpack.c.b16 %v670, %v651
    %v747 = vpack.c.b16 %v671, %v652
    %v748 = vpack.c.b16 %v672, %v653
    %v749 = vpack.c.b16 %v673, %v654
    %v750 = vpack.c.b16 %v674, %v655
    %v751 = vpack.c.b16 %v675, %v656
    %v752 = vpack.c.b16 %v676, %v657
    %v753 = vpack.c.b16 %v677, %v658
    %v754 = vpack.c.b16 %v678, %v659
    %v755 = vpack.c.b16 %v679, %v660
    %v756 = vpack.c.b16 %v680, %v661
    %v757 = vpack.c.b16 %v681, %v662
    %v758 = vpack.c.b16 %v682, %v663
    %v1139 = vunpack.c.l.b16 %v147
    %v1140 = vunpack.c.l.b16 %v148
    %v1141 = vunpack.c.l.b16 %v149
    %v1142 = vunpack.c.l.b16 %v150
    %v1143 = vunpack.c.l.b16 %v151
    %v1144 = vunpack.c.l.b16 %v152
    %v1145 = vunpack.c.l.b16 %v153
    %v1146 = vunpack.c.l.b16 %v154
    %v1147 = vunpack.c.l.b16 %v155
    %v1148 = vunpack.c.l.b16 %v156
    %v1149 = vunpack.c.l.b16 %v157
    %v1150 = vunpack.c.l.b16 %v158
    %v1151 = vunpack.c.l.b16 %v159
    %v1152 = vunpack.c.l.b16 %v160
    %v1153 = vunpack.c.l.b16 %v161
    %v1154 = vunpack.c.l.b16 %v162
    %v1155 = vunpack.c.l.b16 %v163
    %v1156 = vunpack.c.l.b16 %v164
    %v1157 = vunpack.c.l.b16 %v165
    %v1158 = vunpack.c.l.b16 %v166
    %v1159 = vunpack.c.l.b16 %v167
    %v1160 = vunpack.c.l.b16 %v168
    %v1161 = vunpack.c.l.b16 %v169
    %v1162 = vunpack.c.l.b16 %v170
    %v1163 = vunpack.c.l.b16 %v171
    %v1164 = vunpack.c.l.b16 %v172
    %v1165 = vunpack.c.l.b16 %v173
    %v1166 = vunpack.c.l.b16 %v174
    %v1167 = vunpack.c.l.b16 %v175
    %v1168 = vunpack.c.l.b16 %v176
    %v1169 = vunpack.c.l.b16 %v177
    %v1170 = vunpack.c.l.b16 %v178
    %v1171 = vunpack.c.l.b16 %v179
    %v1172 = vunpack.c.l.b16 %v180
    %v1173 = vunpack.c.l.b16 %v181
    %v1174 = vunpack.c.l.b16 %v182
    %v1175 = vunpack.c.l.b16 %v183
    %v1176 = vunpack.c.l.b16 %v184
    %v1177 = vunpack.c.l.b16 %v185
    %v1178 = vunpack.c.l.b16 %v186
    %v1179 = vunpack.c.l.b16 %v187
    %v1180 = vunpack.c.l.b16 %v188
    %v1181 = vunpack.c.l.b16 %v189
    %v1182 = vunpack.c.l.b16 %v190
    %v1183 = vunpack.c.l.b16 %v191
    %v1184 = vunpack.c.l.b16 %v192
    %v1185 = vunpack.c.l.b16 %v193
    %v1186 = vunpack.c.l.b16 %v194
    %v1187 = vunpack.c.l.b16 %v195
    %v1188 = vunpack.c.l.b16 %v196
    %v1189 = vunpack.c.l.b16 %v197
    %v1190 = vunpack.c.l.b16 %v198
    %v1191 = vunpack.c.l.b16 %v199
    %v1192 = vunpack.c.l.b16 %v200
    %v1193 = vunpack.c.l.b16 %v201
    %v1194 = vunpack.c.l.b16 %v202
    %v1195 = vunpack.c.l.b16 %v203
    %v1196 = vunpack.c.l.b16 %v204
    %v1197 = vunpack.c.l.b16 %v205
    %v1198 = vunpack.c.l.b16 %v206
    %v1199 = vunpack.c.l.b16 %v207
    %v1200 = vunpack.c.l.b16 %v208
    %v1201 = vunpack.c.l.b16 %v209
    %v1202 = vunpack.c.l.b16 %v210
    %v1203 = vunpack.c.l.b16 %v211
    %v1204 = vunpack.c.l.b16 %v212
    %v1205 = vunpack.c.l.b16 %v213
    %v1206 = vunpack.c.l.b16 %v214
    %v1207 = vunpack.c.l.b16 %v215
    %v1208 = vunpack.c.l.b16 %v216
    %v1209 = vunpack.c.l.b16 %v217
    %v1210 = vunpack.c.l.b16 %v218
    %v1211 = vunpack.c.l.b16 %v219
    %v1212 = vunpack.c.l.b16 %v220
    %v1213 = vunpack.c.l.b16 %v221
    %v1214 = vunpack.c.l.b16 %v222
    %v1215 = vunpack.c.l.b16 %v223
    %v1216 = vunpack.c.l.b16 %v224
    %v1217 = vunpack.c.l.b16 %v225
    %v1218 = vunpack.c.l.b16 %v226
    %v1219 = vunpack.c.l.b16 %v227
    %v1220 = vunpack.c.l.b16 %v228
    %v1221 = vunpack.c.l.b16 %v229
    %v1222 = vunpack.c.l.b16 %v230
    %v1223 = vunpack.c.l.b16 %v231
    %v1224 = vunpack.c.l.b16 %v232
    %v1225 = vunpack.c.l.b16 %v233
    %v1226 = vunpack.c.l.b16 %v234
    %v1227 = vunpack.c.l.b16 %v235
    %v1228 = vunpack.c.l.b16 %v236
    %v1229 = vunpack.c.l.b16 %v237
    %v1230 = vunpack.c.l.b16 %v238
    %v1231 = vunpack.c.l.b16 %v239
    %v1232 = vunpack.c.l.b16 %v240
    %v1233 = vunpack.c.l.b16 %v241
    %v1234 = vunpack.c.l.b16 %v242
    %v1235 = vunpack.c.l.b16 %v243
    %v1236 = vunpack.c.l.b16 %v244
    %v1237 = vunpack.c.l.b16 %v245
    %v1238 = vunpack.c.l.b16 %v246
    %v1239 = vunpack.c.l.b16 %v247
    %v1240 = vunpack.c.l.b16 %v248
    %v1241 = vunpack.c.l.b16 %v249
    %v1242 = vunpack.c.l.b16 %v250
    %v1243 = vunpack.c.l.b16 %v251
    %v1244 = vunpack.c.l.b16 %v252
    %v1245 = vunpack.c.l.b16 %v253
    %v1246 = vunpack.c.l.b16 %v254
    %v1247 = vunpack.c.l.b16 %v255
    %v1248 = vunpack.c.l.b16 %v256
    %v1249 = vunpack.c.l.b16 %v257
    %v1250 = vunpack.c.l.b16 %v258
    %v1251 = vunpack.c.l.b16 %v259
    %v1252 = vunpack.c.l.b16 %v260
    %v1253 = vunpack.c.l.b16 %v261
    %v1254 = vunpack.c.l.b16 %v262
    %v1255 = vunpack.c.l.b16 %v263
    %v1256 = vunpack.c.l.b16 %v264
    %v1257 = vunpack.c.l.b16 %v265
    %v1258 = vunpack.c.l.b16 %v266
    %v1259 = vunpack.c.l.b16 %v267
    %v1260 = vunpack.c.l.b16 %v268
    %v1261 = vunpack.c.l.b16 %v269
    %v1262 = vunpack.c.l.b16 %v270
    %v1263 = vunpack.c.l.b16 %v271
    %v1264 = vunpack.c.l.b16 %v272
    %v1265 = vunpack.c.l.b16 %v273
    %v1266 = vunpack.c.l.b16 %v274
    %v1267 = vunpack.c.l.b16 %v275
    %v1268 = vunpack.c.l.b16 %v276
    %v1269 = vunpack.c.l.b16 %v277
    %v1270 = vunpack.c.l.b16 %v278
    %v1271 = vunpack.c.l.b16 %v279
    %v1272 = vunpack.c.l.b16 %v280
    %v1273 = vunpack.c.l.b16 %v281
    %v1274 = vunpack.c.l.b16 %v282
    %v1275 = vunpack.c.l.b16 %v283
    %v1276 = vunpack.c.l.b16 %v284
    %v1277 = vunpack.c.l.b16 %v285
    %v1278 = vunpack.c.l.b16 %v286
    %v1279 = vunpack.c.l.b16 %v287
    %v1280 = vunpack.c.l.b16 %v288
    %v1281 = vunpack.c.l.b16 %v289
    %v1282 = vunpack.c.l.b16 %v290
    %v1283 = vunpack.c.l.b16 %v291
    %v1284 = vunpack.c.l.b16 %v292
    %v1285 = vunpack.c.l.b16 %v293
    %v1286 = vunpack.c.l.b16 %v294
    %v1287 = vunpack.c.l.b16 %v295
    %v1288 = vunpack.c.l.b16 %v296
    %v1289 = vunpack.c.l.b16 %v297
    %v1290 = vunpack.c.l.b16 %v298
    %v1291 = vunpack.c.l.b16 %v299
    %v1292 = vunpack.c.l.b16 %v300
    %v1293 = vunpack.c.l.b16 %v301
    %v1294 = vunpack.c.l.b16 %v302
    %v1295 = vunpack.c.l.b16 %v303
    %v1296 = vunpack.c.l.b16 %v304
    %v1297 = vunpack.c.l.b16 %v305
    %v1298 = vunpack.c.l.b16 %v306
    %v1299 = vunpack.c.l.b16 %v307
    %v1300 = vunpack.c.l.b16 %v308
    %v1301 = vunpack.c.l.b16 %v309
    %v1302 = vunpack.c.l.b16 %v310
    %v1303 = vunpack.c.l.b16 %v311
    %v1304 = vunpack.c.l.b16 %v312
    %v1305 = vunpack.c.l.b16 %v313
    %v1306 = vunpack.c.l.b16 %v314
    %v1307 = vunpack.c.l.b16 %v315
    %v1308 = vunpack.c.l.b16 %v316
    %v1309 = vunpack.c.l.b16 %v317
    %v1310 = vunpack.c.l.b16 %v318
    %v1311 = vunpack.c.l.b16 %v319
    %v1312 = vunpack.c.l.b16 %v320
    %v1313 = vunpack.c.l.b16 %v321
    %v1314 = vunpack.c.l.b16 %v322
    %v1315 = vunpack.c.l.b16 %v323
    %v1316 = vunpack.c.l.b16 %v324
    %v1317 = vunpack.c.l.b16 %v325
    %v1318 = vunpack.c.l.b16 %v326
    %v1319 = vunpack.c.l.b16 %v327
    %v1320 = vunpack.c.l.b16 %v328
    %v1321 = vunpack.c.l.b16 %v329
    %v1322 = vunpack.c.l.b16 %v330
    %v1323 = vunpack.c.l.b16 %v331
    %v1324 = vunpack.c.l.b16 %v332
    %v1325 = vunpack.c.l.b16 %v333
    %v1326 = vunpack.c.l.b16 %v334
    %v1327 = vunpack.c.l.b16 %v335
    %v1328 = vunpack.c.l.b16 %v336
    %v1329 = vunpack.c.l.b16 %v337
    %v1330 = vunpack.c.l.b16 %v338
    %v1331 = vunpack.c.l.b16 %v339
    %v1332 = vunpack.c.l.b16 %v340
    %v1333 = vunpack.c.l.b16 %v341
    %v1334 = vunpack.c.l.b16 %v342
    %v1335 = vunpack.c.l.b16 %v343
    %v1336 = vunpack.c.l.b16 %v344
    %v1337 = vunpack.c.l.b16 %v345
    %v1338 = vunpack.c.l.b16 %v346
    %v1339 = vunpack.c.l.b16 %v347
    %v1340 = vunpack.c.l.b16 %v348
    %v1341 = vunpack.c.l.b16 %v349
    %v1342 = vunpack.c.l.b16 %v350
    %v1343 = vunpack.c.l.b16 %v351
    %v1344 = vunpack.c.l.b16 %v352
    %v1345 = vunpack.c.l.b16 %v353
    %v1346 = vunpack.c.l.b16 %v354
    %v1347 = vunpack.c.l.b16 %v355
    %v1348 = vunpack.c.l.b16 %v356
    %v1349 = vunpack.c.l.b16 %v357
    %v1350 = vunpack.c.l.b16 %v358
    %v1351 = vunpack.c.l.b16 %v359
    %v1352 = vunpack.c.l.b16 %v360
    %v1353 = vunpack.c.l.b16 %v361
    %v1354 = vunpack.c.l.b16 %v362
    %v1355 = vunpack.c.l.b16 %v363
    %v1356 = vunpack.c.l.b16 %v364
    %v1357 = vunpack.c.l.b16 %v365
    %v1358 = vunpack.c.l.b16 %v366
    %v1359 = vunpack.c.l.b16 %v367
    %v1360 = vunpack.c.l.b16 %v368
    %v1361 = vunpack.c.l.b16 %v369
    %v1362 = vunpack.c.l.b16 %v370
    %v1363 = vunpack.c.l.b16 %v371
    %v1364 = vunpack.c.l.b16 %v372
    %v1365 = vunpack.c.l.b16 %v373
    %v1366 = vunpack.c.l.b16 %v374
    %v1367 = vunpack.c.l.b16 %v375
    %v1368 = vunpack.c.l.b16 %v376
    %v1369 = vunpack.c.l.b16 %v377
    %v1370 = vunpack.c.l.b16 %v378
    %v1371 = vunpack.c.l.b16 %v379
    %v1372 = vunpack.c.l.b16 %v380
    %v1373 = vunpack.c.l.b16 %v381
    %v1374 = vunpack.c.l.b16 %v382
    %v1375 = vunpack.c.l.b16 %v383
    %v1376 = vunpack.c.l.b16 %v384
    %v1377 = vunpack.c.l.b16 %v385
    %v1378 = vunpack.c.l.b16 %v386
    %v1379 = vunpack.c.l.b16 %v387
    %v1380 = vunpack.c.l.b16 %v388
    %v1381 = vunpack.c.l.b16 %v389
    %v1382 = vunpack.c.l.b16 %v390
    %v1383 = vunpack.c.l.b16 %v391
    %v1384 = vunpack.c.l.b16 %v392
    %v1385 = vunpack.c.l.b16 %v393
    %v1386 = vunpack.c.l.b16 %v394
    %v1387 = vunpack.c.l.b16 %v395
    %v1388 = vunpack.c.l.b16 %v396
    %v1389 = vunpack.c.l.b16 %v397
    %v1390 = vunpack.c.l.b16 %v398
    %v1391 = vunpack.c.l.b16 %v399
    %v1392 = vunpack.c.l.b16 %v400
    %v1393 = vunpack.c.l.b16 %v401
    %v1394 = vunpack.c.l.b16 %v402
    %v1395 = vunpack.c.l.b16 %v403
    %v1396 = vunpack.c.l.b16 %v404
    %v1397 = vunpack.c.l.b16 %v405
    %v1398 = vunpack.c.l.b16 %v406
    %v1399 = vunpack.c.l.b16 %v407
    %v1400 = vunpack.c.l.b16 %v408
    %v1401 = vunpack.c.l.b16 %v409
    %v1402 = vunpack.c.l.b16 %v410
    %v1403 = vunpack.c.l.b16 %v411
    %v1404 = vunpack.c.l.b16 %v412
    %v1405 = vunpack.c.l.b16 %v413
    %v1406 = vunpack.c.l.b16 %v414
    %v1407 = vunpack.c.l.b16 %v415
    %v1408 = vunpack.c.l.b16 %v416
    %v1409 = vunpack.c.l.b16 %v417
    %v1410 = vunpack.c.l.b16 %v418
    %v1411 = vunpack.c.l.b16 %v419
    %v1412 = vunpack.c.l.b16 %v420
    %v1413 = vunpack.c.l.b16 %v421
    %v1414 = vunpack.c.l.b16 %v422
    %v1415 = vunpack.c.l.b16 %v423
    %v1416 = vunpack.c.l.b16 %v424
    %v1417 = vunpack.c.l.b16 %v425
    %v1418 = vunpack.c.l.b16 %v426
    %v1419 = vunpack.c.l.b16 %v427
    %v1420 = vunpack.c.l.b16 %v428
    %v1421 = vunpack.c.l.b16 %v429
    %v1422 = vunpack.c.l.b16 %v430
    %v1423 = vunpack.c.l.b16 %v431
    %v1424 = vunpack.c.l.b16 %v432
    %v1425 = vunpack.c.l.b16 %v433
    %v1426 = vunpack.c.l.b16 %v434
    %v1427 = vunpack.c.l.b16 %v435
    %v1428 = vunpack.c.l.b16 %v436
    %v1429 = vunpack.c.l.b16 %v437
    %v1430 = vunpack.c.l.b16 %v438
    %v1431 = vunpack.c.l.b16 %v439
    %v1432 = vunpack.c.l.b16 %v440
    %v1433 = vunpack.c.l.b16 %v441
    %v1434 = vunpack.c.l.b16 %v442
    %v1435 = vunpack.c.l.b16 %v443
    %v1436 = vunpack.c.l.b16 %v444
    %v1437 = vunpack.c.l.b16 %v445
    %v1438 = vunpack.c.l.b16 %v446
    %v1439 = vunpack.c.l.b16 %v447
    %v1440 = vunpack.c.l.b16 %v448
    %v1441 = vunpack.c.l.b16 %v449
    %v1442 = vunpack.c.l.b16 %v450
    %v1443 = vpack.c.b16 %v1140, %v1139
    %v1444 = vpack.c.b16 %v1142, %v1141
    %v1445 = vpack.c.b16 %v1144, %v1143
    %v1446 = vpack.c.b16 %v1146, %v1145
    %v1447 = vpack.c.b16 %v1148, %v1147
    %v1448 = vpack.c.b16 %v1150, %v1149
    %v1449 = vpack.c.b16 %v1152, %v1151
    %v1450 = vpack.c.b16 %v1154, %v1153
    %v1451 = vpack.c.b16 %v1156, %v1155
    %v1452 = vpack.c.b16 %v1158, %v1157
    %v1453 = vpack.c.b16 %v1160, %v1159
    %v1454 = vpack.c.b16 %v1162, %v1161
    %v1455 = vpack.c.b16 %v1164, %v1163
    %v1456 = vpack.c.b16 %v1166, %v1165
    %v1457 = vpack.c.b16 %v1168, %v1167
    %v1458 = vpack.c.b16 %v1170, %v1169
    %v1459 = vpack.c.b16 %v1172, %v1171
    %v1460 = vpack.c.b16 %v1174, %v1173
    %v1461 = vpack.c.b16 %v1176, %v1175
    %v1462 = vpack.c.b16 %v1178, %v1177
    %v1463 = vpack.c.b16 %v1180, %v1179
    %v1464 = vpack.c.b16 %v1182, %v1181
    %v1465 = vpack.c.b16 %v1184, %v1183
    %v1466 = vpack.c.b16 %v1186, %v1185
    %v1467 = vpack.c.b16 %v1188, %v1187
    %v1468 = vpack.c.b16 %v1190, %v1189
    %v1469 = vpack.c.b16 %v1192, %v1191
    %v1470 = vpack.c.b16 %v1194, %v1193
    %v1471 = vpack.c.b16 %v1196, %v1195
    %v1472 = vpack.c.b16 %v1198, %v1197
    %v1473 = vpack.c.b16 %v1200, %v1199
    %v1474 = vpack.c.b16 %v1202, %v1201
    %v1475 = vpack.c.b16 %v1204, %v1203
    %v1476 = vpack.c.b16 %v1206, %v1205
    %v1477 = vpack.c.b16 %v1208, %v1207
    %v1478 = vpack.c.b16 %v1210, %v1209
    %v1479 = vpack.c.b16 %v1212, %v1211
    %v1480 = vpack.c.b16 %v1214, %v1213
    %v1481 = vpack.c.b16 %v1216, %v1215
    %v1482 = vpack.c.b16 %v1218, %v1217
    %v1483 = vpack.c.b16 %v1220, %v1219
    %v1484 = vpack.c.b16 %v1222, %v1221
    %v1485 = vpack.c.b16 %v1224, %v1223
    %v1486 = vpack.c.b16 %v1226, %v1225
    %v1487 = vpack.c.b16 %v1228, %v1227
    %v1488 = vpack.c.b16 %v1230, %v1229
    %v1489 = vpack.c.b16 %v1232, %v1231
    %v1490 = vpack.c.b16 %v1234, %v1233
    %v1491 = vpack.c.b16 %v1236, %v1235
    %v1492 = vpack.c.b16 %v1238, %v1237
    %v1493 = vpack.c.b16 %v1240, %v1239
    %v1494 = vpack.c.b16 %v1242, %v1241
    %v1495 = vpack.c.b16 %v1244, %v1243
    %v1496 = vpack.c.b16 %v1246, %v1245
    %v1497 = vpack.c.b16 %v1248, %v1247
    %v1498 = vpack.c.b16 %v1250, %v1249
    %v1499 = vpack.c.b16 %v1252, %v1251
    %v1500 = vpack.c.b16 %v1254, %v1253
    %v1501 = vpack.c.b16 %v1256, %v1255
    %v1502 = vpack.c.b16 %v1258, %v1257
    %v1503 = vpack.c.b16 %v1260, %v1259
    %v1504 = vpack.c.b16 %v1262, %v1261
    %v1505 = vpack.c.b16 %v1264, %v1263
    %v1506 = vpack.c.b16 %v1266, %v1265
    %v1507 = vpack.c.b16 %v1268, %v1267
    %v1508 = vpack.c.b16 %v1270, %v1269
    %v1509 = vpack.c.b16 %v1272, %v1271
    %v1510 = vpack.c.b16 %v1274, %v1273
    %v1511 = vpack.c.b16 %v1276, %v1275
    %v1512 = vpack.c.b16 %v1278, %v1277
    %v1513 = vpack.c.b16 %v1280, %v1279
    %v1514 = vpack.c.b16 %v1282, %v1281
    %v1515 = vpack.c.b16 %v1284, %v1283
    %v1516 = vpack.c.b16 %v1286, %v1285
    %v1517 = vpack.c.b16 %v1288, %v1287
    %v1518 = vpack.c.b16 %v1290, %v1289
    %v1519 = vpack.c.b16 %v1292, %v1291
    %v1520 = vpack.c.b16 %v1294, %v1293
    %v1521 = vpack.c.b16 %v1296, %v1295
    %v1522 = vpack.c.b16 %v1298, %v1297
    %v1523 = vpack.c.b16 %v1300, %v1299
    %v1524 = vpack.c.b16 %v1302, %v1301
    %v1525 = vpack.c.b16 %v1304, %v1303
    %v1526 = vpack.c.b16 %v1306, %v1305
    %v1527 = vpack.c.b16 %v1308, %v1307
    %v1528 = vpack.c.b16 %v1310, %v1309
    %v1529 = vpack.c.b16 %v1312, %v1311
    %v1530 = vpack.c.b16 %v1314, %v1313
    %v1531 = vpack.c.b16 %v1316, %v1315
    %v1532 = vpack.c.b16 %v1318, %v1317
    %v1533 = vpack.c.b16 %v1320, %v1319
    %v1534 = vpack.c.b16 %v1322, %v1321
    %v1535 = vpack.c.b16 %v1324, %v1323
    %v1536 = vpack.c.b16 %v1326, %v1325
    %v1537 = vpack.c.b16 %v1328, %v1327
    %v1538 = vpack.c.b16 %v1330, %v1329
    %v1539 = vpack.c.b16 %v1332, %v1331
    %v1540 = vpack.c.b16 %v1334, %v1333
    %v1541 = vpack.c.b16 %v1336, %v1335
    %v1542 = vpack.c.b16 %v1338, %v1337
    %v1543 = vpack.c.b16 %v1340, %v1339
    %v1544 = vpack.c.b16 %v1342, %v1341
    %v1545 = vpack.c.b16 %v1344, %v1343
    %v1546 = vpack.c.b16 %v1346, %v1345
    %v1547 = vpack.c.b16 %v1348, %v1347
    %v1548 = vpack.c.b16 %v1350, %v1349
    %v1549 = vpack.c.b16 %v1352, %v1351
    %v1550 = vpack.c.b16 %v1354, %v1353
    %v1551 = vpack.c.b16 %v1356, %v1355
    %v1552 = vpack.c.b16 %v1358, %v1357
    %v1553 = vpack.c.b16 %v1360, %v1359
    %v1554 = vpack.c.b16 %v1362, %v1361
    %v1555 = vpack.c.b16 %v1364, %v1363
    %v1556 = vpack.c.b16 %v1366, %v1365
    %v1557 = vpack.c.b16 %v1368, %v1367
    %v1558 = vpack.c.b16 %v1370, %v1369
    %v1559 = vpack.c.b16 %v1372, %v1371
    %v1560 = vpack.c.b16 %v1374, %v1373
    %v1561 = vpack.c.b16 %v1376, %v1375
    %v1562 = vpack.c.b16 %v1378, %v1377
    %v1563 = vpack.c.b16 %v1380, %v1379
    %v1564 = vpack.c.b16 %v1382, %v1381
    %v1565 = vpack.c.b16 %v1384, %v1383
    %v1566 = vpack.c.b16 %v1386, %v1385
    %v1567 = vpack.c.b16 %v1388, %v1387
    %v1568 = vpack.c.b16 %v1390, %v1389
    %v1569 = vpack.c.b16 %v1392, %v1391
    %v1570 = vpack.c.b16 %v1394, %v1393
    %v1571 = vpack.c.b16 %v1396, %v1395
    %v1572 = vpack.c.b16 %v1398, %v1397
    %v1573 = vpack.c.b16 %v1400, %v1399
    %v1574 = vpack.c.b16 %v1402, %v1401
    %v1575 = vpack.c.b16 %v1404, %v1403
    %v1576 = vpack.c.b16 %v1406, %v1405
    %v1577 = vpack.c.b16 %v1408, %v1407
    %v1578 = vpack.c.b16 %v1410, %v1409
    %v1579 = vpack.c.b16 %v1412, %v1411
    %v1580 = vpack.c.b16 %v1414, %v1413
    %v1581 = vpack.c.b16 %v1416, %v1415
    %v1582 = vpack.c.b16 %v1418, %v1417
    %v1583 = vpack.c.b16 %v1420, %v1419
    %v1584 = vpack.c.b16 %v1422, %v1421
    %v1585 = vpack.c.b16 %v1424, %v1423
    %v1586 = vpack.c.b16 %v1426, %v1425
    %v1587 = vpack.c.b16 %v1428, %v1427
    %v1588 = vpack.c.b16 %v1430, %v1429
    %v1589 = vpack.c.b16 %v1432, %v1431
    %v1590 = vpack.c.b16 %v1434, %v1433
    %v1591 = vpack.c.b16 %v1436, %v1435
    %v1592 = vpack.c.b16 %v1438, %v1437
    %v1593 = vpack.c.b16 %v1440, %v1439
    %v1594 = vpack.c.b16 %v1442, %v1441
    %1747 = vmatpush.bf16.msra.mxu0 %v1450
    %1748 = vmatpush.bf16.msra.mxu0 %v1449
    %1749 = vmatpush.bf16.msra.mxu0 %v1448
    %1750 = vmatpush.bf16.msra.mxu0 %v1447
    %1751 = vmatpush.bf16.msra.mxu0 %v1446
    %1752 = vmatpush.bf16.msra.mxu0 %v1445
    %1753 = vmatpush.bf16.msra.mxu0 %v1444
    %1754 = vmatpush.bf16.msra.mxu0 %v1443
    %1755 = vmatmul.bf16.gmra.mxu0 %v683
    %v1756 = vpop.f32.mrf.mxu0
    %v1757 = vadd.f32 0.0, %v1756
    %v1758 = vpop.f32.mrf.mxu0
    %v1759 = vadd.f32 0.0, %v1758
    %1760 = vmatmul.bf16.gmra.mxu0 %v702
    %v1761 = vpop.f32.mrf.mxu0
    %v1762 = vadd.f32 0.0, %v1761
    %v1763 = vpop.f32.mrf.mxu0
    %v1764 = vadd.f32 0.0, %v1763
    %1765 = vmatmul.bf16.gmra.mxu0 %v721
    %v1766 = vpop.f32.mrf.mxu0
    %v1767 = vadd.f32 0.0, %v1766
    %v1768 = vpop.f32.mrf.mxu0
    %v1769 = vadd.f32 0.0, %v1768
    %1770 = vmatmul.bf16.gmra.mxu0 %v740
    %v1771 = vpop.f32.mrf.mxu0
    %v1772 = vadd.f32 0.0, %v1771
    %v1773 = vpop.f32.mrf.mxu0
    %v1774 = vadd.f32 0.0, %v1773
    %1775 = vdwg.mxu0
    %1776 = vmatpush.bf16.msra.mxu0 %v1458
    %1777 = vmatpush.bf16.msra.mxu0 %v1457
    %1778 = vmatpush.bf16.msra.mxu0 %v1456
    %1779 = vmatpush.bf16.msra.mxu0 %v1455
    %1780 = vmatpush.bf16.msra.mxu0 %v1454
    %1781 = vmatpush.bf16.msra.mxu0 %v1453
    %1782 = vmatpush.bf16.msra.mxu0 %v1452
    %1783 = vmatpush.bf16.msra.mxu0 %v1451
    %1784 = vmatmul.bf16.gmra.mxu0 %v684
    %v1785 = vpop.f32.mrf.mxu0
    %v1786 = vadd.f32 %v1757, %v1785
    %v1787 = vpop.f32.mrf.mxu0
    %v1788 = vadd.f32 %v1759, %v1787
    %1789 = vmatmul.bf16.gmra.mxu0 %v703
    %v1790 = vpop.f32.mrf.mxu0
    %v1791 = vadd.f32 %v1762, %v1790
    %v1792 = vpop.f32.mrf.mxu0
    %v1793 = vadd.f32 %v1764, %v1792
    %1794 = vmatmul.bf16.gmra.mxu0 %v722
    %v1795 = vpop.f32.mrf.mxu0
    %v1796 = vadd.f32 %v1767, %v1795
    %v1797 = vpop.f32.mrf.mxu0
    %v1798 = vadd.f32 %v1769, %v1797
    %1799 = vmatmul.bf16.gmra.mxu0 %v741
    %v1800 = vpop.f32.mrf.mxu0
    %v1801 = vadd.f32 %v1772, %v1800
    %v1802 = vpop.f32.mrf.mxu0
    %v1803 = vadd.f32 %v1774, %v1802
    %1804 = vdwg.mxu0
    %1805 = vmatpush.bf16.msra.mxu0 %v1466
    %1806 = vmatpush.bf16.msra.mxu0 %v1465
    %1807 = vmatpush.bf16.msra.mxu0 %v1464
    %1808 = vmatpush.bf16.msra.mxu0 %v1463
    %1809 = vmatpush.bf16.msra.mxu0 %v1462
    %1810 = vmatpush.bf16.msra.mxu0 %v1461
    %1811 = vmatpush.bf16.msra.mxu0 %v1460
    %1812 = vmatpush.bf16.msra.mxu0 %v1459
    %1813 = vmatmul.bf16.gmra.mxu0 %v685
    %v1814 = vpop.f32.mrf.mxu0
    %v1815 = vadd.f32 %v1786, %v1814
    %v1816 = vpop.f32.mrf.mxu0
    %v1817 = vadd.f32 %v1788, %v1816
    %1818 = vmatmul.bf16.gmra.mxu0 %v704
    %v1819 = vpop.f32.mrf.mxu0
    %v1820 = vadd.f32 %v1791, %v1819
    %v1821 = vpop.f32.mrf.mxu0
    %v1822 = vadd.f32 %v1793, %v1821
    %1823 = vmatmul.bf16.gmra.mxu0 %v723
    %v1824 = vpop.f32.mrf.mxu0
    %v1825 = vadd.f32 %v1796, %v1824
    %v1826 = vpop.f32.mrf.mxu0
    %v1827 = vadd.f32 %v1798, %v1826
    %1828 = vmatmul.bf16.gmra.mxu0 %v742
    %v1829 = vpop.f32.mrf.mxu0
    %v1830 = vadd.f32 %v1801, %v1829
    %v1831 = vpop.f32.mrf.mxu0
    %v1832 = vadd.f32 %v1803, %v1831
    %1833 = vdwg.mxu0
    %1834 = vmatpush.bf16.msra.mxu0 %v1474
    %1835 = vmatpush.bf16.msra.mxu0 %v1473
    %1836 = vmatpush.bf16.msra.mxu0 %v1472
    %1837 = vmatpush.bf16.msra.mxu0 %v1471
    %1838 = vmatpush.bf16.msra.mxu0 %v1470
    %1839 = vmatpush.bf16.msra.mxu0 %v1469
    %1840 = vmatpush.bf16.msra.mxu0 %v1468
    %1841 = vmatpush.bf16.msra.mxu0 %v1467
    %1842 = vmatmul.bf16.gmra.mxu0 %v686
    %v1843 = vpop.f32.mrf.mxu0
    %v1844 = vadd.f32 %v1815, %v1843
    %v1845 = vpop.f32.mrf.mxu0
    %v1846 = vadd.f32 %v1817, %v1845
    %1847 = vmatmul.bf16.gmra.mxu0 %v705
    %v1848 = vpop.f32.mrf.mxu0
    %v1849 = vadd.f32 %v1820, %v1848
    %v1850 = vpop.f32.mrf.mxu0
    %v1851 = vadd.f32 %v1822, %v1850
    %1852 = vmatmul.bf16.gmra.mxu0 %v724
    %v1853 = vpop.f32.mrf.mxu0
    %v1854 = vadd.f32 %v1825, %v1853
    %v1855 = vpop.f32.mrf.mxu0
    %v1856 = vadd.f32 %v1827, %v1855
    %1857 = vmatmul.bf16.gmra.mxu0 %v743
    %v1858 = vpop.f32.mrf.mxu0
    %v1859 = vadd.f32 %v1830, %v1858
    %v1860 = vpop.f32.mrf.mxu0
    %v1861 = vadd.f32 %v1832, %v1860
    %1862 = vdwg.mxu0
    %1863 = vmatpush.bf16.msra.mxu0 %v1482
    %1864 = vmatpush.bf16.msra.mxu0 %v1481
    %1865 = vmatpush.bf16.msra.mxu0 %v1480
    %1866 = vmatpush.bf16.msra.mxu0 %v1479
    %1867 = vmatpush.bf16.msra.mxu0 %v1478
    %1868 = vmatpush.bf16.msra.mxu0 %v1477
    %1869 = vmatpush.bf16.msra.mxu0 %v1476
    %1870 = vmatpush.bf16.msra.mxu0 %v1475
    %1871 = vmatmul.bf16.gmra.mxu0 %v687
    %v1872 = vpop.f32.mrf.mxu0
    %v1873 = vadd.f32 %v1844, %v1872
    %v1874 = vpop.f32.mrf.mxu0
    %v1875 = vadd.f32 %v1846, %v1874
    %1876 = vmatmul.bf16.gmra.mxu0 %v706
    %v1877 = vpop.f32.mrf.mxu0
    %v1878 = vadd.f32 %v1849, %v1877
    %v1879 = vpop.f32.mrf.mxu0
    %v1880 = vadd.f32 %v1851, %v1879
    %1881 = vmatmul.bf16.gmra.mxu0 %v725
    %v1882 = vpop.f32.mrf.mxu0
    %v1883 = vadd.f32 %v1854, %v1882
    %v1884 = vpop.f32.mrf.mxu0
    %v1885 = vadd.f32 %v1856, %v1884
    %1886 = vmatmul.bf16.gmra.mxu0 %v744
    %v1887 = vpop.f32.mrf.mxu0
    %v1888 = vadd.f32 %v1859, %v1887
    %v1889 = vpop.f32.mrf.mxu0
    %v1890 = vadd.f32 %v1861, %v1889
    %1891 = vdwg.mxu0
    %1892 = vmatpush.bf16.msra.mxu0 %v1490
    %1893 = vmatpush.bf16.msra.mxu0 %v1489
    %1894 = vmatpush.bf16.msra.mxu0 %v1488
    %1895 = vmatpush.bf16.msra.mxu0 %v1487
    %1896 = vmatpush.bf16.msra.mxu0 %v1486
    %1897 = vmatpush.bf16.msra.mxu0 %v1485
    %1898 = vmatpush.bf16.msra.mxu0 %v1484
    %1899 = vmatpush.bf16.msra.mxu0 %v1483
    %1900 = vmatmul.bf16.gmra.mxu0 %v688
    %v1901 = vpop.f32.mrf.mxu0
    %v1902 = vadd.f32 %v1873, %v1901
    %v1903 = vpop.f32.mrf.mxu0
    %v1904 = vadd.f32 %v1875, %v1903
    %1905 = vmatmul.bf16.gmra.mxu0 %v707
    %v1906 = vpop.f32.mrf.mxu0
    %v1907 = vadd.f32 %v1878, %v1906
    %v1908 = vpop.f32.mrf.mxu0
    %v1909 = vadd.f32 %v1880, %v1908
    %1910 = vmatmul.bf16.gmra.mxu0 %v726
    %v1911 = vpop.f32.mrf.mxu0
    %v1912 = vadd.f32 %v1883, %v1911
    %v1913 = vpop.f32.mrf.mxu0
    %v1914 = vadd.f32 %v1885, %v1913
    %1915 = vmatmul.bf16.gmra.mxu0 %v745
    %v1916 = vpop.f32.mrf.mxu0
    %v1917 = vadd.f32 %v1888, %v1916
    %v1918 = vpop.f32.mrf.mxu0
    %v1919 = vadd.f32 %v1890, %v1918
    %1920 = vdwg.mxu0
    %1921 = vmatpush.bf16.msra.mxu0 %v1498
    %1922 = vmatpush.bf16.msra.mxu0 %v1497
    %1923 = vmatpush.bf16.msra.mxu0 %v1496
    %1924 = vmatpush.bf16.msra.mxu0 %v1495
    %1925 = vmatpush.bf16.msra.mxu0 %v1494
    %1926 = vmatpush.bf16.msra.mxu0 %v1493
    %1927 = vmatpush.bf16.msra.mxu0 %v1492
    %1928 = vmatpush.bf16.msra.mxu0 %v1491
    %1929 = vmatmul.bf16.gmra.mxu0 %v689
    %v1930 = vpop.f32.mrf.mxu0
    %v1931 = vadd.f32 %v1902, %v1930
    %v1932 = vpop.f32.mrf.mxu0
    %v1933 = vadd.f32 %v1904, %v1932
    %1934 = vmatmul.bf16.gmra.mxu0 %v708
    %v1935 = vpop.f32.mrf.mxu0
    %v1936 = vadd.f32 %v1907, %v1935
    %v1937 = vpop.f32.mrf.mxu0
    %v1938 = vadd.f32 %v1909, %v1937
    %1939 = vmatmul.bf16.gmra.mxu0 %v727
    %v1940 = vpop.f32.mrf.mxu0
    %v1941 = vadd.f32 %v1912, %v1940
    %v1942 = vpop.f32.mrf.mxu0
    %v1943 = vadd.f32 %v1914, %v1942
    %1944 = vmatmul.bf16.gmra.mxu0 %v746
    %v1945 = vpop.f32.mrf.mxu0
    %v1946 = vadd.f32 %v1917, %v1945
    %v1947 = vpop.f32.mrf.mxu0
    %v1948 = vadd.f32 %v1919, %v1947
    %1949 = vdwg.mxu0
    %1950 = vmatpush.bf16.msra.mxu0 %v1506
    %1951 = vmatpush.bf16.msra.mxu0 %v1505
    %1952 = vmatpush.bf16.msra.mxu0 %v1504
    %1953 = vmatpush.bf16.msra.mxu0 %v1503
    %1954 = vmatpush.bf16.msra.mxu0 %v1502
    %1955 = vmatpush.bf16.msra.mxu0 %v1501
    %1956 = vmatpush.bf16.msra.mxu0 %v1500
    %1957 = vmatpush.bf16.msra.mxu0 %v1499
    %1958 = vmatmul.bf16.gmra.mxu0 %v690
    %v1959 = vpop.f32.mrf.mxu0
    %v1960 = vadd.f32 %v1931, %v1959
    %v1961 = vpop.f32.mrf.mxu0
    %v1962 = vadd.f32 %v1933, %v1961
    %1963 = vmatmul.bf16.gmra.mxu0 %v709
    %v1964 = vpop.f32.mrf.mxu0
    %v1965 = vadd.f32 %v1936, %v1964
    %v1966 = vpop.f32.mrf.mxu0
    %v1967 = vadd.f32 %v1938, %v1966
    %1968 = vmatmul.bf16.gmra.mxu0 %v728
    %v1969 = vpop.f32.mrf.mxu0
    %v1970 = vadd.f32 %v1941, %v1969
    %v1971 = vpop.f32.mrf.mxu0
    %v1972 = vadd.f32 %v1943, %v1971
    %1973 = vmatmul.bf16.gmra.mxu0 %v747
    %v1974 = vpop.f32.mrf.mxu0
    %v1975 = vadd.f32 %v1946, %v1974
    %v1976 = vpop.f32.mrf.mxu0
    %v1977 = vadd.f32 %v1948, %v1976
    %1978 = vdwg.mxu0
    %1979 = vmatpush.bf16.msra.mxu0 %v1514
    %1980 = vmatpush.bf16.msra.mxu0 %v1513
    %1981 = vmatpush.bf16.msra.mxu0 %v1512
    %1982 = vmatpush.bf16.msra.mxu0 %v1511
    %1983 = vmatpush.bf16.msra.mxu0 %v1510
    %1984 = vmatpush.bf16.msra.mxu0 %v1509
    %1985 = vmatpush.bf16.msra.mxu0 %v1508
    %1986 = vmatpush.bf16.msra.mxu0 %v1507
    %1987 = vmatmul.bf16.gmra.mxu0 %v691
    %v1988 = vpop.f32.mrf.mxu0
    %v1989 = vadd.f32 %v1960, %v1988
    %v1990 = vpop.f32.mrf.mxu0
    %v1991 = vadd.f32 %v1962, %v1990
    %1992 = vmatmul.bf16.gmra.mxu0 %v710
    %v1993 = vpop.f32.mrf.mxu0
    %v1994 = vadd.f32 %v1965, %v1993
    %v1995 = vpop.f32.mrf.mxu0
    %v1996 = vadd.f32 %v1967, %v1995
    %1997 = vmatmul.bf16.gmra.mxu0 %v729
    %v1998 = vpop.f32.mrf.mxu0
    %v1999 = vadd.f32 %v1970, %v1998
    %v2000 = vpop.f32.mrf.mxu0
    %v2001 = vadd.f32 %v1972, %v2000
    %2002 = vmatmul.bf16.gmra.mxu0 %v748
    %v2003 = vpop.f32.mrf.mxu0
    %v2004 = vadd.f32 %v1975, %v2003
    %v2005 = vpop.f32.mrf.mxu0
    %v2006 = vadd.f32 %v1977, %v2005
    %2007 = vdwg.mxu0
    %2008 = vmatpush.bf16.msra.mxu0 %v1522
    %2009 = vmatpush.bf16.msra.mxu0 %v1521
    %2010 = vmatpush.bf16.msra.mxu0 %v1520
    %2011 = vmatpush.bf16.msra.mxu0 %v1519
    %2012 = vmatpush.bf16.msra.mxu0 %v1518
    %2013 = vmatpush.bf16.msra.mxu0 %v1517
    %2014 = vmatpush.bf16.msra.mxu0 %v1516
    %2015 = vmatpush.bf16.msra.mxu0 %v1515
    %2016 = vmatmul.bf16.gmra.mxu0 %v692
    %v2017 = vpop.f32.mrf.mxu0
    %v2018 = vadd.f32 %v1989, %v2017
    %v2019 = vpop.f32.mrf.mxu0
    %v2020 = vadd.f32 %v1991, %v2019
    %2021 = vmatmul.bf16.gmra.mxu0 %v711
    %v2022 = vpop.f32.mrf.mxu0
    %v2023 = vadd.f32 %v1994, %v2022
    %v2024 = vpop.f32.mrf.mxu0
    %v2025 = vadd.f32 %v1996, %v2024
    %2026 = vmatmul.bf16.gmra.mxu0 %v730
    %v2027 = vpop.f32.mrf.mxu0
    %v2028 = vadd.f32 %v1999, %v2027
    %v2029 = vpop.f32.mrf.mxu0
    %v2030 = vadd.f32 %v2001, %v2029
    %2031 = vmatmul.bf16.gmra.mxu0 %v749
    %v2032 = vpop.f32.mrf.mxu0
    %v2033 = vadd.f32 %v2004, %v2032
    %v2034 = vpop.f32.mrf.mxu0
    %v2035 = vadd.f32 %v2006, %v2034
    %2036 = vdwg.mxu0
    %2037 = vmatpush.bf16.msra.mxu0 %v1530
    %2038 = vmatpush.bf16.msra.mxu0 %v1529
    %2039 = vmatpush.bf16.msra.mxu0 %v1528
    %2040 = vmatpush.bf16.msra.mxu0 %v1527
    %2041 = vmatpush.bf16.msra.mxu0 %v1526
    %2042 = vmatpush.bf16.msra.mxu0 %v1525
    %2043 = vmatpush.bf16.msra.mxu0 %v1524
    %2044 = vmatpush.bf16.msra.mxu0 %v1523
    %2045 = vmatmul.bf16.gmra.mxu0 %v693
    %v2046 = vpop.f32.mrf.mxu0
    %v2047 = vadd.f32 %v2018, %v2046
    %v2048 = vpop.f32.mrf.mxu0
    %v2049 = vadd.f32 %v2020, %v2048
    %2050 = vmatmul.bf16.gmra.mxu0 %v712
    %v2051 = vpop.f32.mrf.mxu0
    %v2052 = vadd.f32 %v2023, %v2051
    %v2053 = vpop.f32.mrf.mxu0
    %v2054 = vadd.f32 %v2025, %v2053
    %2055 = vmatmul.bf16.gmra.mxu0 %v731
    %v2056 = vpop.f32.mrf.mxu0
    %v2057 = vadd.f32 %v2028, %v2056
    %v2058 = vpop.f32.mrf.mxu0
    %v2059 = vadd.f32 %v2030, %v2058
    %2060 = vmatmul.bf16.gmra.mxu0 %v750
    %v2061 = vpop.f32.mrf.mxu0
    %v2062 = vadd.f32 %v2033, %v2061
    %v2063 = vpop.f32.mrf.mxu0
    %v2064 = vadd.f32 %v2035, %v2063
    %2065 = vdwg.mxu0
    %2066 = vmatpush.bf16.msra.mxu0 %v1538
    %2067 = vmatpush.bf16.msra.mxu0 %v1537
    %2068 = vmatpush.bf16.msra.mxu0 %v1536
    %2069 = vmatpush.bf16.msra.mxu0 %v1535
    %2070 = vmatpush.bf16.msra.mxu0 %v1534
    %2071 = vmatpush.bf16.msra.mxu0 %v1533
    %2072 = vmatpush.bf16.msra.mxu0 %v1532
    %2073 = vmatpush.bf16.msra.mxu0 %v1531
    %2074 = vmatmul.bf16.gmra.mxu0 %v694
    %v2075 = vpop.f32.mrf.mxu0
    %v2076 = vadd.f32 %v2047, %v2075
    %v2077 = vpop.f32.mrf.mxu0
    %v2078 = vadd.f32 %v2049, %v2077
    %2079 = vmatmul.bf16.gmra.mxu0 %v713
    %v2080 = vpop.f32.mrf.mxu0
    %v2081 = vadd.f32 %v2052, %v2080
    %v2082 = vpop.f32.mrf.mxu0
    %v2083 = vadd.f32 %v2054, %v2082
    %2084 = vmatmul.bf16.gmra.mxu0 %v732
    %v2085 = vpop.f32.mrf.mxu0
    %v2086 = vadd.f32 %v2057, %v2085
    %v2087 = vpop.f32.mrf.mxu0
    %v2088 = vadd.f32 %v2059, %v2087
    %2089 = vmatmul.bf16.gmra.mxu0 %v751
    %v2090 = vpop.f32.mrf.mxu0
    %v2091 = vadd.f32 %v2062, %v2090
    %v2092 = vpop.f32.mrf.mxu0
    %v2093 = vadd.f32 %v2064, %v2092
    %2094 = vdwg.mxu0
    %2095 = vmatpush.bf16.msra.mxu0 %v1546
    %2096 = vmatpush.bf16.msra.mxu0 %v1545
    %2097 = vmatpush.bf16.msra.mxu0 %v1544
    %2098 = vmatpush.bf16.msra.mxu0 %v1543
    %2099 = vmatpush.bf16.msra.mxu0 %v1542
    %2100 = vmatpush.bf16.msra.mxu0 %v1541
    %2101 = vmatpush.bf16.msra.mxu0 %v1540
    %2102 = vmatpush.bf16.msra.mxu0 %v1539
    %2103 = vmatmul.bf16.gmra.mxu0 %v695
    %v2104 = vpop.f32.mrf.mxu0
    %v2105 = vadd.f32 %v2076, %v2104
    %v2106 = vpop.f32.mrf.mxu0
    %v2107 = vadd.f32 %v2078, %v2106
    %2108 = vmatmul.bf16.gmra.mxu0 %v714
    %v2109 = vpop.f32.mrf.mxu0
    %v2110 = vadd.f32 %v2081, %v2109
    %v2111 = vpop.f32.mrf.mxu0
    %v2112 = vadd.f32 %v2083, %v2111
    %2113 = vmatmul.bf16.gmra.mxu0 %v733
    %v2114 = vpop.f32.mrf.mxu0
    %v2115 = vadd.f32 %v2086, %v2114
    %v2116 = vpop.f32.mrf.mxu0
    %v2117 = vadd.f32 %v2088, %v2116
    %2118 = vmatmul.bf16.gmra.mxu0 %v752
    %v2119 = vpop.f32.mrf.mxu0
    %v2120 = vadd.f32 %v2091, %v2119
    %v2121 = vpop.f32.mrf.mxu0
    %v2122 = vadd.f32 %v2093, %v2121
    %2123 = vdwg.mxu0
    %2124 = vmatpush.bf16.msra.mxu0 %v1554
    %2125 = vmatpush.bf16.msra.mxu0 %v1553
    %2126 = vmatpush.bf16.msra.mxu0 %v1552
    %2127 = vmatpush.bf16.msra.mxu0 %v1551
    %2128 = vmatpush.bf16.msra.mxu0 %v1550
    %2129 = vmatpush.bf16.msra.mxu0 %v1549
    %2130 = vmatpush.bf16.msra.mxu0 %v1548
    %2131 = vmatpush.bf16.msra.mxu0 %v1547
    %2132 = vmatmul.bf16.gmra.mxu0 %v696
    %v2133 = vpop.f32.mrf.mxu0
    %v2134 = vadd.f32 %v2105, %v2133
    %v2135 = vpop.f32.mrf.mxu0
    %v2136 = vadd.f32 %v2107, %v2135
    %2137 = vmatmul.bf16.gmra.mxu0 %v715
    %v2138 = vpop.f32.mrf.mxu0
    %v2139 = vadd.f32 %v2110, %v2138
    %v2140 = vpop.f32.mrf.mxu0
    %v2141 = vadd.f32 %v2112, %v2140
    %2142 = vmatmul.bf16.gmra.mxu0 %v734
    %v2143 = vpop.f32.mrf.mxu0
    %v2144 = vadd.f32 %v2115, %v2143
    %v2145 = vpop.f32.mrf.mxu0
    %v2146 = vadd.f32 %v2117, %v2145
    %2147 = vmatmul.bf16.gmra.mxu0 %v753
    %v2148 = vpop.f32.mrf.mxu0
    %v2149 = vadd.f32 %v2120, %v2148
    %v2150 = vpop.f32.mrf.mxu0
    %v2151 = vadd.f32 %v2122, %v2150
    %2152 = vdwg.mxu0
    %2153 = vmatpush.bf16.msra.mxu0 %v1562
    %2154 = vmatpush.bf16.msra.mxu0 %v1561
    %2155 = vmatpush.bf16.msra.mxu0 %v1560
    %2156 = vmatpush.bf16.msra.mxu0 %v1559
    %2157 = vmatpush.bf16.msra.mxu0 %v1558
    %2158 = vmatpush.bf16.msra.mxu0 %v1557
    %2159 = vmatpush.bf16.msra.mxu0 %v1556
    %2160 = vmatpush.bf16.msra.mxu0 %v1555
    %2161 = vmatmul.bf16.gmra.mxu0 %v697
    %v2162 = vpop.f32.mrf.mxu0
    %v2163 = vadd.f32 %v2134, %v2162
    %v2164 = vpop.f32.mrf.mxu0
    %v2165 = vadd.f32 %v2136, %v2164
    %2166 = vmatmul.bf16.gmra.mxu0 %v716
    %v2167 = vpop.f32.mrf.mxu0
    %v2168 = vadd.f32 %v2139, %v2167
    %v2169 = vpop.f32.mrf.mxu0
    %v2170 = vadd.f32 %v2141, %v2169
    %2171 = vmatmul.bf16.gmra.mxu0 %v735
    %v2172 = vpop.f32.mrf.mxu0
    %v2173 = vadd.f32 %v2144, %v2172
    %v2174 = vpop.f32.mrf.mxu0
    %v2175 = vadd.f32 %v2146, %v2174
    %2176 = vmatmul.bf16.gmra.mxu0 %v754
    %v2177 = vpop.f32.mrf.mxu0
    %v2178 = vadd.f32 %v2149, %v2177
    %v2179 = vpop.f32.mrf.mxu0
    %v2180 = vadd.f32 %v2151, %v2179
    %2181 = vdwg.mxu0
    %2182 = vmatpush.bf16.msra.mxu0 %v1570
    %2183 = vmatpush.bf16.msra.mxu0 %v1569
    %2184 = vmatpush.bf16.msra.mxu0 %v1568
    %2185 = vmatpush.bf16.msra.mxu0 %v1567
    %2186 = vmatpush.bf16.msra.mxu0 %v1566
    %2187 = vmatpush.bf16.msra.mxu0 %v1565
    %2188 = vmatpush.bf16.msra.mxu0 %v1564
    %2189 = vmatpush.bf16.msra.mxu0 %v1563
    %2190 = vmatmul.bf16.gmra.mxu0 %v698
    %v2191 = vpop.f32.mrf.mxu0
    %v2192 = vadd.f32 %v2163, %v2191
    %v2193 = vpop.f32.mrf.mxu0
    %v2194 = vadd.f32 %v2165, %v2193
    %2195 = vmatmul.bf16.gmra.mxu0 %v717
    %v2196 = vpop.f32.mrf.mxu0
    %v2197 = vadd.f32 %v2168, %v2196
    %v2198 = vpop.f32.mrf.mxu0
    %v2199 = vadd.f32 %v2170, %v2198
    %2200 = vmatmul.bf16.gmra.mxu0 %v736
    %v2201 = vpop.f32.mrf.mxu0
    %v2202 = vadd.f32 %v2173, %v2201
    %v2203 = vpop.f32.mrf.mxu0
    %v2204 = vadd.f32 %v2175, %v2203
    %2205 = vmatmul.bf16.gmra.mxu0 %v755
    %v2206 = vpop.f32.mrf.mxu0
    %v2207 = vadd.f32 %v2178, %v2206
    %v2208 = vpop.f32.mrf.mxu0
    %v2209 = vadd.f32 %v2180, %v2208
    %2210 = vdwg.mxu0
    %2211 = vmatpush.bf16.msra.mxu0 %v1578
    %2212 = vmatpush.bf16.msra.mxu0 %v1577
    %2213 = vmatpush.bf16.msra.mxu0 %v1576
    %2214 = vmatpush.bf16.msra.mxu0 %v1575
    %2215 = vmatpush.bf16.msra.mxu0 %v1574
    %2216 = vmatpush.bf16.msra.mxu0 %v1573
    %2217 = vmatpush.bf16.msra.mxu0 %v1572
    %2218 = vmatpush.bf16.msra.mxu0 %v1571
    %2219 = vmatmul.bf16.gmra.mxu0 %v699
    %v2220 = vpop.f32.mrf.mxu0
    %v2221 = vadd.f32 %v2192, %v2220
    %v2222 = vpop.f32.mrf.mxu0
    %v2223 = vadd.f32 %v2194, %v2222
    %2224 = vmatmul.bf16.gmra.mxu0 %v718
    %v2225 = vpop.f32.mrf.mxu0
    %v2226 = vadd.f32 %v2197, %v2225
    %v2227 = vpop.f32.mrf.mxu0
    %v2228 = vadd.f32 %v2199, %v2227
    %2229 = vmatmul.bf16.gmra.mxu0 %v737
    %v2230 = vpop.f32.mrf.mxu0
    %v2231 = vadd.f32 %v2202, %v2230
    %v2232 = vpop.f32.mrf.mxu0
    %v2233 = vadd.f32 %v2204, %v2232
    %2234 = vmatmul.bf16.gmra.mxu0 %v756
    %v2235 = vpop.f32.mrf.mxu0
    %v2236 = vadd.f32 %v2207, %v2235
    %v2237 = vpop.f32.mrf.mxu0
    %v2238 = vadd.f32 %v2209, %v2237
    %2239 = vdwg.mxu0
    %2240 = vmatpush.bf16.msra.mxu0 %v1586
    %2241 = vmatpush.bf16.msra.mxu0 %v1585
    %2242 = vmatpush.bf16.msra.mxu0 %v1584
    %2243 = vmatpush.bf16.msra.mxu0 %v1583
    %2244 = vmatpush.bf16.msra.mxu0 %v1582
    %2245 = vmatpush.bf16.msra.mxu0 %v1581
    %2246 = vmatpush.bf16.msra.mxu0 %v1580
    %2247 = vmatpush.bf16.msra.mxu0 %v1579
    %2248 = vmatmul.bf16.gmra.mxu0 %v700
    %v2249 = vpop.f32.mrf.mxu0
    %v2250 = vadd.f32 %v2221, %v2249
    %v2251 = vpop.f32.mrf.mxu0
    %v2252 = vadd.f32 %v2223, %v2251
    %2253 = vmatmul.bf16.gmra.mxu0 %v719
    %v2254 = vpop.f32.mrf.mxu0
    %v2255 = vadd.f32 %v2226, %v2254
    %v2256 = vpop.f32.mrf.mxu0
    %v2257 = vadd.f32 %v2228, %v2256
    %2258 = vmatmul.bf16.gmra.mxu0 %v738
    %v2259 = vpop.f32.mrf.mxu0
    %v2260 = vadd.f32 %v2231, %v2259
    %v2261 = vpop.f32.mrf.mxu0
    %v2262 = vadd.f32 %v2233, %v2261
    %2263 = vmatmul.bf16.gmra.mxu0 %v757
    %v2264 = vpop.f32.mrf.mxu0
    %v2265 = vadd.f32 %v2236, %v2264
    %v2266 = vpop.f32.mrf.mxu0
    %v2267 = vadd.f32 %v2238, %v2266
    %2268 = vdwg.mxu0
    %2269 = vmatpush.bf16.msra.mxu0 %v1594
    %2270 = vmatpush.bf16.msra.mxu0 %v1593
    %2271 = vmatpush.bf16.msra.mxu0 %v1592
    %2272 = vmatpush.bf16.msra.mxu0 %v1591
    %2273 = vmatpush.bf16.msra.mxu0 %v1590
    %2274 = vmatpush.bf16.msra.mxu0 %v1589
    %2275 = vmatpush.bf16.msra.mxu0 %v1588
    %2276 = vmatpush.bf16.msra.mxu0 %v1587
    %2277 = vmatmul.bf16.gmra.mxu0 %v701
    %v2278 = vpop.f32.mrf.mxu0
    %v2279 = vadd.f32 %v2250, %v2278
    %v2280 = vpop.f32.mrf.mxu0
    %v2281 = vadd.f32 %v2252, %v2280
    %2282 = vmatmul.bf16.gmra.mxu0 %v720
    %v2283 = vpop.f32.mrf.mxu0
    %v2284 = vadd.f32 %v2255, %v2283
    %v2285 = vpop.f32.mrf.mxu0
    %v2286 = vadd.f32 %v2257, %v2285
    %2287 = vmatmul.bf16.gmra.mxu0 %v739
    %v2288 = vpop.f32.mrf.mxu0
    %v2289 = vadd.f32 %v2260, %v2288
    %v2290 = vpop.f32.mrf.mxu0
    %v2291 = vadd.f32 %v2262, %v2290
    %2292 = vmatmul.bf16.gmra.mxu0 %v758
    %v2293 = vpop.f32.mrf.mxu0
    %v2294 = vadd.f32 %v2265, %v2293
    %v2295 = vpop.f32.mrf.mxu0
    %v2296 = vadd.f32 %v2267, %v2295
    %2297 = vdwg.mxu0
    %2298 = vst [vmem:[#allocation2] sm:$0xff] %v2279
    %2299 = vst [vmem:[#allocation2 + $0x20] sm:$0xff] %v2281
    %2300 = vst [vmem:[#allocation2 + $0x40] sm:$0xff] %v2284
    %2301 = vst [vmem:[#allocation2 + $0x60] sm:$0xff] %v2286
    %2302 = vst [vmem:[#allocation2 + $0x80] sm:$0xff] %v2289
    %2303 = vst [vmem:[#allocation2 + $0xa0] sm:$0xff] %v2291
    %2304 = vst [vmem:[#allocation2 + $0xc0] sm:$0xff] %v2294
    %2305 = vst [vmem:[#allocation2 + $0xe0] sm:$0xff] %v2296
    %v2306 = vld [vmem:[#allocation2] sm:$0xff]
    %v2307 = vadd.f32 %v2306, 0.0
    %vm2308 = vcmp.ge.f32.partialorder %v2307, 0.1
    %v2309 = vsel %vm2308, 1, 0
    %v2310 = vcvt.s32.f32 %v2309
    %v2311 = vpack.c.bf16 %v2310, %v2310
    %2312 = vst [vmem:[#allocation3] sm:$0xf] %v2311
    %v2313 = vsel %vm2308, 0.0, %v2307
    %s2314 = scalar_lea.vmem [#allocation2], 32
    %v2315 = vld [vmem:[%s2314] sm:$0xff]
    %v2316 = vmul.f32 %v2313, 0.99
    %v2317 = vadd.f32 %v2316, %v2315
    %vm2318 = vcmp.ge.f32.partialorder %v2317, 0.1
    %v2319 = vsel %vm2318, 1, 0
    %v2320 = vcvt.s32.f32 %v2319
    %v2321 = vpack.c.bf16 %v2320, %v2320
    %s2322 = scalar_lea.vmem [#allocation3], 4
    %2323 = vst [vmem:[%s2322] sm:$0xf] %v2321
    %v2324 = vsel %vm2318, 0.0, %v2317
    %s2325 = scalar_lea.vmem [#allocation2], 64
    %v2326 = vld [vmem:[%s2325] sm:$0xff]
    %v2327 = vmul.f32 %v2324, 0.99
    %v2328 = vadd.f32 %v2327, %v2326
    %vm2329 = vcmp.ge.f32.partialorder %v2328, 0.1
    %v2330 = vsel %vm2329, 1, 0
    %v2331 = vcvt.s32.f32 %v2330
    %v2332 = vpack.c.bf16 %v2331, %v2331
    %s2333 = scalar_lea.vmem [#allocation3], 8
    %2334 = vst [vmem:[%s2333] sm:$0xf] %v2332
    %v2335 = vsel %vm2329, 0.0, %v2328
    %s2336 = scalar_lea.vmem [#allocation2], 96
    %v2337 = vld [vmem:[%s2336] sm:$0xff]
    %v2338 = vmul.f32 %v2335, 0.99
    %v2339 = vadd.f32 %v2338, %v2337
    %vm2340 = vcmp.ge.f32.partialorder %v2339, 0.1
    %v2341 = vsel %vm2340, 1, 0
    %v2342 = vcvt.s32.f32 %v2341
    %v2343 = vpack.c.bf16 %v2342, %v2342
    %s2344 = scalar_lea.vmem [#allocation3], 12
    %2345 = vst [vmem:[%s2344] sm:$0xf] %v2343
    %v2346 = vsel %vm2340, 0.0, %v2339
    %s2347 = scalar_lea.vmem [#allocation2], 128
    %v2348 = vld [vmem:[%s2347] sm:$0xff]
    %v2349 = vmul.f32 %v2346, 0.99
    %v2350 = vadd.f32 %v2349, %v2348
    %vm2351 = vcmp.ge.f32.partialorder %v2350, 0.1
    %v2352 = vsel %vm2351, 1, 0
    %v2353 = vcvt.s32.f32 %v2352
    %v2354 = vpack.c.bf16 %v2353, %v2353
    %s2355 = scalar_lea.vmem [#allocation3], 16
    %2356 = vst [vmem:[%s2355] sm:$0xf] %v2354
    %v2357 = vsel %vm2351, 0.0, %v2350
    %s2358 = scalar_lea.vmem [#allocation2], 160
    %v2359 = vld [vmem:[%s2358] sm:$0xff]
    %v2360 = vmul.f32 %v2357, 0.99
    %v2361 = vadd.f32 %v2360, %v2359
    %vm2362 = vcmp.ge.f32.partialorder %v2361, 0.1
    %v2363 = vsel %vm2362, 1, 0
    %v2364 = vcvt.s32.f32 %v2363
    %v2365 = vpack.c.bf16 %v2364, %v2364
    %s2366 = scalar_lea.vmem [#allocation3], 20
    %2367 = vst [vmem:[%s2366] sm:$0xf] %v2365
    %v2368 = vsel %vm2362, 0.0, %v2361
    %s2369 = scalar_lea.vmem [#allocation2], 192
    %v2370 = vld [vmem:[%s2369] sm:$0xff]
    %v2371 = vmul.f32 %v2368, 0.99
    %v2372 = vadd.f32 %v2371, %v2370
    %vm2373 = vcmp.ge.f32.partialorder %v2372, 0.1
    %v2374 = vsel %vm2373, 1, 0
    %v2375 = vcvt.s32.f32 %v2374
    %v2376 = vpack.c.bf16 %v2375, %v2375
    %s2377 = scalar_lea.vmem [#allocation3], 24
    %2378 = vst [vmem:[%s2377] sm:$0xf] %v2376
    %v2379 = vsel %vm2373, 0.0, %v2372
    %s2380 = scalar_lea.vmem [#allocation2], 224
    %v2381 = vld [vmem:[%s2380] sm:$0xff]
    %v2382 = vmul.f32 %v2379, 0.99
    %v2383 = vadd.f32 %v2382, %v2381
    %vm2384 = vcmp.ge.f32.partialorder %v2383, 0.1
    %v2385 = vsel %vm2384, 1, 0
    %v2386 = vcvt.s32.f32 %v2385
    %v2387 = vpack.c.bf16 %v2386, %v2386
    %s2388 = scalar_lea.vmem [#allocation3], 28
    %2389 = vst [vmem:[%s2388] sm:$0xf] %v2387
    %v2390 = vld [vmem:[#allocation3] sm:$0xf]
    %v2391 = vld [vmem:[#allocation3 + $0x4] sm:$0xf]
    %v2392 = vld [vmem:[#allocation3 + $0x8] sm:$0xf]
    %v2393 = vld [vmem:[#allocation3 + $0xc] sm:$0xf]
    %v2394 = vld [vmem:[#allocation3 + $0x10] sm:$0xf]
    %v2395 = vld [vmem:[#allocation3 + $0x14] sm:$0xf]
    %v2396 = vld [vmem:[#allocation3 + $0x18] sm:$0xf]
    %v2397 = vld [vmem:[#allocation3 + $0x1c] sm:$0xf]
    %v2398 = vld [vmem:[#allocation6] sm:$0xff]
    %v2399 = vld [vmem:[#allocation6 + $0x8] sm:$0xff]
    %v2400 = vld [vmem:[#allocation6 + $0x10] sm:$0xff]
    %v2401 = vld [vmem:[#allocation6 + $0x18] sm:$0xff]
    %v2402 = vld [vmem:[#allocation6 + $0x20] sm:$0xff]
    %v2403 = vld [vmem:[#allocation6 + $0x28] sm:$0xff]
    %v2404 = vld [vmem:[#allocation6 + $0x30] sm:$0xff]
    %v2405 = vld [vmem:[#allocation6 + $0x38] sm:$0xff]
    %v2406 = vld [vmem:[#allocation6 + $0x40] sm:$0xff]
    %v2407 = vld [vmem:[#allocation6 + $0x48] sm:$0xff]
    %v2408 = vld [vmem:[#allocation6 + $0x50] sm:$0xff]
    %v2409 = vld [vmem:[#allocation6 + $0x58] sm:$0xff]
    %v2410 = vld [vmem:[#allocation6 + $0x60] sm:$0xff]
    %v2411 = vld [vmem:[#allocation6 + $0x68] sm:$0xff]
    %v2412 = vld [vmem:[#allocation6 + $0x70] sm:$0xff]
    %v2413 = vld [vmem:[#allocation6 + $0x78] sm:$0xff]
    %v2414 = vld [vmem:[#allocation6 + $0x80] sm:$0xff]
    %v2415 = vld [vmem:[#allocation6 + $0x88] sm:$0xff]
    %v2416 = vld [vmem:[#allocation6 + $0x90] sm:$0xff]
    %v2417 = vld [vmem:[#allocation6 + $0x98] sm:$0xff]
    %v2418 = vld [vmem:[#allocation6 + $0xa0] sm:$0xff]
    %v2419 = vld [vmem:[#allocation6 + $0xa8] sm:$0xff]
    %v2420 = vld [vmem:[#allocation6 + $0xb0] sm:$0xff]
    %v2421 = vld [vmem:[#allocation6 + $0xb8] sm:$0xff]
    %v2422 = vld [vmem:[#allocation6 + $0xc0] sm:$0xff]
    %v2423 = vld [vmem:[#allocation6 + $0xc8] sm:$0xff]
    %v2424 = vld [vmem:[#allocation6 + $0xd0] sm:$0xff]
    %v2425 = vld [vmem:[#allocation6 + $0xd8] sm:$0xff]
    %v2426 = vld [vmem:[#allocation6 + $0xe0] sm:$0xff]
    %v2427 = vld [vmem:[#allocation6 + $0xe8] sm:$0xff]
    %v2428 = vld [vmem:[#allocation6 + $0xf0] sm:$0xff]
    %v2429 = vld [vmem:[#allocation6 + $0xf8] sm:$0xff]
    %v2438 = vunpack.c.l.b16 %v2390
    %v2439 = vunpack.c.l.b16 %v2391
    %v2440 = vunpack.c.l.b16 %v2392
    %v2441 = vunpack.c.l.b16 %v2393
    %v2442 = vunpack.c.l.b16 %v2394
    %v2443 = vunpack.c.l.b16 %v2395
    %v2444 = vunpack.c.l.b16 %v2396
    %v2445 = vunpack.c.l.b16 %v2397
    %v2446 = vpack.c.b16 %v2439, %v2438
    %v2447 = vpack.c.b16 %v2441, %v2440
    %v2448 = vpack.c.b16 %v2443, %v2442
    %v2449 = vpack.c.b16 %v2445, %v2444
    %v2486 = vunpack.c.l.b16 %v2398
    %v2487 = vunpack.c.h.b16 %v2398
    %v2488 = vunpack.c.l.b16 %v2399
    %v2489 = vunpack.c.h.b16 %v2399
    %v2490 = vunpack.c.l.b16 %v2400
    %v2491 = vunpack.c.h.b16 %v2400
    %v2492 = vunpack.c.l.b16 %v2401
    %v2493 = vunpack.c.h.b16 %v2401
    %v2494 = vunpack.c.l.b16 %v2402
    %v2495 = vunpack.c.h.b16 %v2402
    %v2496 = vunpack.c.l.b16 %v2403
    %v2497 = vunpack.c.h.b16 %v2403
    %v2498 = vunpack.c.l.b16 %v2404
    %v2499 = vunpack.c.h.b16 %v2404
    %v2500 = vunpack.c.l.b16 %v2405
    %v2501 = vunpack.c.h.b16 %v2405
    %v2502 = vunpack.c.l.b16 %v2406
    %v2503 = vunpack.c.h.b16 %v2406
    %v2504 = vunpack.c.l.b16 %v2407
    %v2505 = vunpack.c.h.b16 %v2407
    %v2506 = vunpack.c.l.b16 %v2408
    %v2507 = vunpack.c.h.b16 %v2408
    %v2508 = vunpack.c.l.b16 %v2409
    %v2509 = vunpack.c.h.b16 %v2409
    %v2510 = vunpack.c.l.b16 %v2410
    %v2511 = vunpack.c.h.b16 %v2410
    %v2512 = vunpack.c.l.b16 %v2411
    %v2513 = vunpack.c.h.b16 %v2411
    %v2514 = vunpack.c.l.b16 %v2412
    %v2515 = vunpack.c.h.b16 %v2412
    %v2516 = vunpack.c.l.b16 %v2413
    %v2517 = vunpack.c.h.b16 %v2413
    %v2518 = vunpack.c.l.b16 %v2414
    %v2519 = vunpack.c.h.b16 %v2414
    %v2520 = vunpack.c.l.b16 %v2415
    %v2521 = vunpack.c.h.b16 %v2415
    %v2522 = vunpack.c.l.b16 %v2416
    %v2523 = vunpack.c.h.b16 %v2416
    %v2524 = vunpack.c.l.b16 %v2417
    %v2525 = vunpack.c.h.b16 %v2417
    %v2526 = vunpack.c.l.b16 %v2418
    %v2527 = vunpack.c.h.b16 %v2418
    %v2528 = vunpack.c.l.b16 %v2419
    %v2529 = vunpack.c.h.b16 %v2419
    %v2530 = vunpack.c.l.b16 %v2420
    %v2531 = vunpack.c.h.b16 %v2420
    %v2532 = vunpack.c.l.b16 %v2421
    %v2533 = vunpack.c.h.b16 %v2421
    %v2534 = vunpack.c.l.b16 %v2422
    %v2535 = vunpack.c.h.b16 %v2422
    %v2536 = vunpack.c.l.b16 %v2423
    %v2537 = vunpack.c.h.b16 %v2423
    %v2538 = vunpack.c.l.b16 %v2424
    %v2539 = vunpack.c.h.b16 %v2424
    %v2540 = vunpack.c.l.b16 %v2425
    %v2541 = vunpack.c.h.b16 %v2425
    %v2542 = vunpack.c.l.b16 %v2426
    %v2543 = vunpack.c.h.b16 %v2426
    %v2544 = vunpack.c.l.b16 %v2427
    %v2545 = vunpack.c.h.b16 %v2427
    %v2546 = vunpack.c.l.b16 %v2428
    %v2547 = vunpack.c.h.b16 %v2428
    %v2548 = vunpack.c.l.b16 %v2429
    %v2549 = vunpack.c.h.b16 %v2429
    %v2550 = vpack.c.b16 %v2490, %v2486
    %v2551 = vpack.c.b16 %v2491, %v2487
    %v2552 = vpack.c.b16 %v2492, %v2488
    %v2553 = vpack.c.b16 %v2493, %v2489
    %v2554 = vpack.c.b16 %v2498, %v2494
    %v2555 = vpack.c.b16 %v2499, %v2495
    %v2556 = vpack.c.b16 %v2500, %v2496
    %v2557 = vpack.c.b16 %v2501, %v2497
    %v2558 = vpack.c.b16 %v2506, %v2502
    %v2559 = vpack.c.b16 %v2507, %v2503
    %v2560 = vpack.c.b16 %v2508, %v2504
    %v2561 = vpack.c.b16 %v2509, %v2505
    %v2562 = vpack.c.b16 %v2514, %v2510
    %v2563 = vpack.c.b16 %v2515, %v2511
    %v2564 = vpack.c.b16 %v2516, %v2512
    %v2565 = vpack.c.b16 %v2517, %v2513
    %v2566 = vpack.c.b16 %v2522, %v2518
    %v2567 = vpack.c.b16 %v2523, %v2519
    %v2568 = vpack.c.b16 %v2524, %v2520
    %v2569 = vpack.c.b16 %v2525, %v2521
    %v2570 = vpack.c.b16 %v2530, %v2526
    %v2571 = vpack.c.b16 %v2531, %v2527
    %v2572 = vpack.c.b16 %v2532, %v2528
    %v2573 = vpack.c.b16 %v2533, %v2529
    %v2574 = vpack.c.b16 %v2538, %v2534
    %v2575 = vpack.c.b16 %v2539, %v2535
    %v2576 = vpack.c.b16 %v2540, %v2536
    %v2577 = vpack.c.b16 %v2541, %v2537
    %v2578 = vpack.c.b16 %v2546, %v2542
    %v2579 = vpack.c.b16 %v2547, %v2543
    %v2580 = vpack.c.b16 %v2548, %v2544
    %v2581 = vpack.c.b16 %v2549, %v2545
    %2614 = vmatpush.bf16.msra.mxu0 %v2578
    %2615 = vmatpush.bf16.msra.mxu0 %v2574
    %2616 = vmatpush.bf16.msra.mxu0 %v2570
    %2617 = vmatpush.bf16.msra.mxu0 %v2566
    %2618 = vmatpush.bf16.msra.mxu0 %v2562
    %2619 = vmatpush.bf16.msra.mxu0 %v2558
    %2620 = vmatpush.bf16.msra.mxu0 %v2554
    %2621 = vmatpush.bf16.msra.mxu0 %v2550
    %2622 = vmatmul.bf16.gmra.mxu0 %v2446
    %v2623 = vpop.f32.mrf.mxu0
    %v2624 = vadd.f32 0.0, %v2623
    %v2625 = vpop.f32.mrf.mxu0
    %v2626 = vadd.f32 0.0, %v2625
    %2627 = vmatmul.bf16.gmra.mxu0 %v2447
    %v2628 = vpop.f32.mrf.mxu0
    %v2629 = vadd.f32 0.0, %v2628
    %v2630 = vpop.f32.mrf.mxu0
    %v2631 = vadd.f32 0.0, %v2630
    %2632 = vmatmul.bf16.gmra.mxu0 %v2448
    %v2633 = vpop.f32.mrf.mxu0
    %v2634 = vadd.f32 0.0, %v2633
    %v2635 = vpop.f32.mrf.mxu0
    %v2636 = vadd.f32 0.0, %v2635
    %2637 = vmatmul.bf16.gmra.mxu0 %v2449
    %v2638 = vpop.f32.mrf.mxu0
    %v2639 = vadd.f32 0.0, %v2638
    %v2640 = vpop.f32.mrf.mxu0
    %v2641 = vadd.f32 0.0, %v2640
    %2642 = vdwg.mxu0
    %2643 = vmatpush.bf16.msra.mxu0 %v2579
    %2644 = vmatpush.bf16.msra.mxu0 %v2575
    %2645 = vmatpush.bf16.msra.mxu0 %v2571
    %2646 = vmatpush.bf16.msra.mxu0 %v2567
    %2647 = vmatpush.bf16.msra.mxu0 %v2563
    %2648 = vmatpush.bf16.msra.mxu0 %v2559
    %2649 = vmatpush.bf16.msra.mxu0 %v2555
    %2650 = vmatpush.bf16.msra.mxu0 %v2551
    %2651 = vmatmul.bf16.gmra.mxu0 %v2446
    %v2652 = vpop.f32.mrf.mxu0
    %v2653 = vadd.f32 0.0, %v2652
    %v2654 = vpop.f32.mrf.mxu0
    %v2655 = vadd.f32 0.0, %v2654
    %2656 = vmatmul.bf16.gmra.mxu0 %v2447
    %v2657 = vpop.f32.mrf.mxu0
    %v2658 = vadd.f32 0.0, %v2657
    %v2659 = vpop.f32.mrf.mxu0
    %v2660 = vadd.f32 0.0, %v2659
    %2661 = vmatmul.bf16.gmra.mxu0 %v2448
    %v2662 = vpop.f32.mrf.mxu0
    %v2663 = vadd.f32 0.0, %v2662
    %v2664 = vpop.f32.mrf.mxu0
    %v2665 = vadd.f32 0.0, %v2664
    %2666 = vmatmul.bf16.gmra.mxu0 %v2449
    %v2667 = vpop.f32.mrf.mxu0
    %v2668 = vadd.f32 0.0, %v2667
    %v2669 = vpop.f32.mrf.mxu0
    %v2670 = vadd.f32 0.0, %v2669
    %2671 = vdwg.mxu0
    %2672 = vmatpush.bf16.msra.mxu0 %v2580
    %2673 = vmatpush.bf16.msra.mxu0 %v2576
    %2674 = vmatpush.bf16.msra.mxu0 %v2572
    %2675 = vmatpush.bf16.msra.mxu0 %v2568
    %2676 = vmatpush.bf16.msra.mxu0 %v2564
    %2677 = vmatpush.bf16.msra.mxu0 %v2560
    %2678 = vmatpush.bf16.msra.mxu0 %v2556
    %2679 = vmatpush.bf16.msra.mxu0 %v2552
    %2680 = vmatmul.bf16.gmra.mxu0 %v2446
    %v2681 = vpop.f32.mrf.mxu0
    %v2682 = vadd.f32 0.0, %v2681
    %v2683 = vpop.f32.mrf.mxu0
    %v2684 = vadd.f32 0.0, %v2683
    %2685 = vmatmul.bf16.gmra.mxu0 %v2447
    %v2686 = vpop.f32.mrf.mxu0
    %v2687 = vadd.f32 0.0, %v2686
    %v2688 = vpop.f32.mrf.mxu0
    %v2689 = vadd.f32 0.0, %v2688
    %2690 = vmatmul.bf16.gmra.mxu0 %v2448
    %v2691 = vpop.f32.mrf.mxu0
    %v2692 = vadd.f32 0.0, %v2691
    %v2693 = vpop.f32.mrf.mxu0
    %v2694 = vadd.f32 0.0, %v2693
    %2695 = vmatmul.bf16.gmra.mxu0 %v2449
    %v2696 = vpop.f32.mrf.mxu0
    %v2697 = vadd.f32 0.0, %v2696
    %v2698 = vpop.f32.mrf.mxu0
    %v2699 = vadd.f32 0.0, %v2698
    %2700 = vdwg.mxu0
    %2701 = vmatpush.bf16.msra.mxu0 %v2581
    %2702 = vmatpush.bf16.msra.mxu0 %v2577
    %2703 = vmatpush.bf16.msra.mxu0 %v2573
    %2704 = vmatpush.bf16.msra.mxu0 %v2569
    %2705 = vmatpush.bf16.msra.mxu0 %v2565
    %2706 = vmatpush.bf16.msra.mxu0 %v2561
    %2707 = vmatpush.bf16.msra.mxu0 %v2557
    %2708 = vmatpush.bf16.msra.mxu0 %v2553
    %2709 = vmatmul.bf16.gmra.mxu0 %v2446
    %v2710 = vpop.f32.mrf.mxu0
    %v2711 = vadd.f32 0.0, %v2710
    %v2712 = vpop.f32.mrf.mxu0
    %v2713 = vadd.f32 0.0, %v2712
    %2714 = vmatmul.bf16.gmra.mxu0 %v2447
    %v2715 = vpop.f32.mrf.mxu0
    %v2716 = vadd.f32 0.0, %v2715
    %v2717 = vpop.f32.mrf.mxu0
    %v2718 = vadd.f32 0.0, %v2717
    %2719 = vmatmul.bf16.gmra.mxu0 %v2448
    %v2720 = vpop.f32.mrf.mxu0
    %v2721 = vadd.f32 0.0, %v2720
    %v2722 = vpop.f32.mrf.mxu0
    %v2723 = vadd.f32 0.0, %v2722
    %2724 = vmatmul.bf16.gmra.mxu0 %v2449
    %v2725 = vpop.f32.mrf.mxu0
    %v2726 = vadd.f32 0.0, %v2725
    %v2727 = vpop.f32.mrf.mxu0
    %v2728 = vadd.f32 0.0, %v2727
    %2729 = vdwg.mxu0
    %2730 = vst [vmem:[#allocation2] sm:$0xff] %v2624
    %2731 = vst [vmem:[#allocation2 + $0x8] sm:$0xff] %v2653
    %2732 = vst [vmem:[#allocation2 + $0x10] sm:$0xff] %v2682
    %2733 = vst [vmem:[#allocation2 + $0x18] sm:$0xff] %v2711
    %2734 = vst [vmem:[#allocation2 + $0x20] sm:$0xff] %v2626
    %2735 = vst [vmem:[#allocation2 + $0x28] sm:$0xff] %v2655
    %2736 = vst [vmem:[#allocation2 + $0x30] sm:$0xff] %v2684
    %2737 = vst [vmem:[#allocation2 + $0x38] sm:$0xff] %v2713
    %2738 = vst [vmem:[#allocation2 + $0x40] sm:$0xff] %v2629
    %2739 = vst [vmem:[#allocation2 + $0x48] sm:$0xff] %v2658
    %2740 = vst [vmem:[#allocation2 + $0x50] sm:$0xff] %v2687
    %2741 = vst [vmem:[#allocation2 + $0x58] sm:$0xff] %v2716
    %2742 = vst [vmem:[#allocation2 + $0x60] sm:$0xff] %v2631
    %2743 = vst [vmem:[#allocation2 + $0x68] sm:$0xff] %v2660
    %2744 = vst [vmem:[#allocation2 + $0x70] sm:$0xff] %v2689
    %2745 = vst [vmem:[#allocation2 + $0x78] sm:$0xff] %v2718
    %2746 = vst [vmem:[#allocation2 + $0x80] sm:$0xff] %v2634
    %2747 = vst [vmem:[#allocation2 + $0x88] sm:$0xff] %v2663
    %2748 = vst [vmem:[#allocation2 + $0x90] sm:$0xff] %v2692
    %2749 = vst [vmem:[#allocation2 + $0x98] sm:$0xff] %v2721
    %2750 = vst [vmem:[#allocation2 + $0xa0] sm:$0xff] %v2636
    %2751 = vst [vmem:[#allocation2 + $0xa8] sm:$0xff] %v2665
    %2752 = vst [vmem:[#allocation2 + $0xb0] sm:$0xff] %v2694
    %2753 = vst [vmem:[#allocation2 + $0xb8] sm:$0xff] %v2723
    %2754 = vst [vmem:[#allocation2 + $0xc0] sm:$0xff] %v2639
    %2755 = vst [vmem:[#allocation2 + $0xc8] sm:$0xff] %v2668
    %2756 = vst [vmem:[#allocation2 + $0xd0] sm:$0xff] %v2697
    %2757 = vst [vmem:[#allocation2 + $0xd8] sm:$0xff] %v2726
    %2758 = vst [vmem:[#allocation2 + $0xe0] sm:$0xff] %v2641
    %2759 = vst [vmem:[#allocation2 + $0xe8] sm:$0xff] %v2670
    %2760 = vst [vmem:[#allocation2 + $0xf0] sm:$0xff] %v2699
    %2761 = vst [vmem:[#allocation2 + $0xf8] sm:$0xff] %v2728
    %v2762 = vld [vmem:[#allocation2] sm:$0xff]
    %v2763 = vld [vmem:[#allocation2 + $0x8] sm:$0xff]
    %v2764 = vld [vmem:[#allocation2 + $0x10] sm:$0xff]
    %v2765 = vld [vmem:[#allocation2 + $0x18] sm:$0xff]
    %v2766 = vadd.f32 %v2762, 0.0
    %v2767 = vadd.f32 %v2763, 0.0
    %v2768 = vadd.f32 %v2764, 0.0
    %v2769 = vadd.f32 %v2765, 0.0
    %vm2770 = vcmp.ge.f32.partialorder %v2766, 0.1
    %vm2771 = vcmp.ge.f32.partialorder %v2767, 0.1
    %vm2772 = vcmp.ge.f32.partialorder %v2768, 0.1
    %vm2773 = vcmp.ge.f32.partialorder %v2769, 0.1
    %v2774 = vsel %vm2770, 1, 0
    %v2775 = vsel %vm2771, 1, 0
    %v2776 = vsel %vm2772, 1, 0
    %v2777 = vsel %vm2773, 1, 0
    %v2778 = vcvt.s32.f32 %v2774
    %v2779 = vcvt.s32.f32 %v2775
    %v2780 = vcvt.s32.f32 %v2776
    %v2781 = vcvt.s32.f32 %v2777
    %v2782 = vpack.c.bf16 %v2779, %v2778
    %v2783 = vpack.c.bf16 %v2781, %v2780
    %2784 = vst [vmem:[#allocation4] sm:$0xff] %v2782
    %2785 = vst [vmem:[#allocation4 + $0x8] sm:$0xff] %v2783
    %v2786 = vsel %vm2770, 0.0, %v2766
    %v2787 = vsel %vm2771, 0.0, %v2767
    %v2788 = vsel %vm2772, 0.0, %v2768
    %v2789 = vsel %vm2773, 0.0, %v2769
    %v2790 = vld [vmem:[%s2314] sm:$0xff]
    %v2791 = vld [vmem:[%s2314 + $0x8] sm:$0xff]
    %v2792 = vld [vmem:[%s2314 + $0x10] sm:$0xff]
    %v2793 = vld [vmem:[%s2314 + $0x18] sm:$0xff]
    %v2794 = vmul.f32 %v2786, 0.99
    %v2795 = vmul.f32 %v2787, 0.99
    %v2796 = vmul.f32 %v2788, 0.99
    %v2797 = vmul.f32 %v2789, 0.99
    %v2798 = vadd.f32 %v2794, %v2790
    %v2799 = vadd.f32 %v2795, %v2791
    %v2800 = vadd.f32 %v2796, %v2792
    %v2801 = vadd.f32 %v2797, %v2793
    %vm2802 = vcmp.ge.f32.partialorder %v2798, 0.1
    %vm2803 = vcmp.ge.f32.partialorder %v2799, 0.1
    %vm2804 = vcmp.ge.f32.partialorder %v2800, 0.1
    %vm2805 = vcmp.ge.f32.partialorder %v2801, 0.1
    %v2806 = vsel %vm2802, 1, 0
    %v2807 = vsel %vm2803, 1, 0
    %v2808 = vsel %vm2804, 1, 0
    %v2809 = vsel %vm2805, 1, 0
    %v2810 = vcvt.s32.f32 %v2806
    %v2811 = vcvt.s32.f32 %v2807
    %v2812 = vcvt.s32.f32 %v2808
    %v2813 = vcvt.s32.f32 %v2809
    %v2814 = vpack.c.bf16 %v2811, %v2810
    %v2815 = vpack.c.bf16 %v2813, %v2812
    %s2816 = scalar_lea.vmem [#allocation4], 16
    %2817 = vst [vmem:[%s2816] sm:$0xff] %v2814
    %2818 = vst [vmem:[%s2816 + $0x8] sm:$0xff] %v2815
    %v2819 = vsel %vm2802, 0.0, %v2798
    %v2820 = vsel %vm2803, 0.0, %v2799
    %v2821 = vsel %vm2804, 0.0, %v2800
    %v2822 = vsel %vm2805, 0.0, %v2801
    %v2823 = vld [vmem:[%s2325] sm:$0xff]
    %v2824 = vld [vmem:[%s2325 + $0x8] sm:$0xff]
    %v2825 = vld [vmem:[%s2325 + $0x10] sm:$0xff]
    %v2826 = vld [vmem:[%s2325 + $0x18] sm:$0xff]
    %v2827 = vmul.f32 %v2819, 0.99
    %v2828 = vmul.f32 %v2820, 0.99
    %v2829 = vmul.f32 %v2821, 0.99
    %v2830 = vmul.f32 %v2822, 0.99
    %v2831 = vadd.f32 %v2827, %v2823
    %v2832 = vadd.f32 %v2828, %v2824
    %v2833 = vadd.f32 %v2829, %v2825
    %v2834 = vadd.f32 %v2830, %v2826
    %vm2835 = vcmp.ge.f32.partialorder %v2831, 0.1
    %vm2836 = vcmp.ge.f32.partialorder %v2832, 0.1
    %vm2837 = vcmp.ge.f32.partialorder %v2833, 0.1
    %vm2838 = vcmp.ge.f32.partialorder %v2834, 0.1
    %v2839 = vsel %vm2835, 1, 0
    %v2840 = vsel %vm2836, 1, 0
    %v2841 = vsel %vm2837, 1, 0
    %v2842 = vsel %vm2838, 1, 0
    %v2843 = vcvt.s32.f32 %v2839
    %v2844 = vcvt.s32.f32 %v2840
    %v2845 = vcvt.s32.f32 %v2841
    %v2846 = vcvt.s32.f32 %v2842
    %v2847 = vpack.c.bf16 %v2844, %v2843
    %v2848 = vpack.c.bf16 %v2846, %v2845
    %s2849 = scalar_lea.vmem [#allocation4], 32
    %2850 = vst [vmem:[%s2849] sm:$0xff] %v2847
    %2851 = vst [vmem:[%s2849 + $0x8] sm:$0xff] %v2848
    %v2852 = vsel %vm2835, 0.0, %v2831
    %v2853 = vsel %vm2836, 0.0, %v2832
    %v2854 = vsel %vm2837, 0.0, %v2833
    %v2855 = vsel %vm2838, 0.0, %v2834
    %v2856 = vld [vmem:[%s2336] sm:$0xff]
    %v2857 = vld [vmem:[%s2336 + $0x8] sm:$0xff]
    %v2858 = vld [vmem:[%s2336 + $0x10] sm:$0xff]
    %v2859 = vld [vmem:[%s2336 + $0x18] sm:$0xff]
    %v2860 = vmul.f32 %v2852, 0.99
    %v2861 = vmul.f32 %v2853, 0.99
    %v2862 = vmul.f32 %v2854, 0.99
    %v2863 = vmul.f32 %v2855, 0.99
    %v2864 = vadd.f32 %v2860, %v2856
    %v2865 = vadd.f32 %v2861, %v2857
    %v2866 = vadd.f32 %v2862, %v2858
    %v2867 = vadd.f32 %v2863, %v2859
    %vm2868 = vcmp.ge.f32.partialorder %v2864, 0.1
    %vm2869 = vcmp.ge.f32.partialorder %v2865, 0.1
    %vm2870 = vcmp.ge.f32.partialorder %v2866, 0.1
    %vm2871 = vcmp.ge.f32.partialorder %v2867, 0.1
    %v2872 = vsel %vm2868, 1, 0
    %v2873 = vsel %vm2869, 1, 0
    %v2874 = vsel %vm2870, 1, 0
    %v2875 = vsel %vm2871, 1, 0
    %v2876 = vcvt.s32.f32 %v2872
    %v2877 = vcvt.s32.f32 %v2873
    %v2878 = vcvt.s32.f32 %v2874
    %v2879 = vcvt.s32.f32 %v2875
    %v2880 = vpack.c.bf16 %v2877, %v2876
    %v2881 = vpack.c.bf16 %v2879, %v2878
    %s2882 = scalar_lea.vmem [#allocation4], 48
    %2883 = vst [vmem:[%s2882] sm:$0xff] %v2880
    %2884 = vst [vmem:[%s2882 + $0x8] sm:$0xff] %v2881
    %v2885 = vsel %vm2868, 0.0, %v2864
    %v2886 = vsel %vm2869, 0.0, %v2865
    %v2887 = vsel %vm2870, 0.0, %v2866
    %v2888 = vsel %vm2871, 0.0, %v2867
    %v2889 = vld [vmem:[%s2347] sm:$0xff]
    %v2890 = vld [vmem:[%s2347 + $0x8] sm:$0xff]
    %v2891 = vld [vmem:[%s2347 + $0x10] sm:$0xff]
    %v2892 = vld [vmem:[%s2347 + $0x18] sm:$0xff]
    %v2893 = vmul.f32 %v2885, 0.99
    %v2894 = vmul.f32 %v2886, 0.99
    %v2895 = vmul.f32 %v2887, 0.99
    %v2896 = vmul.f32 %v2888, 0.99
    %v2897 = vadd.f32 %v2893, %v2889
    %v2898 = vadd.f32 %v2894, %v2890
    %v2899 = vadd.f32 %v2895, %v2891
    %v2900 = vadd.f32 %v2896, %v2892
    %vm2901 = vcmp.ge.f32.partialorder %v2897, 0.1
    %vm2902 = vcmp.ge.f32.partialorder %v2898, 0.1
    %vm2903 = vcmp.ge.f32.partialorder %v2899, 0.1
    %vm2904 = vcmp.ge.f32.partialorder %v2900, 0.1
    %v2905 = vsel %vm2901, 1, 0
    %v2906 = vsel %vm2902, 1, 0
    %v2907 = vsel %vm2903, 1, 0
    %v2908 = vsel %vm2904, 1, 0
    %v2909 = vcvt.s32.f32 %v2905
    %v2910 = vcvt.s32.f32 %v2906
    %v2911 = vcvt.s32.f32 %v2907
    %v2912 = vcvt.s32.f32 %v2908
    %v2913 = vpack.c.bf16 %v2910, %v2909
    %v2914 = vpack.c.bf16 %v2912, %v2911
    %s2915 = scalar_lea.vmem [#allocation4], 64
    %2916 = vst [vmem:[%s2915] sm:$0xff] %v2913
    %2917 = vst [vmem:[%s2915 + $0x8] sm:$0xff] %v2914
    %v2918 = vsel %vm2901, 0.0, %v2897
    %v2919 = vsel %vm2902, 0.0, %v2898
    %v2920 = vsel %vm2903, 0.0, %v2899
    %v2921 = vsel %vm2904, 0.0, %v2900
    %v2922 = vld [vmem:[%s2358] sm:$0xff]
    %v2923 = vld [vmem:[%s2358 + $0x8] sm:$0xff]
    %v2924 = vld [vmem:[%s2358 + $0x10] sm:$0xff]
    %v2925 = vld [vmem:[%s2358 + $0x18] sm:$0xff]
    %v2926 = vmul.f32 %v2918, 0.99
    %v2927 = vmul.f32 %v2919, 0.99
    %v2928 = vmul.f32 %v2920, 0.99
    %v2929 = vmul.f32 %v2921, 0.99
    %v2930 = vadd.f32 %v2926, %v2922
    %v2931 = vadd.f32 %v2927, %v2923
    %v2932 = vadd.f32 %v2928, %v2924
    %v2933 = vadd.f32 %v2929, %v2925
    %vm2934 = vcmp.ge.f32.partialorder %v2930, 0.1
    %vm2935 = vcmp.ge.f32.partialorder %v2931, 0.1
    %vm2936 = vcmp.ge.f32.partialorder %v2932, 0.1
    %vm2937 = vcmp.ge.f32.partialorder %v2933, 0.1
    %v2938 = vsel %vm2934, 1, 0
    %v2939 = vsel %vm2935, 1, 0
    %v2940 = vsel %vm2936, 1, 0
    %v2941 = vsel %vm2937, 1, 0
    %v2942 = vcvt.s32.f32 %v2938
    %v2943 = vcvt.s32.f32 %v2939
    %v2944 = vcvt.s32.f32 %v2940
    %v2945 = vcvt.s32.f32 %v2941
    %v2946 = vpack.c.bf16 %v2943, %v2942
    %v2947 = vpack.c.bf16 %v2945, %v2944
    %s2948 = scalar_lea.vmem [#allocation4], 80
    %2949 = vst [vmem:[%s2948] sm:$0xff] %v2946
    %2950 = vst [vmem:[%s2948 + $0x8] sm:$0xff] %v2947
    %v2951 = vsel %vm2934, 0.0, %v2930
    %v2952 = vsel %vm2935, 0.0, %v2931
    %v2953 = vsel %vm2936, 0.0, %v2932
    %v2954 = vsel %vm2937, 0.0, %v2933
    %v2955 = vld [vmem:[%s2369] sm:$0xff]
    %v2956 = vld [vmem:[%s2369 + $0x8] sm:$0xff]
    %v2957 = vld [vmem:[%s2369 + $0x10] sm:$0xff]
    %v2958 = vld [vmem:[%s2369 + $0x18] sm:$0xff]
    %v2959 = vmul.f32 %v2951, 0.99
    %v2960 = vmul.f32 %v2952, 0.99
    %v2961 = vmul.f32 %v2953, 0.99
    %v2962 = vmul.f32 %v2954, 0.99
    %v2963 = vadd.f32 %v2959, %v2955
    %v2964 = vadd.f32 %v2960, %v2956
    %v2965 = vadd.f32 %v2961, %v2957
    %v2966 = vadd.f32 %v2962, %v2958
    %vm2967 = vcmp.ge.f32.partialorder %v2963, 0.1
    %vm2968 = vcmp.ge.f32.partialorder %v2964, 0.1
    %vm2969 = vcmp.ge.f32.partialorder %v2965, 0.1
    %vm2970 = vcmp.ge.f32.partialorder %v2966, 0.1
    %v2971 = vsel %vm2967, 1, 0
    %v2972 = vsel %vm2968, 1, 0
    %v2973 = vsel %vm2969, 1, 0
    %v2974 = vsel %vm2970, 1, 0
    %v2975 = vcvt.s32.f32 %v2971
    %v2976 = vcvt.s32.f32 %v2972
    %v2977 = vcvt.s32.f32 %v2973
    %v2978 = vcvt.s32.f32 %v2974
    %v2979 = vpack.c.bf16 %v2976, %v2975
    %v2980 = vpack.c.bf16 %v2978, %v2977
    %s2981 = scalar_lea.vmem [#allocation4], 96
    %2982 = vst [vmem:[%s2981] sm:$0xff] %v2979
    %2983 = vst [vmem:[%s2981 + $0x8] sm:$0xff] %v2980
    %v2984 = vsel %vm2967, 0.0, %v2963
    %v2985 = vsel %vm2968, 0.0, %v2964
    %v2986 = vsel %vm2969, 0.0, %v2965
    %v2987 = vsel %vm2970, 0.0, %v2966
    %v2988 = vld [vmem:[%s2380] sm:$0xff]
    %v2989 = vld [vmem:[%s2380 + $0x8] sm:$0xff]
    %v2990 = vld [vmem:[%s2380 + $0x10] sm:$0xff]
    %v2991 = vld [vmem:[%s2380 + $0x18] sm:$0xff]
    %v2992 = vmul.f32 %v2984, 0.99
    %v2993 = vmul.f32 %v2985, 0.99
    %v2994 = vmul.f32 %v2986, 0.99
    %v2995 = vmul.f32 %v2987, 0.99
    %v2996 = vadd.f32 %v2992, %v2988
    %v2997 = vadd.f32 %v2993, %v2989
    %v2998 = vadd.f32 %v2994, %v2990
    %v2999 = vadd.f32 %v2995, %v2991
    %vm3000 = vcmp.ge.f32.partialorder %v2996, 0.1
    %vm3001 = vcmp.ge.f32.partialorder %v2997, 0.1
    %vm3002 = vcmp.ge.f32.partialorder %v2998, 0.1
    %vm3003 = vcmp.ge.f32.partialorder %v2999, 0.1
    %v3004 = vsel %vm3000, 1, 0
    %v3005 = vsel %vm3001, 1, 0
    %v3006 = vsel %vm3002, 1, 0
    %v3007 = vsel %vm3003, 1, 0
    %v3008 = vcvt.s32.f32 %v3004
    %v3009 = vcvt.s32.f32 %v3005
    %v3010 = vcvt.s32.f32 %v3006
    %v3011 = vcvt.s32.f32 %v3007
    %v3012 = vpack.c.bf16 %v3009, %v3008
    %v3013 = vpack.c.bf16 %v3011, %v3010
    %s3014 = scalar_lea.vmem [#allocation4], 112
    %3015 = vst [vmem:[%s3014] sm:$0xff] %v3012
    %3016 = vst [vmem:[%s3014 + $0x8] sm:$0xff] %v3013
    %v3017 = vld [vmem:[#allocation4] sm:$0xff]
    %v3018 = vld [vmem:[#allocation4 + $0x8] sm:$0xff]
    %v3019 = vld [vmem:[#allocation4 + $0x10] sm:$0xff]
    %v3020 = vld [vmem:[#allocation4 + $0x18] sm:$0xff]
    %v3021 = vld [vmem:[#allocation4 + $0x20] sm:$0xff]
    %v3022 = vld [vmem:[#allocation4 + $0x28] sm:$0xff]
    %v3023 = vld [vmem:[#allocation4 + $0x30] sm:$0xff]
    %v3024 = vld [vmem:[#allocation4 + $0x38] sm:$0xff]
    %v3025 = vld [vmem:[#allocation4 + $0x40] sm:$0xff]
    %v3026 = vld [vmem:[#allocation4 + $0x48] sm:$0xff]
    %v3027 = vld [vmem:[#allocation4 + $0x50] sm:$0xff]
    %v3028 = vld [vmem:[#allocation4 + $0x58] sm:$0xff]
    %v3029 = vld [vmem:[#allocation4 + $0x60] sm:$0xff]
    %v3030 = vld [vmem:[#allocation4 + $0x68] sm:$0xff]
    %v3031 = vld [vmem:[#allocation4 + $0x70] sm:$0xff]
    %v3032 = vld [vmem:[#allocation4 + $0x78] sm:$0xff]
    %v3033 = vld [vmem:[#allocation8] sm:$0xff]
    %v3034 = vld [vmem:[#allocation8 + $0x8] sm:$0xff]
    %v3035 = vld [vmem:[#allocation8 + $0x10] sm:$0xff]
    %v3036 = vld [vmem:[#allocation8 + $0x18] sm:$0xff]
    %v3037 = vld [vmem:[#allocation8 + $0x20] sm:$0xff]
    %v3038 = vld [vmem:[#allocation8 + $0x28] sm:$0xff]
    %v3039 = vld [vmem:[#allocation8 + $0x30] sm:$0xff]
    %v3040 = vld [vmem:[#allocation8 + $0x38] sm:$0xff]
    %v3041 = vld [vmem:[#allocation8 + $0x40] sm:$0xff]
    %v3042 = vld [vmem:[#allocation8 + $0x48] sm:$0xff]
    %v3043 = vld [vmem:[#allocation8 + $0x50] sm:$0xff]
    %v3044 = vld [vmem:[#allocation8 + $0x58] sm:$0xff]
    %v3045 = vld [vmem:[#allocation8 + $0x60] sm:$0xff]
    %v3046 = vld [vmem:[#allocation8 + $0x68] sm:$0xff]
    %v3047 = vld [vmem:[#allocation8 + $0x70] sm:$0xff]
    %v3048 = vld [vmem:[#allocation8 + $0x78] sm:$0xff]
    %v3049 = vld [vmem:[#allocation8 + $0x80] sm:$0xff]
    %v3050 = vld [vmem:[#allocation8 + $0x88] sm:$0xff]
    %v3051 = vld [vmem:[#allocation8 + $0x90] sm:$0xff]
    %v3052 = vld [vmem:[#allocation8 + $0x98] sm:$0xff]
    %v3053 = vld [vmem:[#allocation8 + $0xa0] sm:$0xff]
    %v3054 = vld [vmem:[#allocation8 + $0xa8] sm:$0xff]
    %v3055 = vld [vmem:[#allocation8 + $0xb0] sm:$0xff]
    %v3056 = vld [vmem:[#allocation8 + $0xb8] sm:$0xff]
    %v3057 = vld [vmem:[#allocation8 + $0xc0] sm:$0xff]
    %v3058 = vld [vmem:[#allocation8 + $0xc8] sm:$0xff]
    %v3059 = vld [vmem:[#allocation8 + $0xd0] sm:$0xff]
    %v3060 = vld [vmem:[#allocation8 + $0xd8] sm:$0xff]
    %v3061 = vld [vmem:[#allocation8 + $0xe0] sm:$0xff]
    %v3062 = vld [vmem:[#allocation8 + $0xe8] sm:$0xff]
    %v3063 = vld [vmem:[#allocation8 + $0xf0] sm:$0xff]
    %v3064 = vld [vmem:[#allocation8 + $0xf8] sm:$0xff]
    %v3065 = vld [vmem:[#allocation8 + $0x100] sm:$0xff]
    %v3066 = vld [vmem:[#allocation8 + $0x108] sm:$0xff]
    %v3067 = vld [vmem:[#allocation8 + $0x110] sm:$0xff]
    %v3068 = vld [vmem:[#allocation8 + $0x118] sm:$0xff]
    %v3069 = vld [vmem:[#allocation8 + $0x120] sm:$0xff]
    %v3070 = vld [vmem:[#allocation8 + $0x128] sm:$0xff]
    %v3071 = vld [vmem:[#allocation8 + $0x130] sm:$0xff]
    %v3072 = vld [vmem:[#allocation8 + $0x138] sm:$0xff]
    %v3073 = vld [vmem:[#allocation8 + $0x140] sm:$0xff]
    %v3074 = vld [vmem:[#allocation8 + $0x148] sm:$0xff]
    %v3075 = vld [vmem:[#allocation8 + $0x150] sm:$0xff]
    %v3076 = vld [vmem:[#allocation8 + $0x158] sm:$0xff]
    %v3077 = vld [vmem:[#allocation8 + $0x160] sm:$0xff]
    %v3078 = vld [vmem:[#allocation8 + $0x168] sm:$0xff]
    %v3079 = vld [vmem:[#allocation8 + $0x170] sm:$0xff]
    %v3080 = vld [vmem:[#allocation8 + $0x178] sm:$0xff]
    %v3081 = vld [vmem:[#allocation8 + $0x180] sm:$0xff]
    %v3082 = vld [vmem:[#allocation8 + $0x188] sm:$0xff]
    %v3083 = vld [vmem:[#allocation8 + $0x190] sm:$0xff]
    %v3084 = vld [vmem:[#allocation8 + $0x198] sm:$0xff]
    %v3085 = vld [vmem:[#allocation8 + $0x1a0] sm:$0xff]
    %v3086 = vld [vmem:[#allocation8 + $0x1a8] sm:$0xff]
    %v3087 = vld [vmem:[#allocation8 + $0x1b0] sm:$0xff]
    %v3088 = vld [vmem:[#allocation8 + $0x1b8] sm:$0xff]
    %v3089 = vld [vmem:[#allocation8 + $0x1c0] sm:$0xff]
    %v3090 = vld [vmem:[#allocation8 + $0x1c8] sm:$0xff]
    %v3091 = vld [vmem:[#allocation8 + $0x1d0] sm:$0xff]
    %v3092 = vld [vmem:[#allocation8 + $0x1d8] sm:$0xff]
    %v3093 = vld [vmem:[#allocation8 + $0x1e0] sm:$0xff]
    %v3094 = vld [vmem:[#allocation8 + $0x1e8] sm:$0xff]
    %v3095 = vld [vmem:[#allocation8 + $0x1f0] sm:$0xff]
    %v3096 = vld [vmem:[#allocation8 + $0x1f8] sm:$0xff]
    %v3097 = vld [vmem:[#allocation8 + $0x200] sm:$0xff]
    %v3098 = vld [vmem:[#allocation8 + $0x208] sm:$0xff]
    %v3099 = vld [vmem:[#allocation8 + $0x210] sm:$0xff]
    %v3100 = vld [vmem:[#allocation8 + $0x218] sm:$0xff]
    %v3101 = vld [vmem:[#allocation8 + $0x220] sm:$0xff]
    %v3102 = vld [vmem:[#allocation8 + $0x228] sm:$0xff]
    %v3103 = vld [vmem:[#allocation8 + $0x230] sm:$0xff]
    %v3104 = vld [vmem:[#allocation8 + $0x238] sm:$0xff]
    %v3105 = vld [vmem:[#allocation8 + $0x240] sm:$0xff]
    %v3106 = vld [vmem:[#allocation8 + $0x248] sm:$0xff]
    %v3107 = vld [vmem:[#allocation8 + $0x250] sm:$0xff]
    %v3108 = vld [vmem:[#allocation8 + $0x258] sm:$0xff]
    %v3109 = vld [vmem:[#allocation8 + $0x260] sm:$0xff]
    %v3110 = vld [vmem:[#allocation8 + $0x268] sm:$0xff]
    %v3111 = vld [vmem:[#allocation8 + $0x270] sm:$0xff]
    %v3112 = vld [vmem:[#allocation8 + $0x278] sm:$0xff]
    %v3113 = vld [vmem:[#allocation8 + $0x280] sm:$0xff]
    %v3114 = vld [vmem:[#allocation8 + $0x288] sm:$0xff]
    %v3115 = vld [vmem:[#allocation8 + $0x290] sm:$0xff]
    %v3116 = vld [vmem:[#allocation8 + $0x298] sm:$0xff]
    %v3117 = vld [vmem:[#allocation8 + $0x2a0] sm:$0xff]
    %v3118 = vld [vmem:[#allocation8 + $0x2a8] sm:$0xff]
    %v3119 = vld [vmem:[#allocation8 + $0x2b0] sm:$0xff]
    %v3120 = vld [vmem:[#allocation8 + $0x2b8] sm:$0xff]
    %v3121 = vld [vmem:[#allocation8 + $0x2c0] sm:$0xff]
    %v3122 = vld [vmem:[#allocation8 + $0x2c8] sm:$0xff]
    %v3123 = vld [vmem:[#allocation8 + $0x2d0] sm:$0xff]
    %v3124 = vld [vmem:[#allocation8 + $0x2d8] sm:$0xff]
    %v3125 = vld [vmem:[#allocation8 + $0x2e0] sm:$0xff]
    %v3126 = vld [vmem:[#allocation8 + $0x2e8] sm:$0xff]
    %v3127 = vld [vmem:[#allocation8 + $0x2f0] sm:$0xff]
    %v3128 = vld [vmem:[#allocation8 + $0x2f8] sm:$0xff]
    %v3129 = vld [vmem:[#allocation8 + $0x300] sm:$0xff]
    %v3130 = vld [vmem:[#allocation8 + $0x308] sm:$0xff]
    %v3131 = vld [vmem:[#allocation8 + $0x310] sm:$0xff]
    %v3132 = vld [vmem:[#allocation8 + $0x318] sm:$0xff]
    %v3133 = vld [vmem:[#allocation8 + $0x320] sm:$0xff]
    %v3134 = vld [vmem:[#allocation8 + $0x328] sm:$0xff]
    %v3135 = vld [vmem:[#allocation8 + $0x330] sm:$0xff]
    %v3136 = vld [vmem:[#allocation8 + $0x338] sm:$0xff]
    %v3137 = vld [vmem:[#allocation8 + $0x340] sm:$0xff]
    %v3138 = vld [vmem:[#allocation8 + $0x348] sm:$0xff]
    %v3139 = vld [vmem:[#allocation8 + $0x350] sm:$0xff]
    %v3140 = vld [vmem:[#allocation8 + $0x358] sm:$0xff]
    %v3141 = vld [vmem:[#allocation8 + $0x360] sm:$0xff]
    %v3142 = vld [vmem:[#allocation8 + $0x368] sm:$0xff]
    %v3143 = vld [vmem:[#allocation8 + $0x370] sm:$0xff]
    %v3144 = vld [vmem:[#allocation8 + $0x378] sm:$0xff]
    %v3145 = vld [vmem:[#allocation8 + $0x380] sm:$0xff]
    %v3146 = vld [vmem:[#allocation8 + $0x388] sm:$0xff]
    %v3147 = vld [vmem:[#allocation8 + $0x390] sm:$0xff]
    %v3148 = vld [vmem:[#allocation8 + $0x398] sm:$0xff]
    %v3149 = vld [vmem:[#allocation8 + $0x3a0] sm:$0xff]
    %v3150 = vld [vmem:[#allocation8 + $0x3a8] sm:$0xff]
    %v3151 = vld [vmem:[#allocation8 + $0x3b0] sm:$0xff]
    %v3152 = vld [vmem:[#allocation8 + $0x3b8] sm:$0xff]
    %v3153 = vld [vmem:[#allocation8 + $0x3c0] sm:$0xff]
    %v3154 = vld [vmem:[#allocation8 + $0x3c8] sm:$0xff]
    %v3155 = vld [vmem:[#allocation8 + $0x3d0] sm:$0xff]
    %v3156 = vld [vmem:[#allocation8 + $0x3d8] sm:$0xff]
    %v3157 = vld [vmem:[#allocation8 + $0x3e0] sm:$0xff]
    %v3158 = vld [vmem:[#allocation8 + $0x3e8] sm:$0xff]
    %v3159 = vld [vmem:[#allocation8 + $0x3f0] sm:$0xff]
    %v3160 = vld [vmem:[#allocation8 + $0x3f8] sm:$0xff]
    %v3177 = vunpack.c.l.b16 %v3017
    %v3178 = vunpack.c.h.b16 %v3017
    %v3179 = vunpack.c.l.b16 %v3018
    %v3180 = vunpack.c.h.b16 %v3018
    %v3181 = vunpack.c.l.b16 %v3019
    %v3182 = vunpack.c.h.b16 %v3019
    %v3183 = vunpack.c.l.b16 %v3020
    %v3184 = vunpack.c.h.b16 %v3020
    %v3185 = vunpack.c.l.b16 %v3021
    %v3186 = vunpack.c.h.b16 %v3021
    %v3187 = vunpack.c.l.b16 %v3022
    %v3188 = vunpack.c.h.b16 %v3022
    %v3189 = vunpack.c.l.b16 %v3023
    %v3190 = vunpack.c.h.b16 %v3023
    %v3191 = vunpack.c.l.b16 %v3024
    %v3192 = vunpack.c.h.b16 %v3024
    %v3193 = vunpack.c.l.b16 %v3025
    %v3194 = vunpack.c.h.b16 %v3025
    %v3195 = vunpack.c.l.b16 %v3026
    %v3196 = vunpack.c.h.b16 %v3026
    %v3197 = vunpack.c.l.b16 %v3027
    %v3198 = vunpack.c.h.b16 %v3027
    %v3199 = vunpack.c.l.b16 %v3028
    %v3200 = vunpack.c.h.b16 %v3028
    %v3201 = vunpack.c.l.b16 %v3029
    %v3202 = vunpack.c.h.b16 %v3029
    %v3203 = vunpack.c.l.b16 %v3030
    %v3204 = vunpack.c.h.b16 %v3030
    %v3205 = vunpack.c.l.b16 %v3031
    %v3206 = vunpack.c.h.b16 %v3031
    %v3207 = vunpack.c.l.b16 %v3032
    %v3208 = vunpack.c.h.b16 %v3032
    %v3209 = vpack.c.b16 %v3181, %v3177
    %v3210 = vpack.c.b16 %v3182, %v3178
    %v3211 = vpack.c.b16 %v3183, %v3179
    %v3212 = vpack.c.b16 %v3184, %v3180
    %v3213 = vpack.c.b16 %v3189, %v3185
    %v3214 = vpack.c.b16 %v3190, %v3186
    %v3215 = vpack.c.b16 %v3191, %v3187
    %v3216 = vpack.c.b16 %v3192, %v3188
    %v3217 = vpack.c.b16 %v3197, %v3193
    %v3218 = vpack.c.b16 %v3198, %v3194
    %v3219 = vpack.c.b16 %v3199, %v3195
    %v3220 = vpack.c.b16 %v3200, %v3196
    %v3221 = vpack.c.b16 %v3205, %v3201
    %v3222 = vpack.c.b16 %v3206, %v3202
    %v3223 = vpack.c.b16 %v3207, %v3203
    %v3224 = vpack.c.b16 %v3208, %v3204
    %v3369 = vunpack.c.l.b16 %v3033
    %v3370 = vunpack.c.h.b16 %v3033
    %v3371 = vunpack.c.l.b16 %v3034
    %v3372 = vunpack.c.h.b16 %v3034
    %v3373 = vunpack.c.l.b16 %v3035
    %v3374 = vunpack.c.h.b16 %v3035
    %v3375 = vunpack.c.l.b16 %v3036
    %v3376 = vunpack.c.h.b16 %v3036
    %v3377 = vunpack.c.l.b16 %v3037
    %v3378 = vunpack.c.h.b16 %v3037
    %v3379 = vunpack.c.l.b16 %v3038
    %v3380 = vunpack.c.h.b16 %v3038
    %v3381 = vunpack.c.l.b16 %v3039
    %v3382 = vunpack.c.h.b16 %v3039
    %v3383 = vunpack.c.l.b16 %v3040
    %v3384 = vunpack.c.h.b16 %v3040
    %v3385 = vunpack.c.l.b16 %v3041
    %v3386 = vunpack.c.h.b16 %v3041
    %v3387 = vunpack.c.l.b16 %v3042
    %v3388 = vunpack.c.h.b16 %v3042
    %v3389 = vunpack.c.l.b16 %v3043
    %v3390 = vunpack.c.h.b16 %v3043
    %v3391 = vunpack.c.l.b16 %v3044
    %v3392 = vunpack.c.h.b16 %v3044
    %v3393 = vunpack.c.l.b16 %v3045
    %v3394 = vunpack.c.h.b16 %v3045
    %v3395 = vunpack.c.l.b16 %v3046
    %v3396 = vunpack.c.h.b16 %v3046
    %v3397 = vunpack.c.l.b16 %v3047
    %v3398 = vunpack.c.h.b16 %v3047
    %v3399 = vunpack.c.l.b16 %v3048
    %v3400 = vunpack.c.h.b16 %v3048
    %v3401 = vunpack.c.l.b16 %v3049
    %v3402 = vunpack.c.h.b16 %v3049
    %v3403 = vunpack.c.l.b16 %v3050
    %v3404 = vunpack.c.h.b16 %v3050
    %v3405 = vunpack.c.l.b16 %v3051
    %v3406 = vunpack.c.h.b16 %v3051
    %v3407 = vunpack.c.l.b16 %v3052
    %v3408 = vunpack.c.h.b16 %v3052
    %v3409 = vunpack.c.l.b16 %v3053
    %v3410 = vunpack.c.h.b16 %v3053
    %v3411 = vunpack.c.l.b16 %v3054
    %v3412 = vunpack.c.h.b16 %v3054
    %v3413 = vunpack.c.l.b16 %v3055
    %v3414 = vunpack.c.h.b16 %v3055
    %v3415 = vunpack.c.l.b16 %v3056
    %v3416 = vunpack.c.h.b16 %v3056
    %v3417 = vunpack.c.l.b16 %v3057
    %v3418 = vunpack.c.h.b16 %v3057
    %v3419 = vunpack.c.l.b16 %v3058
    %v3420 = vunpack.c.h.b16 %v3058
    %v3421 = vunpack.c.l.b16 %v3059
    %v3422 = vunpack.c.h.b16 %v3059
    %v3423 = vunpack.c.l.b16 %v3060
    %v3424 = vunpack.c.h.b16 %v3060
    %v3425 = vunpack.c.l.b16 %v3061
    %v3426 = vunpack.c.h.b16 %v3061
    %v3427 = vunpack.c.l.b16 %v3062
    %v3428 = vunpack.c.h.b16 %v3062
    %v3429 = vunpack.c.l.b16 %v3063
    %v3430 = vunpack.c.h.b16 %v3063
    %v3431 = vunpack.c.l.b16 %v3064
    %v3432 = vunpack.c.h.b16 %v3064
    %v3433 = vunpack.c.l.b16 %v3065
    %v3434 = vunpack.c.h.b16 %v3065
    %v3435 = vunpack.c.l.b16 %v3066
    %v3436 = vunpack.c.h.b16 %v3066
    %v3437 = vunpack.c.l.b16 %v3067
    %v3438 = vunpack.c.h.b16 %v3067
    %v3439 = vunpack.c.l.b16 %v3068
    %v3440 = vunpack.c.h.b16 %v3068
    %v3441 = vunpack.c.l.b16 %v3069
    %v3442 = vunpack.c.h.b16 %v3069
    %v3443 = vunpack.c.l.b16 %v3070
    %v3444 = vunpack.c.h.b16 %v3070
    %v3445 = vunpack.c.l.b16 %v3071
    %v3446 = vunpack.c.h.b16 %v3071
    %v3447 = vunpack.c.l.b16 %v3072
    %v3448 = vunpack.c.h.b16 %v3072
    %v3449 = vunpack.c.l.b16 %v3073
    %v3450 = vunpack.c.h.b16 %v3073
    %v3451 = vunpack.c.l.b16 %v3074
    %v3452 = vunpack.c.h.b16 %v3074
    %v3453 = vunpack.c.l.b16 %v3075
    %v3454 = vunpack.c.h.b16 %v3075
    %v3455 = vunpack.c.l.b16 %v3076
    %v3456 = vunpack.c.h.b16 %v3076
    %v3457 = vunpack.c.l.b16 %v3077
    %v3458 = vunpack.c.h.b16 %v3077
    %v3459 = vunpack.c.l.b16 %v3078
    %v3460 = vunpack.c.h.b16 %v3078
    %v3461 = vunpack.c.l.b16 %v3079
    %v3462 = vunpack.c.h.b16 %v3079
    %v3463 = vunpack.c.l.b16 %v3080
    %v3464 = vunpack.c.h.b16 %v3080
    %v3465 = vunpack.c.l.b16 %v3081
    %v3466 = vunpack.c.h.b16 %v3081
    %v3467 = vunpack.c.l.b16 %v3082
    %v3468 = vunpack.c.h.b16 %v3082
    %v3469 = vunpack.c.l.b16 %v3083
    %v3470 = vunpack.c.h.b16 %v3083
    %v3471 = vunpack.c.l.b16 %v3084
    %v3472 = vunpack.c.h.b16 %v3084
    %v3473 = vunpack.c.l.b16 %v3085
    %v3474 = vunpack.c.h.b16 %v3085
    %v3475 = vunpack.c.l.b16 %v3086
    %v3476 = vunpack.c.h.b16 %v3086
    %v3477 = vunpack.c.l.b16 %v3087
    %v3478 = vunpack.c.h.b16 %v3087
    %v3479 = vunpack.c.l.b16 %v3088
    %v3480 = vunpack.c.h.b16 %v3088
    %v3481 = vunpack.c.l.b16 %v3089
    %v3482 = vunpack.c.h.b16 %v3089
    %v3483 = vunpack.c.l.b16 %v3090
    %v3484 = vunpack.c.h.b16 %v3090
    %v3485 = vunpack.c.l.b16 %v3091
    %v3486 = vunpack.c.h.b16 %v3091
    %v3487 = vunpack.c.l.b16 %v3092
    %v3488 = vunpack.c.h.b16 %v3092
    %v3489 = vunpack.c.l.b16 %v3093
    %v3490 = vunpack.c.h.b16 %v3093
    %v3491 = vunpack.c.l.b16 %v3094
    %v3492 = vunpack.c.h.b16 %v3094
    %v3493 = vunpack.c.l.b16 %v3095
    %v3494 = vunpack.c.h.b16 %v3095
    %v3495 = vunpack.c.l.b16 %v3096
    %v3496 = vunpack.c.h.b16 %v3096
    %v3497 = vunpack.c.l.b16 %v3097
    %v3498 = vunpack.c.h.b16 %v3097
    %v3499 = vunpack.c.l.b16 %v3098
    %v3500 = vunpack.c.h.b16 %v3098
    %v3501 = vunpack.c.l.b16 %v3099
    %v3502 = vunpack.c.h.b16 %v3099
    %v3503 = vunpack.c.l.b16 %v3100
    %v3504 = vunpack.c.h.b16 %v3100
    %v3505 = vunpack.c.l.b16 %v3101
    %v3506 = vunpack.c.h.b16 %v3101
    %v3507 = vunpack.c.l.b16 %v3102
    %v3508 = vunpack.c.h.b16 %v3102
    %v3509 = vunpack.c.l.b16 %v3103
    %v3510 = vunpack.c.h.b16 %v3103
    %v3511 = vunpack.c.l.b16 %v3104
    %v3512 = vunpack.c.h.b16 %v3104
    %v3513 = vunpack.c.l.b16 %v3105
    %v3514 = vunpack.c.h.b16 %v3105
    %v3515 = vunpack.c.l.b16 %v3106
    %v3516 = vunpack.c.h.b16 %v3106
    %v3517 = vunpack.c.l.b16 %v3107
    %v3518 = vunpack.c.h.b16 %v3107
    %v3519 = vunpack.c.l.b16 %v3108
    %v3520 = vunpack.c.h.b16 %v3108
    %v3521 = vunpack.c.l.b16 %v3109
    %v3522 = vunpack.c.h.b16 %v3109
    %v3523 = vunpack.c.l.b16 %v3110
    %v3524 = vunpack.c.h.b16 %v3110
    %v3525 = vunpack.c.l.b16 %v3111
    %v3526 = vunpack.c.h.b16 %v3111
    %v3527 = vunpack.c.l.b16 %v3112
    %v3528 = vunpack.c.h.b16 %v3112
    %v3529 = vunpack.c.l.b16 %v3113
    %v3530 = vunpack.c.h.b16 %v3113
    %v3531 = vunpack.c.l.b16 %v3114
    %v3532 = vunpack.c.h.b16 %v3114
    %v3533 = vunpack.c.l.b16 %v3115
    %v3534 = vunpack.c.h.b16 %v3115
    %v3535 = vunpack.c.l.b16 %v3116
    %v3536 = vunpack.c.h.b16 %v3116
    %v3537 = vunpack.c.l.b16 %v3117
    %v3538 = vunpack.c.h.b16 %v3117
    %v3539 = vunpack.c.l.b16 %v3118
    %v3540 = vunpack.c.h.b16 %v3118
    %v3541 = vunpack.c.l.b16 %v3119
    %v3542 = vunpack.c.h.b16 %v3119
    %v3543 = vunpack.c.l.b16 %v3120
    %v3544 = vunpack.c.h.b16 %v3120
    %v3545 = vunpack.c.l.b16 %v3121
    %v3546 = vunpack.c.h.b16 %v3121
    %v3547 = vunpack.c.l.b16 %v3122
    %v3548 = vunpack.c.h.b16 %v3122
    %v3549 = vunpack.c.l.b16 %v3123
    %v3550 = vunpack.c.h.b16 %v3123
    %v3551 = vunpack.c.l.b16 %v3124
    %v3552 = vunpack.c.h.b16 %v3124
    %v3553 = vunpack.c.l.b16 %v3125
    %v3554 = vunpack.c.h.b16 %v3125
    %v3555 = vunpack.c.l.b16 %v3126
    %v3556 = vunpack.c.h.b16 %v3126
    %v3557 = vunpack.c.l.b16 %v3127
    %v3558 = vunpack.c.h.b16 %v3127
    %v3559 = vunpack.c.l.b16 %v3128
    %v3560 = vunpack.c.h.b16 %v3128
    %v3561 = vunpack.c.l.b16 %v3129
    %v3562 = vunpack.c.h.b16 %v3129
    %v3563 = vunpack.c.l.b16 %v3130
    %v3564 = vunpack.c.h.b16 %v3130
    %v3565 = vunpack.c.l.b16 %v3131
    %v3566 = vunpack.c.h.b16 %v3131
    %v3567 = vunpack.c.l.b16 %v3132
    %v3568 = vunpack.c.h.b16 %v3132
    %v3569 = vunpack.c.l.b16 %v3133
    %v3570 = vunpack.c.h.b16 %v3133
    %v3571 = vunpack.c.l.b16 %v3134
    %v3572 = vunpack.c.h.b16 %v3134
    %v3573 = vunpack.c.l.b16 %v3135
    %v3574 = vunpack.c.h.b16 %v3135
    %v3575 = vunpack.c.l.b16 %v3136
    %v3576 = vunpack.c.h.b16 %v3136
    %v3577 = vunpack.c.l.b16 %v3137
    %v3578 = vunpack.c.h.b16 %v3137
    %v3579 = vunpack.c.l.b16 %v3138
    %v3580 = vunpack.c.h.b16 %v3138
    %v3581 = vunpack.c.l.b16 %v3139
    %v3582 = vunpack.c.h.b16 %v3139
    %v3583 = vunpack.c.l.b16 %v3140
    %v3584 = vunpack.c.h.b16 %v3140
    %v3585 = vunpack.c.l.b16 %v3141
    %v3586 = vunpack.c.h.b16 %v3141
    %v3587 = vunpack.c.l.b16 %v3142
    %v3588 = vunpack.c.h.b16 %v3142
    %v3589 = vunpack.c.l.b16 %v3143
    %v3590 = vunpack.c.h.b16 %v3143
    %v3591 = vunpack.c.l.b16 %v3144
    %v3592 = vunpack.c.h.b16 %v3144
    %v3593 = vunpack.c.l.b16 %v3145
    %v3594 = vunpack.c.h.b16 %v3145
    %v3595 = vunpack.c.l.b16 %v3146
    %v3596 = vunpack.c.h.b16 %v3146
    %v3597 = vunpack.c.l.b16 %v3147
    %v3598 = vunpack.c.h.b16 %v3147
    %v3599 = vunpack.c.l.b16 %v3148
    %v3600 = vunpack.c.h.b16 %v3148
    %v3601 = vunpack.c.l.b16 %v3149
    %v3602 = vunpack.c.h.b16 %v3149
    %v3603 = vunpack.c.l.b16 %v3150
    %v3604 = vunpack.c.h.b16 %v3150
    %v3605 = vunpack.c.l.b16 %v3151
    %v3606 = vunpack.c.h.b16 %v3151
    %v3607 = vunpack.c.l.b16 %v3152
    %v3608 = vunpack.c.h.b16 %v3152
    %v3609 = vunpack.c.l.b16 %v3153
    %v3610 = vunpack.c.h.b16 %v3153
    %v3611 = vunpack.c.l.b16 %v3154
    %v3612 = vunpack.c.h.b16 %v3154
    %v3613 = vunpack.c.l.b16 %v3155
    %v3614 = vunpack.c.h.b16 %v3155
    %v3615 = vunpack.c.l.b16 %v3156
    %v3616 = vunpack.c.h.b16 %v3156
    %v3617 = vunpack.c.l.b16 %v3157
    %v3618 = vunpack.c.h.b16 %v3157
    %v3619 = vunpack.c.l.b16 %v3158
    %v3620 = vunpack.c.h.b16 %v3158
    %v3621 = vunpack.c.l.b16 %v3159
    %v3622 = vunpack.c.h.b16 %v3159
    %v3623 = vunpack.c.l.b16 %v3160
    %v3624 = vunpack.c.h.b16 %v3160
    %v3625 = vpack.c.b16 %v3373, %v3369
    %v3626 = vpack.c.b16 %v3374, %v3370
    %v3627 = vpack.c.b16 %v3375, %v3371
    %v3628 = vpack.c.b16 %v3376, %v3372
    %v3629 = vpack.c.b16 %v3381, %v3377
    %v3630 = vpack.c.b16 %v3382, %v3378
    %v3631 = vpack.c.b16 %v3383, %v3379
    %v3632 = vpack.c.b16 %v3384, %v3380
    %v3633 = vpack.c.b16 %v3389, %v3385
    %v3634 = vpack.c.b16 %v3390, %v3386
    %v3635 = vpack.c.b16 %v3391, %v3387
    %v3636 = vpack.c.b16 %v3392, %v3388
    %v3637 = vpack.c.b16 %v3397, %v3393
    %v3638 = vpack.c.b16 %v3398, %v3394
    %v3639 = vpack.c.b16 %v3399, %v3395
    %v3640 = vpack.c.b16 %v3400, %v3396
    %v3641 = vpack.c.b16 %v3405, %v3401
    %v3642 = vpack.c.b16 %v3406, %v3402
    %v3643 = vpack.c.b16 %v3407, %v3403
    %v3644 = vpack.c.b16 %v3408, %v3404
    %v3645 = vpack.c.b16 %v3413, %v3409
    %v3646 = vpack.c.b16 %v3414, %v3410
    %v3647 = vpack.c.b16 %v3415, %v3411
    %v3648 = vpack.c.b16 %v3416, %v3412
    %v3649 = vpack.c.b16 %v3421, %v3417
    %v3650 = vpack.c.b16 %v3422, %v3418
    %v3651 = vpack.c.b16 %v3423, %v3419
    %v3652 = vpack.c.b16 %v3424, %v3420
    %v3653 = vpack.c.b16 %v3429, %v3425
    %v3654 = vpack.c.b16 %v3430, %v3426
    %v3655 = vpack.c.b16 %v3431, %v3427
    %v3656 = vpack.c.b16 %v3432, %v3428
    %v3657 = vpack.c.b16 %v3437, %v3433
    %v3658 = vpack.c.b16 %v3438, %v3434
    %v3659 = vpack.c.b16 %v3439, %v3435
    %v3660 = vpack.c.b16 %v3440, %v3436
    %v3661 = vpack.c.b16 %v3445, %v3441
    %v3662 = vpack.c.b16 %v3446, %v3442
    %v3663 = vpack.c.b16 %v3447, %v3443
    %v3664 = vpack.c.b16 %v3448, %v3444
    %v3665 = vpack.c.b16 %v3453, %v3449
    %v3666 = vpack.c.b16 %v3454, %v3450
    %v3667 = vpack.c.b16 %v3455, %v3451
    %v3668 = vpack.c.b16 %v3456, %v3452
    %v3669 = vpack.c.b16 %v3461, %v3457
    %v3670 = vpack.c.b16 %v3462, %v3458
    %v3671 = vpack.c.b16 %v3463, %v3459
    %v3672 = vpack.c.b16 %v3464, %v3460
    %v3673 = vpack.c.b16 %v3469, %v3465
    %v3674 = vpack.c.b16 %v3470, %v3466
    %v3675 = vpack.c.b16 %v3471, %v3467
    %v3676 = vpack.c.b16 %v3472, %v3468
    %v3677 = vpack.c.b16 %v3477, %v3473
    %v3678 = vpack.c.b16 %v3478, %v3474
    %v3679 = vpack.c.b16 %v3479, %v3475
    %v3680 = vpack.c.b16 %v3480, %v3476
    %v3681 = vpack.c.b16 %v3485, %v3481
    %v3682 = vpack.c.b16 %v3486, %v3482
    %v3683 = vpack.c.b16 %v3487, %v3483
    %v3684 = vpack.c.b16 %v3488, %v3484
    %v3685 = vpack.c.b16 %v3493, %v3489
    %v3686 = vpack.c.b16 %v3494, %v3490
    %v3687 = vpack.c.b16 %v3495, %v3491
    %v3688 = vpack.c.b16 %v3496, %v3492
    %v3689 = vpack.c.b16 %v3501, %v3497
    %v3690 = vpack.c.b16 %v3502, %v3498
    %v3691 = vpack.c.b16 %v3503, %v3499
    %v3692 = vpack.c.b16 %v3504, %v3500
    %v3693 = vpack.c.b16 %v3509, %v3505
    %v3694 = vpack.c.b16 %v3510, %v3506
    %v3695 = vpack.c.b16 %v3511, %v3507
    %v3696 = vpack.c.b16 %v3512, %v3508
    %v3697 = vpack.c.b16 %v3517, %v3513
    %v3698 = vpack.c.b16 %v3518, %v3514
    %v3699 = vpack.c.b16 %v3519, %v3515
    %v3700 = vpack.c.b16 %v3520, %v3516
    %v3701 = vpack.c.b16 %v3525, %v3521
    %v3702 = vpack.c.b16 %v3526, %v3522
    %v3703 = vpack.c.b16 %v3527, %v3523
    %v3704 = vpack.c.b16 %v3528, %v3524
    %v3705 = vpack.c.b16 %v3533, %v3529
    %v3706 = vpack.c.b16 %v3534, %v3530
    %v3707 = vpack.c.b16 %v3535, %v3531
    %v3708 = vpack.c.b16 %v3536, %v3532
    %v3709 = vpack.c.b16 %v3541, %v3537
    %v3710 = vpack.c.b16 %v3542, %v3538
    %v3711 = vpack.c.b16 %v3543, %v3539
    %v3712 = vpack.c.b16 %v3544, %v3540
    %v3713 = vpack.c.b16 %v3549, %v3545
    %v3714 = vpack.c.b16 %v3550, %v3546
    %v3715 = vpack.c.b16 %v3551, %v3547
    %v3716 = vpack.c.b16 %v3552, %v3548
    %v3717 = vpack.c.b16 %v3557, %v3553
    %v3718 = vpack.c.b16 %v3558, %v3554
    %v3719 = vpack.c.b16 %v3559, %v3555
    %v3720 = vpack.c.b16 %v3560, %v3556
    %v3721 = vpack.c.b16 %v3565, %v3561
    %v3722 = vpack.c.b16 %v3566, %v3562
    %v3723 = vpack.c.b16 %v3567, %v3563
    %v3724 = vpack.c.b16 %v3568, %v3564
    %v3725 = vpack.c.b16 %v3573, %v3569
    %v3726 = vpack.c.b16 %v3574, %v3570
    %v3727 = vpack.c.b16 %v3575, %v3571
    %v3728 = vpack.c.b16 %v3576, %v3572
    %v3729 = vpack.c.b16 %v3581, %v3577
    %v3730 = vpack.c.b16 %v3582, %v3578
    %v3731 = vpack.c.b16 %v3583, %v3579
    %v3732 = vpack.c.b16 %v3584, %v3580
    %v3733 = vpack.c.b16 %v3589, %v3585
    %v3734 = vpack.c.b16 %v3590, %v3586
    %v3735 = vpack.c.b16 %v3591, %v3587
    %v3736 = vpack.c.b16 %v3592, %v3588
    %v3737 = vpack.c.b16 %v3597, %v3593
    %v3738 = vpack.c.b16 %v3598, %v3594
    %v3739 = vpack.c.b16 %v3599, %v3595
    %v3740 = vpack.c.b16 %v3600, %v3596
    %v3741 = vpack.c.b16 %v3605, %v3601
    %v3742 = vpack.c.b16 %v3606, %v3602
    %v3743 = vpack.c.b16 %v3607, %v3603
    %v3744 = vpack.c.b16 %v3608, %v3604
    %v3745 = vpack.c.b16 %v3613, %v3609
    %v3746 = vpack.c.b16 %v3614, %v3610
    %v3747 = vpack.c.b16 %v3615, %v3611
    %v3748 = vpack.c.b16 %v3616, %v3612
    %v3749 = vpack.c.b16 %v3621, %v3617
    %v3750 = vpack.c.b16 %v3622, %v3618
    %v3751 = vpack.c.b16 %v3623, %v3619
    %v3752 = vpack.c.b16 %v3624, %v3620
    %3881 = vmatpush.bf16.msra.mxu0 %v3653
    %3882 = vmatpush.bf16.msra.mxu0 %v3649
    %3883 = vmatpush.bf16.msra.mxu0 %v3645
    %3884 = vmatpush.bf16.msra.mxu0 %v3641
    %3885 = vmatpush.bf16.msra.mxu0 %v3637
    %3886 = vmatpush.bf16.msra.mxu0 %v3633
    %3887 = vmatpush.bf16.msra.mxu0 %v3629
    %3888 = vmatpush.bf16.msra.mxu0 %v3625
    %3889 = vmatmul.bf16.gmra.mxu0 %v3209
    %v3890 = vpop.f32.mrf.mxu0
    %v3891 = vadd.f32 0.0, %v3890
    %v3892 = vpop.f32.mrf.mxu0
    %v3893 = vadd.f32 0.0, %v3892
    %3894 = vmatmul.bf16.gmra.mxu0 %v3213
    %v3895 = vpop.f32.mrf.mxu0
    %v3896 = vadd.f32 0.0, %v3895
    %v3897 = vpop.f32.mrf.mxu0
    %v3898 = vadd.f32 0.0, %v3897
    %3899 = vmatmul.bf16.gmra.mxu0 %v3217
    %v3900 = vpop.f32.mrf.mxu0
    %v3901 = vadd.f32 0.0, %v3900
    %v3902 = vpop.f32.mrf.mxu0
    %v3903 = vadd.f32 0.0, %v3902
    %3904 = vmatmul.bf16.gmra.mxu0 %v3221
    %v3905 = vpop.f32.mrf.mxu0
    %v3906 = vadd.f32 0.0, %v3905
    %v3907 = vpop.f32.mrf.mxu0
    %v3908 = vadd.f32 0.0, %v3907
    %3909 = vdwg.mxu0
    %3910 = vmatpush.bf16.msra.mxu0 %v3685
    %3911 = vmatpush.bf16.msra.mxu0 %v3681
    %3912 = vmatpush.bf16.msra.mxu0 %v3677
    %3913 = vmatpush.bf16.msra.mxu0 %v3673
    %3914 = vmatpush.bf16.msra.mxu0 %v3669
    %3915 = vmatpush.bf16.msra.mxu0 %v3665
    %3916 = vmatpush.bf16.msra.mxu0 %v3661
    %3917 = vmatpush.bf16.msra.mxu0 %v3657
    %3918 = vmatmul.bf16.gmra.mxu0 %v3210
    %v3919 = vpop.f32.mrf.mxu0
    %v3920 = vadd.f32 %v3891, %v3919
    %v3921 = vpop.f32.mrf.mxu0
    %v3922 = vadd.f32 %v3893, %v3921
    %3923 = vmatmul.bf16.gmra.mxu0 %v3214
    %v3924 = vpop.f32.mrf.mxu0
    %v3925 = vadd.f32 %v3896, %v3924
    %v3926 = vpop.f32.mrf.mxu0
    %v3927 = vadd.f32 %v3898, %v3926
    %3928 = vmatmul.bf16.gmra.mxu0 %v3218
    %v3929 = vpop.f32.mrf.mxu0
    %v3930 = vadd.f32 %v3901, %v3929
    %v3931 = vpop.f32.mrf.mxu0
    %v3932 = vadd.f32 %v3903, %v3931
    %3933 = vmatmul.bf16.gmra.mxu0 %v3222
    %v3934 = vpop.f32.mrf.mxu0
    %v3935 = vadd.f32 %v3906, %v3934
    %v3936 = vpop.f32.mrf.mxu0
    %v3937 = vadd.f32 %v3908, %v3936
    %3938 = vdwg.mxu0
    %3939 = vmatpush.bf16.msra.mxu0 %v3717
    %3940 = vmatpush.bf16.msra.mxu0 %v3713
    %3941 = vmatpush.bf16.msra.mxu0 %v3709
    %3942 = vmatpush.bf16.msra.mxu0 %v3705
    %3943 = vmatpush.bf16.msra.mxu0 %v3701
    %3944 = vmatpush.bf16.msra.mxu0 %v3697
    %3945 = vmatpush.bf16.msra.mxu0 %v3693
    %3946 = vmatpush.bf16.msra.mxu0 %v3689
    %3947 = vmatmul.bf16.gmra.mxu0 %v3211
    %v3948 = vpop.f32.mrf.mxu0
    %v3949 = vadd.f32 %v3920, %v3948
    %v3950 = vpop.f32.mrf.mxu0
    %v3951 = vadd.f32 %v3922, %v3950
    %3952 = vmatmul.bf16.gmra.mxu0 %v3215
    %v3953 = vpop.f32.mrf.mxu0
    %v3954 = vadd.f32 %v3925, %v3953
    %v3955 = vpop.f32.mrf.mxu0
    %v3956 = vadd.f32 %v3927, %v3955
    %3957 = vmatmul.bf16.gmra.mxu0 %v3219
    %v3958 = vpop.f32.mrf.mxu0
    %v3959 = vadd.f32 %v3930, %v3958
    %v3960 = vpop.f32.mrf.mxu0
    %v3961 = vadd.f32 %v3932, %v3960
    %3962 = vmatmul.bf16.gmra.mxu0 %v3223
    %v3963 = vpop.f32.mrf.mxu0
    %v3964 = vadd.f32 %v3935, %v3963
    %v3965 = vpop.f32.mrf.mxu0
    %v3966 = vadd.f32 %v3937, %v3965
    %3967 = vdwg.mxu0
    %3968 = vmatpush.bf16.msra.mxu0 %v3749
    %3969 = vmatpush.bf16.msra.mxu0 %v3745
    %3970 = vmatpush.bf16.msra.mxu0 %v3741
    %3971 = vmatpush.bf16.msra.mxu0 %v3737
    %3972 = vmatpush.bf16.msra.mxu0 %v3733
    %3973 = vmatpush.bf16.msra.mxu0 %v3729
    %3974 = vmatpush.bf16.msra.mxu0 %v3725
    %3975 = vmatpush.bf16.msra.mxu0 %v3721
    %3976 = vmatmul.bf16.gmra.mxu0 %v3212
    %v3977 = vpop.f32.mrf.mxu0
    %v3978 = vadd.f32 %v3949, %v3977
    %v3979 = vpop.f32.mrf.mxu0
    %v3980 = vadd.f32 %v3951, %v3979
    %3981 = vmatmul.bf16.gmra.mxu0 %v3216
    %v3982 = vpop.f32.mrf.mxu0
    %v3983 = vadd.f32 %v3954, %v3982
    %v3984 = vpop.f32.mrf.mxu0
    %v3985 = vadd.f32 %v3956, %v3984
    %3986 = vmatmul.bf16.gmra.mxu0 %v3220
    %v3987 = vpop.f32.mrf.mxu0
    %v3988 = vadd.f32 %v3959, %v3987
    %v3989 = vpop.f32.mrf.mxu0
    %v3990 = vadd.f32 %v3961, %v3989
    %3991 = vmatmul.bf16.gmra.mxu0 %v3224
    %v3992 = vpop.f32.mrf.mxu0
    %v3993 = vadd.f32 %v3964, %v3992
    %v3994 = vpop.f32.mrf.mxu0
    %v3995 = vadd.f32 %v3966, %v3994
    %3996 = vdwg.mxu0
    %3997 = vmatpush.bf16.msra.mxu0 %v3654
    %3998 = vmatpush.bf16.msra.mxu0 %v3650
    %3999 = vmatpush.bf16.msra.mxu0 %v3646
    %4000 = vmatpush.bf16.msra.mxu0 %v3642
    %4001 = vmatpush.bf16.msra.mxu0 %v3638
    %4002 = vmatpush.bf16.msra.mxu0 %v3634
    %4003 = vmatpush.bf16.msra.mxu0 %v3630
    %4004 = vmatpush.bf16.msra.mxu0 %v3626
    %4005 = vmatmul.bf16.gmra.mxu0 %v3209
    %v4006 = vpop.f32.mrf.mxu0
    %v4007 = vadd.f32 0.0, %v4006
    %v4008 = vpop.f32.mrf.mxu0
    %v4009 = vadd.f32 0.0, %v4008
    %4010 = vmatmul.bf16.gmra.mxu0 %v3213
    %v4011 = vpop.f32.mrf.mxu0
    %v4012 = vadd.f32 0.0, %v4011
    %v4013 = vpop.f32.mrf.mxu0
    %v4014 = vadd.f32 0.0, %v4013
    %4015 = vmatmul.bf16.gmra.mxu0 %v3217
    %v4016 = vpop.f32.mrf.mxu0
    %v4017 = vadd.f32 0.0, %v4016
    %v4018 = vpop.f32.mrf.mxu0
    %v4019 = vadd.f32 0.0, %v4018
    %4020 = vmatmul.bf16.gmra.mxu0 %v3221
    %v4021 = vpop.f32.mrf.mxu0
    %v4022 = vadd.f32 0.0, %v4021
    %v4023 = vpop.f32.mrf.mxu0
    %v4024 = vadd.f32 0.0, %v4023
    %4025 = vdwg.mxu0
    %4026 = vmatpush.bf16.msra.mxu0 %v3686
    %4027 = vmatpush.bf16.msra.mxu0 %v3682
    %4028 = vmatpush.bf16.msra.mxu0 %v3678
    %4029 = vmatpush.bf16.msra.mxu0 %v3674
    %4030 = vmatpush.bf16.msra.mxu0 %v3670
    %4031 = vmatpush.bf16.msra.mxu0 %v3666
    %4032 = vmatpush.bf16.msra.mxu0 %v3662
    %4033 = vmatpush.bf16.msra.mxu0 %v3658
    %4034 = vmatmul.bf16.gmra.mxu0 %v3210
    %v4035 = vpop.f32.mrf.mxu0
    %v4036 = vadd.f32 %v4007, %v4035
    %v4037 = vpop.f32.mrf.mxu0
    %v4038 = vadd.f32 %v4009, %v4037
    %4039 = vmatmul.bf16.gmra.mxu0 %v3214
    %v4040 = vpop.f32.mrf.mxu0
    %v4041 = vadd.f32 %v4012, %v4040
    %v4042 = vpop.f32.mrf.mxu0
    %v4043 = vadd.f32 %v4014, %v4042
    %4044 = vmatmul.bf16.gmra.mxu0 %v3218
    %v4045 = vpop.f32.mrf.mxu0
    %v4046 = vadd.f32 %v4017, %v4045
    %v4047 = vpop.f32.mrf.mxu0
    %v4048 = vadd.f32 %v4019, %v4047
    %4049 = vmatmul.bf16.gmra.mxu0 %v3222
    %v4050 = vpop.f32.mrf.mxu0
    %v4051 = vadd.f32 %v4022, %v4050
    %v4052 = vpop.f32.mrf.mxu0
    %v4053 = vadd.f32 %v4024, %v4052
    %4054 = vdwg.mxu0
    %4055 = vmatpush.bf16.msra.mxu0 %v3718
    %4056 = vmatpush.bf16.msra.mxu0 %v3714
    %4057 = vmatpush.bf16.msra.mxu0 %v3710
    %4058 = vmatpush.bf16.msra.mxu0 %v3706
    %4059 = vmatpush.bf16.msra.mxu0 %v3702
    %4060 = vmatpush.bf16.msra.mxu0 %v3698
    %4061 = vmatpush.bf16.msra.mxu0 %v3694
    %4062 = vmatpush.bf16.msra.mxu0 %v3690
    %4063 = vmatmul.bf16.gmra.mxu0 %v3211
    %v4064 = vpop.f32.mrf.mxu0
    %v4065 = vadd.f32 %v4036, %v4064
    %v4066 = vpop.f32.mrf.mxu0
    %v4067 = vadd.f32 %v4038, %v4066
    %4068 = vmatmul.bf16.gmra.mxu0 %v3215
    %v4069 = vpop.f32.mrf.mxu0
    %v4070 = vadd.f32 %v4041, %v4069
    %v4071 = vpop.f32.mrf.mxu0
    %v4072 = vadd.f32 %v4043, %v4071
    %4073 = vmatmul.bf16.gmra.mxu0 %v3219
    %v4074 = vpop.f32.mrf.mxu0
    %v4075 = vadd.f32 %v4046, %v4074
    %v4076 = vpop.f32.mrf.mxu0
    %v4077 = vadd.f32 %v4048, %v4076
    %4078 = vmatmul.bf16.gmra.mxu0 %v3223
    %v4079 = vpop.f32.mrf.mxu0
    %v4080 = vadd.f32 %v4051, %v4079
    %v4081 = vpop.f32.mrf.mxu0
    %v4082 = vadd.f32 %v4053, %v4081
    %4083 = vdwg.mxu0
    %4084 = vmatpush.bf16.msra.mxu0 %v3750
    %4085 = vmatpush.bf16.msra.mxu0 %v3746
    %4086 = vmatpush.bf16.msra.mxu0 %v3742
    %4087 = vmatpush.bf16.msra.mxu0 %v3738
    %4088 = vmatpush.bf16.msra.mxu0 %v3734
    %4089 = vmatpush.bf16.msra.mxu0 %v3730
    %4090 = vmatpush.bf16.msra.mxu0 %v3726
    %4091 = vmatpush.bf16.msra.mxu0 %v3722
    %4092 = vmatmul.bf16.gmra.mxu0 %v3212
    %v4093 = vpop.f32.mrf.mxu0
    %v4094 = vadd.f32 %v4065, %v4093
    %v4095 = vpop.f32.mrf.mxu0
    %v4096 = vadd.f32 %v4067, %v4095
    %4097 = vmatmul.bf16.gmra.mxu0 %v3216
    %v4098 = vpop.f32.mrf.mxu0
    %v4099 = vadd.f32 %v4070, %v4098
    %v4100 = vpop.f32.mrf.mxu0
    %v4101 = vadd.f32 %v4072, %v4100
    %4102 = vmatmul.bf16.gmra.mxu0 %v3220
    %v4103 = vpop.f32.mrf.mxu0
    %v4104 = vadd.f32 %v4075, %v4103
    %v4105 = vpop.f32.mrf.mxu0
    %v4106 = vadd.f32 %v4077, %v4105
    %4107 = vmatmul.bf16.gmra.mxu0 %v3224
    %v4108 = vpop.f32.mrf.mxu0
    %v4109 = vadd.f32 %v4080, %v4108
    %v4110 = vpop.f32.mrf.mxu0
    %v4111 = vadd.f32 %v4082, %v4110
    %4112 = vdwg.mxu0
    %4113 = vmatpush.bf16.msra.mxu0 %v3655
    %4114 = vmatpush.bf16.msra.mxu0 %v3651
    %4115 = vmatpush.bf16.msra.mxu0 %v3647
    %4116 = vmatpush.bf16.msra.mxu0 %v3643
    %4117 = vmatpush.bf16.msra.mxu0 %v3639
    %4118 = vmatpush.bf16.msra.mxu0 %v3635
    %4119 = vmatpush.bf16.msra.mxu0 %v3631
    %4120 = vmatpush.bf16.msra.mxu0 %v3627
    %4121 = vmatmul.bf16.gmra.mxu0 %v3209
    %v4122 = vpop.f32.mrf.mxu0
    %v4123 = vadd.f32 0.0, %v4122
    %v4124 = vpop.f32.mrf.mxu0
    %v4125 = vadd.f32 0.0, %v4124
    %4126 = vmatmul.bf16.gmra.mxu0 %v3213
    %v4127 = vpop.f32.mrf.mxu0
    %v4128 = vadd.f32 0.0, %v4127
    %v4129 = vpop.f32.mrf.mxu0
    %v4130 = vadd.f32 0.0, %v4129
    %4131 = vmatmul.bf16.gmra.mxu0 %v3217
    %v4132 = vpop.f32.mrf.mxu0
    %v4133 = vadd.f32 0.0, %v4132
    %v4134 = vpop.f32.mrf.mxu0
    %v4135 = vadd.f32 0.0, %v4134
    %4136 = vmatmul.bf16.gmra.mxu0 %v3221
    %v4137 = vpop.f32.mrf.mxu0
    %v4138 = vadd.f32 0.0, %v4137
    %v4139 = vpop.f32.mrf.mxu0
    %v4140 = vadd.f32 0.0, %v4139
    %4141 = vdwg.mxu0
    %4142 = vmatpush.bf16.msra.mxu0 %v3687
    %4143 = vmatpush.bf16.msra.mxu0 %v3683
    %4144 = vmatpush.bf16.msra.mxu0 %v3679
    %4145 = vmatpush.bf16.msra.mxu0 %v3675
    %4146 = vmatpush.bf16.msra.mxu0 %v3671
    %4147 = vmatpush.bf16.msra.mxu0 %v3667
    %4148 = vmatpush.bf16.msra.mxu0 %v3663
    %4149 = vmatpush.bf16.msra.mxu0 %v3659
    %4150 = vmatmul.bf16.gmra.mxu0 %v3210
    %v4151 = vpop.f32.mrf.mxu0
    %v4152 = vadd.f32 %v4123, %v4151
    %v4153 = vpop.f32.mrf.mxu0
    %v4154 = vadd.f32 %v4125, %v4153
    %4155 = vmatmul.bf16.gmra.mxu0 %v3214
    %v4156 = vpop.f32.mrf.mxu0
    %v4157 = vadd.f32 %v4128, %v4156
    %v4158 = vpop.f32.mrf.mxu0
    %v4159 = vadd.f32 %v4130, %v4158
    %4160 = vmatmul.bf16.gmra.mxu0 %v3218
    %v4161 = vpop.f32.mrf.mxu0
    %v4162 = vadd.f32 %v4133, %v4161
    %v4163 = vpop.f32.mrf.mxu0
    %v4164 = vadd.f32 %v4135, %v4163
    %4165 = vmatmul.bf16.gmra.mxu0 %v3222
    %v4166 = vpop.f32.mrf.mxu0
    %v4167 = vadd.f32 %v4138, %v4166
    %v4168 = vpop.f32.mrf.mxu0
    %v4169 = vadd.f32 %v4140, %v4168
    %4170 = vdwg.mxu0
    %4171 = vmatpush.bf16.msra.mxu0 %v3719
    %4172 = vmatpush.bf16.msra.mxu0 %v3715
    %4173 = vmatpush.bf16.msra.mxu0 %v3711
    %4174 = vmatpush.bf16.msra.mxu0 %v3707
    %4175 = vmatpush.bf16.msra.mxu0 %v3703
    %4176 = vmatpush.bf16.msra.mxu0 %v3699
    %4177 = vmatpush.bf16.msra.mxu0 %v3695
    %4178 = vmatpush.bf16.msra.mxu0 %v3691
    %4179 = vmatmul.bf16.gmra.mxu0 %v3211
    %v4180 = vpop.f32.mrf.mxu0
    %v4181 = vadd.f32 %v4152, %v4180
    %v4182 = vpop.f32.mrf.mxu0
    %v4183 = vadd.f32 %v4154, %v4182
    %4184 = vmatmul.bf16.gmra.mxu0 %v3215
    %v4185 = vpop.f32.mrf.mxu0
    %v4186 = vadd.f32 %v4157, %v4185
    %v4187 = vpop.f32.mrf.mxu0
    %v4188 = vadd.f32 %v4159, %v4187
    %4189 = vmatmul.bf16.gmra.mxu0 %v3219
    %v4190 = vpop.f32.mrf.mxu0
    %v4191 = vadd.f32 %v4162, %v4190
    %v4192 = vpop.f32.mrf.mxu0
    %v4193 = vadd.f32 %v4164, %v4192
    %4194 = vmatmul.bf16.gmra.mxu0 %v3223
    %v4195 = vpop.f32.mrf.mxu0
    %v4196 = vadd.f32 %v4167, %v4195
    %v4197 = vpop.f32.mrf.mxu0
    %v4198 = vadd.f32 %v4169, %v4197
    %4199 = vdwg.mxu0
    %4200 = vmatpush.bf16.msra.mxu0 %v3751
    %4201 = vmatpush.bf16.msra.mxu0 %v3747
    %4202 = vmatpush.bf16.msra.mxu0 %v3743
    %4203 = vmatpush.bf16.msra.mxu0 %v3739
    %4204 = vmatpush.bf16.msra.mxu0 %v3735
    %4205 = vmatpush.bf16.msra.mxu0 %v3731
    %4206 = vmatpush.bf16.msra.mxu0 %v3727
    %4207 = vmatpush.bf16.msra.mxu0 %v3723
    %4208 = vmatmul.bf16.gmra.mxu0 %v3212
    %v4209 = vpop.f32.mrf.mxu0
    %v4210 = vadd.f32 %v4181, %v4209
    %v4211 = vpop.f32.mrf.mxu0
    %v4212 = vadd.f32 %v4183, %v4211
    %4213 = vmatmul.bf16.gmra.mxu0 %v3216
    %v4214 = vpop.f32.mrf.mxu0
    %v4215 = vadd.f32 %v4186, %v4214
    %v4216 = vpop.f32.mrf.mxu0
    %v4217 = vadd.f32 %v4188, %v4216
    %4218 = vmatmul.bf16.gmra.mxu0 %v3220
    %v4219 = vpop.f32.mrf.mxu0
    %v4220 = vadd.f32 %v4191, %v4219
    %v4221 = vpop.f32.mrf.mxu0
    %v4222 = vadd.f32 %v4193, %v4221
    %4223 = vmatmul.bf16.gmra.mxu0 %v3224
    %v4224 = vpop.f32.mrf.mxu0
    %v4225 = vadd.f32 %v4196, %v4224
    %v4226 = vpop.f32.mrf.mxu0
    %v4227 = vadd.f32 %v4198, %v4226
    %4228 = vdwg.mxu0
    %4229 = vmatpush.bf16.msra.mxu0 %v3656
    %4230 = vmatpush.bf16.msra.mxu0 %v3652
    %4231 = vmatpush.bf16.msra.mxu0 %v3648
    %4232 = vmatpush.bf16.msra.mxu0 %v3644
    %4233 = vmatpush.bf16.msra.mxu0 %v3640
    %4234 = vmatpush.bf16.msra.mxu0 %v3636
    %4235 = vmatpush.bf16.msra.mxu0 %v3632
    %4236 = vmatpush.bf16.msra.mxu0 %v3628
    %4237 = vmatmul.bf16.gmra.mxu0 %v3209
    %v4238 = vpop.f32.mrf.mxu0
    %v4239 = vadd.f32 0.0, %v4238
    %v4240 = vpop.f32.mrf.mxu0
    %v4241 = vadd.f32 0.0, %v4240
    %4242 = vmatmul.bf16.gmra.mxu0 %v3213
    %v4243 = vpop.f32.mrf.mxu0
    %v4244 = vadd.f32 0.0, %v4243
    %v4245 = vpop.f32.mrf.mxu0
    %v4246 = vadd.f32 0.0, %v4245
    %4247 = vmatmul.bf16.gmra.mxu0 %v3217
    %v4248 = vpop.f32.mrf.mxu0
    %v4249 = vadd.f32 0.0, %v4248
    %v4250 = vpop.f32.mrf.mxu0
    %v4251 = vadd.f32 0.0, %v4250
    %4252 = vmatmul.bf16.gmra.mxu0 %v3221
    %v4253 = vpop.f32.mrf.mxu0
    %v4254 = vadd.f32 0.0, %v4253
    %v4255 = vpop.f32.mrf.mxu0
    %v4256 = vadd.f32 0.0, %v4255
    %4257 = vdwg.mxu0
    %4258 = vmatpush.bf16.msra.mxu0 %v3688
    %4259 = vmatpush.bf16.msra.mxu0 %v3684
    %4260 = vmatpush.bf16.msra.mxu0 %v3680
    %4261 = vmatpush.bf16.msra.mxu0 %v3676
    %4262 = vmatpush.bf16.msra.mxu0 %v3672
    %4263 = vmatpush.bf16.msra.mxu0 %v3668
    %4264 = vmatpush.bf16.msra.mxu0 %v3664
    %4265 = vmatpush.bf16.msra.mxu0 %v3660
    %4266 = vmatmul.bf16.gmra.mxu0 %v3210
    %v4267 = vpop.f32.mrf.mxu0
    %v4268 = vadd.f32 %v4239, %v4267
    %v4269 = vpop.f32.mrf.mxu0
    %v4270 = vadd.f32 %v4241, %v4269
    %4271 = vmatmul.bf16.gmra.mxu0 %v3214
    %v4272 = vpop.f32.mrf.mxu0
    %v4273 = vadd.f32 %v4244, %v4272
    %v4274 = vpop.f32.mrf.mxu0
    %v4275 = vadd.f32 %v4246, %v4274
    %4276 = vmatmul.bf16.gmra.mxu0 %v3218
    %v4277 = vpop.f32.mrf.mxu0
    %v4278 = vadd.f32 %v4249, %v4277
    %v4279 = vpop.f32.mrf.mxu0
    %v4280 = vadd.f32 %v4251, %v4279
    %4281 = vmatmul.bf16.gmra.mxu0 %v3222
    %v4282 = vpop.f32.mrf.mxu0
    %v4283 = vadd.f32 %v4254, %v4282
    %v4284 = vpop.f32.mrf.mxu0
    %v4285 = vadd.f32 %v4256, %v4284
    %4286 = vdwg.mxu0
    %4287 = vmatpush.bf16.msra.mxu0 %v3720
    %4288 = vmatpush.bf16.msra.mxu0 %v3716
    %4289 = vmatpush.bf16.msra.mxu0 %v3712
    %4290 = vmatpush.bf16.msra.mxu0 %v3708
    %4291 = vmatpush.bf16.msra.mxu0 %v3704
    %4292 = vmatpush.bf16.msra.mxu0 %v3700
    %4293 = vmatpush.bf16.msra.mxu0 %v3696
    %4294 = vmatpush.bf16.msra.mxu0 %v3692
    %4295 = vmatmul.bf16.gmra.mxu0 %v3211
    %v4296 = vpop.f32.mrf.mxu0
    %v4297 = vadd.f32 %v4268, %v4296
    %v4298 = vpop.f32.mrf.mxu0
    %v4299 = vadd.f32 %v4270, %v4298
    %4300 = vmatmul.bf16.gmra.mxu0 %v3215
    %v4301 = vpop.f32.mrf.mxu0
    %v4302 = vadd.f32 %v4273, %v4301
    %v4303 = vpop.f32.mrf.mxu0
    %v4304 = vadd.f32 %v4275, %v4303
    %4305 = vmatmul.bf16.gmra.mxu0 %v3219
    %v4306 = vpop.f32.mrf.mxu0
    %v4307 = vadd.f32 %v4278, %v4306
    %v4308 = vpop.f32.mrf.mxu0
    %v4309 = vadd.f32 %v4280, %v4308
    %4310 = vmatmul.bf16.gmra.mxu0 %v3223
    %v4311 = vpop.f32.mrf.mxu0
    %v4312 = vadd.f32 %v4283, %v4311
    %v4313 = vpop.f32.mrf.mxu0
    %v4314 = vadd.f32 %v4285, %v4313
    %4315 = vdwg.mxu0
    %4316 = vmatpush.bf16.msra.mxu0 %v3752
    %4317 = vmatpush.bf16.msra.mxu0 %v3748
    %4318 = vmatpush.bf16.msra.mxu0 %v3744
    %4319 = vmatpush.bf16.msra.mxu0 %v3740
    %4320 = vmatpush.bf16.msra.mxu0 %v3736
    %4321 = vmatpush.bf16.msra.mxu0 %v3732
    %4322 = vmatpush.bf16.msra.mxu0 %v3728
    %4323 = vmatpush.bf16.msra.mxu0 %v3724
    %4324 = vmatmul.bf16.gmra.mxu0 %v3212
    %v4325 = vpop.f32.mrf.mxu0
    %v4326 = vadd.f32 %v4297, %v4325
    %v4327 = vpop.f32.mrf.mxu0
    %v4328 = vadd.f32 %v4299, %v4327
    %4329 = vmatmul.bf16.gmra.mxu0 %v3216
    %v4330 = vpop.f32.mrf.mxu0
    %v4331 = vadd.f32 %v4302, %v4330
    %v4332 = vpop.f32.mrf.mxu0
    %v4333 = vadd.f32 %v4304, %v4332
    %4334 = vmatmul.bf16.gmra.mxu0 %v3220
    %v4335 = vpop.f32.mrf.mxu0
    %v4336 = vadd.f32 %v4307, %v4335
    %v4337 = vpop.f32.mrf.mxu0
    %v4338 = vadd.f32 %v4309, %v4337
    %4339 = vmatmul.bf16.gmra.mxu0 %v3224
    %v4340 = vpop.f32.mrf.mxu0
    %v4341 = vadd.f32 %v4312, %v4340
    %v4342 = vpop.f32.mrf.mxu0
    %v4343 = vadd.f32 %v4314, %v4342
    %4344 = vdwg.mxu0
    %4345 = vst [vmem:[#allocation2] sm:$0xff] %v3978
    %4346 = vst [vmem:[#allocation2 + $0x8] sm:$0xff] %v4094
    %4347 = vst [vmem:[#allocation2 + $0x10] sm:$0xff] %v4210
    %4348 = vst [vmem:[#allocation2 + $0x18] sm:$0xff] %v4326
    %4349 = vst [vmem:[#allocation2 + $0x20] sm:$0xff] %v3980
    %4350 = vst [vmem:[#allocation2 + $0x28] sm:$0xff] %v4096
    %4351 = vst [vmem:[#allocation2 + $0x30] sm:$0xff] %v4212
    %4352 = vst [vmem:[#allocation2 + $0x38] sm:$0xff] %v4328
    %4353 = vst [vmem:[#allocation2 + $0x40] sm:$0xff] %v3983
    %4354 = vst [vmem:[#allocation2 + $0x48] sm:$0xff] %v4099
    %4355 = vst [vmem:[#allocation2 + $0x50] sm:$0xff] %v4215
    %4356 = vst [vmem:[#allocation2 + $0x58] sm:$0xff] %v4331
    %4357 = vst [vmem:[#allocation2 + $0x60] sm:$0xff] %v3985
    %4358 = vst [vmem:[#allocation2 + $0x68] sm:$0xff] %v4101
    %4359 = vst [vmem:[#allocation2 + $0x70] sm:$0xff] %v4217
    %4360 = vst [vmem:[#allocation2 + $0x78] sm:$0xff] %v4333
    %4361 = vst [vmem:[#allocation2 + $0x80] sm:$0xff] %v3988
    %4362 = vst [vmem:[#allocation2 + $0x88] sm:$0xff] %v4104
    %4363 = vst [vmem:[#allocation2 + $0x90] sm:$0xff] %v4220
    %4364 = vst [vmem:[#allocation2 + $0x98] sm:$0xff] %v4336
    %4365 = vst [vmem:[#allocation2 + $0xa0] sm:$0xff] %v3990
    %4366 = vst [vmem:[#allocation2 + $0xa8] sm:$0xff] %v4106
    %4367 = vst [vmem:[#allocation2 + $0xb0] sm:$0xff] %v4222
    %4368 = vst [vmem:[#allocation2 + $0xb8] sm:$0xff] %v4338
    %4369 = vst [vmem:[#allocation2 + $0xc0] sm:$0xff] %v3993
    %4370 = vst [vmem:[#allocation2 + $0xc8] sm:$0xff] %v4109
    %4371 = vst [vmem:[#allocation2 + $0xd0] sm:$0xff] %v4225
    %4372 = vst [vmem:[#allocation2 + $0xd8] sm:$0xff] %v4341
    %4373 = vst [vmem:[#allocation2 + $0xe0] sm:$0xff] %v3995
    %4374 = vst [vmem:[#allocation2 + $0xe8] sm:$0xff] %v4111
    %4375 = vst [vmem:[#allocation2 + $0xf0] sm:$0xff] %v4227
    %4376 = vst [vmem:[#allocation2 + $0xf8] sm:$0xff] %v4343
    %v4377 = vld [vmem:[#allocation2] sm:$0xff]
    %v4378 = vld [vmem:[#allocation2 + $0x8] sm:$0xff]
    %v4379 = vld [vmem:[#allocation2 + $0x10] sm:$0xff]
    %v4380 = vld [vmem:[#allocation2 + $0x18] sm:$0xff]
    %v4381 = vadd.f32 %v4377, 0.0
    %v4382 = vadd.f32 %v4378, 0.0
    %v4383 = vadd.f32 %v4379, 0.0
    %v4384 = vadd.f32 %v4380, 0.0
    %vm4385 = vcmp.ge.f32.partialorder %v4381, 0.1
    %vm4386 = vcmp.ge.f32.partialorder %v4382, 0.1
    %vm4387 = vcmp.ge.f32.partialorder %v4383, 0.1
    %vm4388 = vcmp.ge.f32.partialorder %v4384, 0.1
    %v4389 = vsel %vm4385, 1, 0
    %v4390 = vsel %vm4386, 1, 0
    %v4391 = vsel %vm4387, 1, 0
    %v4392 = vsel %vm4388, 1, 0
    %v4393 = vcvt.s32.f32 %v4389
    %v4394 = vcvt.s32.f32 %v4390
    %v4395 = vcvt.s32.f32 %v4391
    %v4396 = vcvt.s32.f32 %v4392
    %v4397 = vpack.c.bf16 %v4394, %v4393
    %v4398 = vpack.c.bf16 %v4396, %v4395
    %4399 = vst [vmem:[#allocation5] sm:$0xff] %v4397
    %4400 = vst [vmem:[#allocation5 + $0x8] sm:$0xff] %v4398
    %v4401 = vsel %vm4385, 0.0, %v4381
    %v4402 = vsel %vm4386, 0.0, %v4382
    %v4403 = vsel %vm4387, 0.0, %v4383
    %v4404 = vsel %vm4388, 0.0, %v4384
    %v4405 = vld [vmem:[%s2314] sm:$0xff]
    %v4406 = vld [vmem:[%s2314 + $0x8] sm:$0xff]
    %v4407 = vld [vmem:[%s2314 + $0x10] sm:$0xff]
    %v4408 = vld [vmem:[%s2314 + $0x18] sm:$0xff]
    %v4409 = vmul.f32 %v4401, 0.99
    %v4410 = vmul.f32 %v4402, 0.99
    %v4411 = vmul.f32 %v4403, 0.99
    %v4412 = vmul.f32 %v4404, 0.99
    %v4413 = vadd.f32 %v4409, %v4405
    %v4414 = vadd.f32 %v4410, %v4406
    %v4415 = vadd.f32 %v4411, %v4407
    %v4416 = vadd.f32 %v4412, %v4408
    %vm4417 = vcmp.ge.f32.partialorder %v4413, 0.1
    %vm4418 = vcmp.ge.f32.partialorder %v4414, 0.1
    %vm4419 = vcmp.ge.f32.partialorder %v4415, 0.1
    %vm4420 = vcmp.ge.f32.partialorder %v4416, 0.1
    %v4421 = vsel %vm4417, 1, 0
    %v4422 = vsel %vm4418, 1, 0
    %v4423 = vsel %vm4419, 1, 0
    %v4424 = vsel %vm4420, 1, 0
    %v4425 = vcvt.s32.f32 %v4421
    %v4426 = vcvt.s32.f32 %v4422
    %v4427 = vcvt.s32.f32 %v4423
    %v4428 = vcvt.s32.f32 %v4424
    %v4429 = vpack.c.bf16 %v4426, %v4425
    %v4430 = vpack.c.bf16 %v4428, %v4427
    %s4431 = scalar_lea.vmem [#allocation5], 16
    %4432 = vst [vmem:[%s4431] sm:$0xff] %v4429
    %4433 = vst [vmem:[%s4431 + $0x8] sm:$0xff] %v4430
    %v4434 = vsel %vm4417, 0.0, %v4413
    %v4435 = vsel %vm4418, 0.0, %v4414
    %v4436 = vsel %vm4419, 0.0, %v4415
    %v4437 = vsel %vm4420, 0.0, %v4416
    %v4438 = vld [vmem:[%s2325] sm:$0xff]
    %v4439 = vld [vmem:[%s2325 + $0x8] sm:$0xff]
    %v4440 = vld [vmem:[%s2325 + $0x10] sm:$0xff]
    %v4441 = vld [vmem:[%s2325 + $0x18] sm:$0xff]
    %v4442 = vmul.f32 %v4434, 0.99
    %v4443 = vmul.f32 %v4435, 0.99
    %v4444 = vmul.f32 %v4436, 0.99
    %v4445 = vmul.f32 %v4437, 0.99
    %v4446 = vadd.f32 %v4442, %v4438
    %v4447 = vadd.f32 %v4443, %v4439
    %v4448 = vadd.f32 %v4444, %v4440
    %v4449 = vadd.f32 %v4445, %v4441
    %vm4450 = vcmp.ge.f32.partialorder %v4446, 0.1
    %vm4451 = vcmp.ge.f32.partialorder %v4447, 0.1
    %vm4452 = vcmp.ge.f32.partialorder %v4448, 0.1
    %vm4453 = vcmp.ge.f32.partialorder %v4449, 0.1
    %v4454 = vsel %vm4450, 1, 0
    %v4455 = vsel %vm4451, 1, 0
    %v4456 = vsel %vm4452, 1, 0
    %v4457 = vsel %vm4453, 1, 0
    %v4458 = vcvt.s32.f32 %v4454
    %v4459 = vcvt.s32.f32 %v4455
    %v4460 = vcvt.s32.f32 %v4456
    %v4461 = vcvt.s32.f32 %v4457
    %v4462 = vpack.c.bf16 %v4459, %v4458
    %v4463 = vpack.c.bf16 %v4461, %v4460
    %s4464 = scalar_lea.vmem [#allocation5], 32
    %4465 = vst [vmem:[%s4464] sm:$0xff] %v4462
    %4466 = vst [vmem:[%s4464 + $0x8] sm:$0xff] %v4463
    %v4467 = vsel %vm4450, 0.0, %v4446
    %v4468 = vsel %vm4451, 0.0, %v4447
    %v4469 = vsel %vm4452, 0.0, %v4448
    %v4470 = vsel %vm4453, 0.0, %v4449
    %v4471 = vld [vmem:[%s2336] sm:$0xff]
    %v4472 = vld [vmem:[%s2336 + $0x8] sm:$0xff]
    %v4473 = vld [vmem:[%s2336 + $0x10] sm:$0xff]
    %v4474 = vld [vmem:[%s2336 + $0x18] sm:$0xff]
    %v4475 = vmul.f32 %v4467, 0.99
    %v4476 = vmul.f32 %v4468, 0.99
    %v4477 = vmul.f32 %v4469, 0.99
    %v4478 = vmul.f32 %v4470, 0.99
    %v4479 = vadd.f32 %v4475, %v4471
    %v4480 = vadd.f32 %v4476, %v4472
    %v4481 = vadd.f32 %v4477, %v4473
    %v4482 = vadd.f32 %v4478, %v4474
    %vm4483 = vcmp.ge.f32.partialorder %v4479, 0.1
    %vm4484 = vcmp.ge.f32.partialorder %v4480, 0.1
    %vm4485 = vcmp.ge.f32.partialorder %v4481, 0.1
    %vm4486 = vcmp.ge.f32.partialorder %v4482, 0.1
    %v4487 = vsel %vm4483, 1, 0
    %v4488 = vsel %vm4484, 1, 0
    %v4489 = vsel %vm4485, 1, 0
    %v4490 = vsel %vm4486, 1, 0
    %v4491 = vcvt.s32.f32 %v4487
    %v4492 = vcvt.s32.f32 %v4488
    %v4493 = vcvt.s32.f32 %v4489
    %v4494 = vcvt.s32.f32 %v4490
    %v4495 = vpack.c.bf16 %v4492, %v4491
    %v4496 = vpack.c.bf16 %v4494, %v4493
    %s4497 = scalar_lea.vmem [#allocation5], 48
    %4498 = vst [vmem:[%s4497] sm:$0xff] %v4495
    %4499 = vst [vmem:[%s4497 + $0x8] sm:$0xff] %v4496
    %v4500 = vsel %vm4483, 0.0, %v4479
    %v4501 = vsel %vm4484, 0.0, %v4480
    %v4502 = vsel %vm4485, 0.0, %v4481
    %v4503 = vsel %vm4486, 0.0, %v4482
    %v4504 = vld [vmem:[%s2347] sm:$0xff]
    %v4505 = vld [vmem:[%s2347 + $0x8] sm:$0xff]
    %v4506 = vld [vmem:[%s2347 + $0x10] sm:$0xff]
    %v4507 = vld [vmem:[%s2347 + $0x18] sm:$0xff]
    %v4508 = vmul.f32 %v4500, 0.99
    %v4509 = vmul.f32 %v4501, 0.99
    %v4510 = vmul.f32 %v4502, 0.99
    %v4511 = vmul.f32 %v4503, 0.99
    %v4512 = vadd.f32 %v4508, %v4504
    %v4513 = vadd.f32 %v4509, %v4505
    %v4514 = vadd.f32 %v4510, %v4506
    %v4515 = vadd.f32 %v4511, %v4507
    %vm4516 = vcmp.ge.f32.partialorder %v4512, 0.1
    %vm4517 = vcmp.ge.f32.partialorder %v4513, 0.1
    %vm4518 = vcmp.ge.f32.partialorder %v4514, 0.1
    %vm4519 = vcmp.ge.f32.partialorder %v4515, 0.1
    %v4520 = vsel %vm4516, 1, 0
    %v4521 = vsel %vm4517, 1, 0
    %v4522 = vsel %vm4518, 1, 0
    %v4523 = vsel %vm4519, 1, 0
    %v4524 = vcvt.s32.f32 %v4520
    %v4525 = vcvt.s32.f32 %v4521
    %v4526 = vcvt.s32.f32 %v4522
    %v4527 = vcvt.s32.f32 %v4523
    %v4528 = vpack.c.bf16 %v4525, %v4524
    %v4529 = vpack.c.bf16 %v4527, %v4526
    %s4530 = scalar_lea.vmem [#allocation5], 64
    %4531 = vst [vmem:[%s4530] sm:$0xff] %v4528
    %4532 = vst [vmem:[%s4530 + $0x8] sm:$0xff] %v4529
    %v4533 = vsel %vm4516, 0.0, %v4512
    %v4534 = vsel %vm4517, 0.0, %v4513
    %v4535 = vsel %vm4518, 0.0, %v4514
    %v4536 = vsel %vm4519, 0.0, %v4515
    %v4537 = vld [vmem:[%s2358] sm:$0xff]
    %v4538 = vld [vmem:[%s2358 + $0x8] sm:$0xff]
    %v4539 = vld [vmem:[%s2358 + $0x10] sm:$0xff]
    %v4540 = vld [vmem:[%s2358 + $0x18] sm:$0xff]
    %v4541 = vmul.f32 %v4533, 0.99
    %v4542 = vmul.f32 %v4534, 0.99
    %v4543 = vmul.f32 %v4535, 0.99
    %v4544 = vmul.f32 %v4536, 0.99
    %v4545 = vadd.f32 %v4541, %v4537
    %v4546 = vadd.f32 %v4542, %v4538
    %v4547 = vadd.f32 %v4543, %v4539
    %v4548 = vadd.f32 %v4544, %v4540
    %vm4549 = vcmp.ge.f32.partialorder %v4545, 0.1
    %vm4550 = vcmp.ge.f32.partialorder %v4546, 0.1
    %vm4551 = vcmp.ge.f32.partialorder %v4547, 0.1
    %vm4552 = vcmp.ge.f32.partialorder %v4548, 0.1
    %v4553 = vsel %vm4549, 1, 0
    %v4554 = vsel %vm4550, 1, 0
    %v4555 = vsel %vm4551, 1, 0
    %v4556 = vsel %vm4552, 1, 0
    %v4557 = vcvt.s32.f32 %v4553
    %v4558 = vcvt.s32.f32 %v4554
    %v4559 = vcvt.s32.f32 %v4555
    %v4560 = vcvt.s32.f32 %v4556
    %v4561 = vpack.c.bf16 %v4558, %v4557
    %v4562 = vpack.c.bf16 %v4560, %v4559
    %s4563 = scalar_lea.vmem [#allocation5], 80
    %4564 = vst [vmem:[%s4563] sm:$0xff] %v4561
    %4565 = vst [vmem:[%s4563 + $0x8] sm:$0xff] %v4562
    %v4566 = vsel %vm4549, 0.0, %v4545
    %v4567 = vsel %vm4550, 0.0, %v4546
    %v4568 = vsel %vm4551, 0.0, %v4547
    %v4569 = vsel %vm4552, 0.0, %v4548
    %v4570 = vld [vmem:[%s2369] sm:$0xff]
    %v4571 = vld [vmem:[%s2369 + $0x8] sm:$0xff]
    %v4572 = vld [vmem:[%s2369 + $0x10] sm:$0xff]
    %v4573 = vld [vmem:[%s2369 + $0x18] sm:$0xff]
    %v4574 = vmul.f32 %v4566, 0.99
    %v4575 = vmul.f32 %v4567, 0.99
    %v4576 = vmul.f32 %v4568, 0.99
    %v4577 = vmul.f32 %v4569, 0.99
    %v4578 = vadd.f32 %v4574, %v4570
    %v4579 = vadd.f32 %v4575, %v4571
    %v4580 = vadd.f32 %v4576, %v4572
    %v4581 = vadd.f32 %v4577, %v4573
    %vm4582 = vcmp.ge.f32.partialorder %v4578, 0.1
    %vm4583 = vcmp.ge.f32.partialorder %v4579, 0.1
    %vm4584 = vcmp.ge.f32.partialorder %v4580, 0.1
    %vm4585 = vcmp.ge.f32.partialorder %v4581, 0.1
    %v4586 = vsel %vm4582, 1, 0
    %v4587 = vsel %vm4583, 1, 0
    %v4588 = vsel %vm4584, 1, 0
    %v4589 = vsel %vm4585, 1, 0
    %v4590 = vcvt.s32.f32 %v4586
    %v4591 = vcvt.s32.f32 %v4587
    %v4592 = vcvt.s32.f32 %v4588
    %v4593 = vcvt.s32.f32 %v4589
    %v4594 = vpack.c.bf16 %v4591, %v4590
    %v4595 = vpack.c.bf16 %v4593, %v4592
    %s4596 = scalar_lea.vmem [#allocation5], 96
    %4597 = vst [vmem:[%s4596] sm:$0xff] %v4594
    %4598 = vst [vmem:[%s4596 + $0x8] sm:$0xff] %v4595
    %v4599 = vsel %vm4582, 0.0, %v4578
    %v4600 = vsel %vm4583, 0.0, %v4579
    %v4601 = vsel %vm4584, 0.0, %v4580
    %v4602 = vsel %vm4585, 0.0, %v4581
    %v4603 = vld [vmem:[%s2380] sm:$0xff]
    %v4604 = vld [vmem:[%s2380 + $0x8] sm:$0xff]
    %v4605 = vld [vmem:[%s2380 + $0x10] sm:$0xff]
    %v4606 = vld [vmem:[%s2380 + $0x18] sm:$0xff]
    %v4607 = vmul.f32 %v4599, 0.99
    %v4608 = vmul.f32 %v4600, 0.99
    %v4609 = vmul.f32 %v4601, 0.99
    %v4610 = vmul.f32 %v4602, 0.99
    %v4611 = vadd.f32 %v4607, %v4603
    %v4612 = vadd.f32 %v4608, %v4604
    %v4613 = vadd.f32 %v4609, %v4605
    %v4614 = vadd.f32 %v4610, %v4606
    %vm4615 = vcmp.ge.f32.partialorder %v4611, 0.1
    %vm4616 = vcmp.ge.f32.partialorder %v4612, 0.1
    %vm4617 = vcmp.ge.f32.partialorder %v4613, 0.1
    %vm4618 = vcmp.ge.f32.partialorder %v4614, 0.1
    %v4619 = vsel %vm4615, 1, 0
    %v4620 = vsel %vm4616, 1, 0
    %v4621 = vsel %vm4617, 1, 0
    %v4622 = vsel %vm4618, 1, 0
    %v4623 = vcvt.s32.f32 %v4619
    %v4624 = vcvt.s32.f32 %v4620
    %v4625 = vcvt.s32.f32 %v4621
    %v4626 = vcvt.s32.f32 %v4622
    %v4627 = vpack.c.bf16 %v4624, %v4623
    %v4628 = vpack.c.bf16 %v4626, %v4625
    %s4629 = scalar_lea.vmem [#allocation5], 112
    %4630 = vst [vmem:[%s4629] sm:$0xff] %v4627
    %4631 = vst [vmem:[%s4629 + $0x8] sm:$0xff] %v4628
    %v4632 = vld [vmem:[#allocation5] sm:$0xff]
    %v4633 = vld [vmem:[#allocation5 + $0x8] sm:$0xff]
    %v4634 = vld [vmem:[#allocation5 + $0x10] sm:$0xff]
    %v4635 = vld [vmem:[#allocation5 + $0x18] sm:$0xff]
    %v4636 = vld [vmem:[#allocation5 + $0x20] sm:$0xff]
    %v4637 = vld [vmem:[#allocation5 + $0x28] sm:$0xff]
    %v4638 = vld [vmem:[#allocation5 + $0x30] sm:$0xff]
    %v4639 = vld [vmem:[#allocation5 + $0x38] sm:$0xff]
    %v4640 = vld [vmem:[#allocation5 + $0x40] sm:$0xff]
    %v4641 = vld [vmem:[#allocation5 + $0x48] sm:$0xff]
    %v4642 = vld [vmem:[#allocation5 + $0x50] sm:$0xff]
    %v4643 = vld [vmem:[#allocation5 + $0x58] sm:$0xff]
    %v4644 = vld [vmem:[#allocation5 + $0x60] sm:$0xff]
    %v4645 = vld [vmem:[#allocation5 + $0x68] sm:$0xff]
    %v4646 = vld [vmem:[#allocation5 + $0x70] sm:$0xff]
    %v4647 = vld [vmem:[#allocation5 + $0x78] sm:$0xff]
    %v4648 = vld [vmem:[#allocation10] sm:$0xf]
    %v4649 = vld [vmem:[#allocation10 + $0x4] sm:$0xf]
    %v4650 = vld [vmem:[#allocation10 + $0x8] sm:$0xf]
    %v4651 = vld [vmem:[#allocation10 + $0xc] sm:$0xf]
    %v4652 = vld [vmem:[#allocation10 + $0x10] sm:$0xf]
    %v4653 = vld [vmem:[#allocation10 + $0x14] sm:$0xf]
    %v4654 = vld [vmem:[#allocation10 + $0x18] sm:$0xf]
    %v4655 = vld [vmem:[#allocation10 + $0x1c] sm:$0xf]
    %v4656 = vld [vmem:[#allocation10 + $0x20] sm:$0xf]
    %v4657 = vld [vmem:[#allocation10 + $0x24] sm:$0xf]
    %v4658 = vld [vmem:[#allocation10 + $0x28] sm:$0xf]
    %v4659 = vld [vmem:[#allocation10 + $0x2c] sm:$0xf]
    %v4660 = vld [vmem:[#allocation10 + $0x30] sm:$0xf]
    %v4661 = vld [vmem:[#allocation10 + $0x34] sm:$0xf]
    %v4662 = vld [vmem:[#allocation10 + $0x38] sm:$0xf]
    %v4663 = vld [vmem:[#allocation10 + $0x3c] sm:$0xf]
    %v4664 = vld [vmem:[#allocation10 + $0x40] sm:$0xf]
    %v4665 = vld [vmem:[#allocation10 + $0x44] sm:$0xf]
    %v4666 = vld [vmem:[#allocation10 + $0x48] sm:$0xf]
    %v4667 = vld [vmem:[#allocation10 + $0x4c] sm:$0xf]
    %v4668 = vld [vmem:[#allocation10 + $0x50] sm:$0xf]
    %v4669 = vld [vmem:[#allocation10 + $0x54] sm:$0xf]
    %v4670 = vld [vmem:[#allocation10 + $0x58] sm:$0xf]
    %v4671 = vld [vmem:[#allocation10 + $0x5c] sm:$0xf]
    %v4672 = vld [vmem:[#allocation10 + $0x60] sm:$0xf]
    %v4673 = vld [vmem:[#allocation10 + $0x64] sm:$0xf]
    %v4674 = vld [vmem:[#allocation10 + $0x68] sm:$0xf]
    %v4675 = vld [vmem:[#allocation10 + $0x6c] sm:$0xf]
    %v4676 = vld [vmem:[#allocation10 + $0x70] sm:$0xf]
    %v4677 = vld [vmem:[#allocation10 + $0x74] sm:$0xf]
    %v4678 = vld [vmem:[#allocation10 + $0x78] sm:$0xf]
    %v4679 = vld [vmem:[#allocation10 + $0x7c] sm:$0xf]
    %v4680 = vld [vmem:[#allocation10 + $0x80] sm:$0xf]
    %v4681 = vld [vmem:[#allocation10 + $0x84] sm:$0xf]
    %v4682 = vld [vmem:[#allocation10 + $0x88] sm:$0xf]
    %v4683 = vld [vmem:[#allocation10 + $0x8c] sm:$0xf]
    %v4684 = vld [vmem:[#allocation10 + $0x90] sm:$0xf]
    %v4685 = vld [vmem:[#allocation10 + $0x94] sm:$0xf]
    %v4686 = vld [vmem:[#allocation10 + $0x98] sm:$0xf]
    %v4687 = vld [vmem:[#allocation10 + $0x9c] sm:$0xf]
    %v4688 = vld [vmem:[#allocation10 + $0xa0] sm:$0xf]
    %v4689 = vld [vmem:[#allocation10 + $0xa4] sm:$0xf]
    %v4690 = vld [vmem:[#allocation10 + $0xa8] sm:$0xf]
    %v4691 = vld [vmem:[#allocation10 + $0xac] sm:$0xf]
    %v4692 = vld [vmem:[#allocation10 + $0xb0] sm:$0xf]
    %v4693 = vld [vmem:[#allocation10 + $0xb4] sm:$0xf]
    %v4694 = vld [vmem:[#allocation10 + $0xb8] sm:$0xf]
    %v4695 = vld [vmem:[#allocation10 + $0xbc] sm:$0xf]
    %v4696 = vld [vmem:[#allocation10 + $0xc0] sm:$0xf]
    %v4697 = vld [vmem:[#allocation10 + $0xc4] sm:$0xf]
    %v4698 = vld [vmem:[#allocation10 + $0xc8] sm:$0xf]
    %v4699 = vld [vmem:[#allocation10 + $0xcc] sm:$0xf]
    %v4700 = vld [vmem:[#allocation10 + $0xd0] sm:$0xf]
    %v4701 = vld [vmem:[#allocation10 + $0xd4] sm:$0xf]
    %v4702 = vld [vmem:[#allocation10 + $0xd8] sm:$0xf]
    %v4703 = vld [vmem:[#allocation10 + $0xdc] sm:$0xf]
    %v4704 = vld [vmem:[#allocation10 + $0xe0] sm:$0xf]
    %v4705 = vld [vmem:[#allocation10 + $0xe4] sm:$0xf]
    %v4706 = vld [vmem:[#allocation10 + $0xe8] sm:$0xf]
    %v4707 = vld [vmem:[#allocation10 + $0xec] sm:$0xf]
    %v4708 = vld [vmem:[#allocation10 + $0xf0] sm:$0xf]
    %v4709 = vld [vmem:[#allocation10 + $0xf4] sm:$0xf]
    %v4710 = vld [vmem:[#allocation10 + $0xf8] sm:$0xf]
    %v4711 = vld [vmem:[#allocation10 + $0xfc] sm:$0xf]
    %v4728 = vunpack.c.l.b16 %v4632
    %v4729 = vunpack.c.h.b16 %v4632
    %v4730 = vunpack.c.l.b16 %v4633
    %v4731 = vunpack.c.h.b16 %v4633
    %v4732 = vunpack.c.l.b16 %v4634
    %v4733 = vunpack.c.h.b16 %v4634
    %v4734 = vunpack.c.l.b16 %v4635
    %v4735 = vunpack.c.h.b16 %v4635
    %v4736 = vunpack.c.l.b16 %v4636
    %v4737 = vunpack.c.h.b16 %v4636
    %v4738 = vunpack.c.l.b16 %v4637
    %v4739 = vunpack.c.h.b16 %v4637
    %v4740 = vunpack.c.l.b16 %v4638
    %v4741 = vunpack.c.h.b16 %v4638
    %v4742 = vunpack.c.l.b16 %v4639
    %v4743 = vunpack.c.h.b16 %v4639
    %v4744 = vunpack.c.l.b16 %v4640
    %v4745 = vunpack.c.h.b16 %v4640
    %v4746 = vunpack.c.l.b16 %v4641
    %v4747 = vunpack.c.h.b16 %v4641
    %v4748 = vunpack.c.l.b16 %v4642
    %v4749 = vunpack.c.h.b16 %v4642
    %v4750 = vunpack.c.l.b16 %v4643
    %v4751 = vunpack.c.h.b16 %v4643
    %v4752 = vunpack.c.l.b16 %v4644
    %v4753 = vunpack.c.h.b16 %v4644
    %v4754 = vunpack.c.l.b16 %v4645
    %v4755 = vunpack.c.h.b16 %v4645
    %v4756 = vunpack.c.l.b16 %v4646
    %v4757 = vunpack.c.h.b16 %v4646
    %v4758 = vunpack.c.l.b16 %v4647
    %v4759 = vunpack.c.h.b16 %v4647
    %v4760 = vpack.c.b16 %v4732, %v4728
    %v4761 = vpack.c.b16 %v4733, %v4729
    %v4762 = vpack.c.b16 %v4734, %v4730
    %v4763 = vpack.c.b16 %v4735, %v4731
    %v4764 = vpack.c.b16 %v4740, %v4736
    %v4765 = vpack.c.b16 %v4741, %v4737
    %v4766 = vpack.c.b16 %v4742, %v4738
    %v4767 = vpack.c.b16 %v4743, %v4739
    %v4768 = vpack.c.b16 %v4748, %v4744
    %v4769 = vpack.c.b16 %v4749, %v4745
    %v4770 = vpack.c.b16 %v4750, %v4746
    %v4771 = vpack.c.b16 %v4751, %v4747
    %v4772 = vpack.c.b16 %v4756, %v4752
    %v4773 = vpack.c.b16 %v4757, %v4753
    %v4774 = vpack.c.b16 %v4758, %v4754
    %v4775 = vpack.c.b16 %v4759, %v4755
    %v4856 = vunpack.c.l.b16 %v4648
    %v4857 = vunpack.c.l.b16 %v4649
    %v4858 = vunpack.c.l.b16 %v4650
    %v4859 = vunpack.c.l.b16 %v4651
    %v4860 = vunpack.c.l.b16 %v4652
    %v4861 = vunpack.c.l.b16 %v4653
    %v4862 = vunpack.c.l.b16 %v4654
    %v4863 = vunpack.c.l.b16 %v4655
    %v4864 = vunpack.c.l.b16 %v4656
    %v4865 = vunpack.c.l.b16 %v4657
    %v4866 = vunpack.c.l.b16 %v4658
    %v4867 = vunpack.c.l.b16 %v4659
    %v4868 = vunpack.c.l.b16 %v4660
    %v4869 = vunpack.c.l.b16 %v4661
    %v4870 = vunpack.c.l.b16 %v4662
    %v4871 = vunpack.c.l.b16 %v4663
    %v4872 = vunpack.c.l.b16 %v4664
    %v4873 = vunpack.c.l.b16 %v4665
    %v4874 = vunpack.c.l.b16 %v4666
    %v4875 = vunpack.c.l.b16 %v4667
    %v4876 = vunpack.c.l.b16 %v4668
    %v4877 = vunpack.c.l.b16 %v4669
    %v4878 = vunpack.c.l.b16 %v4670
    %v4879 = vunpack.c.l.b16 %v4671
    %v4880 = vunpack.c.l.b16 %v4672
    %v4881 = vunpack.c.l.b16 %v4673
    %v4882 = vunpack.c.l.b16 %v4674
    %v4883 = vunpack.c.l.b16 %v4675
    %v4884 = vunpack.c.l.b16 %v4676
    %v4885 = vunpack.c.l.b16 %v4677
    %v4886 = vunpack.c.l.b16 %v4678
    %v4887 = vunpack.c.l.b16 %v4679
    %v4888 = vunpack.c.l.b16 %v4680
    %v4889 = vunpack.c.l.b16 %v4681
    %v4890 = vunpack.c.l.b16 %v4682
    %v4891 = vunpack.c.l.b16 %v4683
    %v4892 = vunpack.c.l.b16 %v4684
    %v4893 = vunpack.c.l.b16 %v4685
    %v4894 = vunpack.c.l.b16 %v4686
    %v4895 = vunpack.c.l.b16 %v4687
    %v4896 = vunpack.c.l.b16 %v4688
    %v4897 = vunpack.c.l.b16 %v4689
    %v4898 = vunpack.c.l.b16 %v4690
    %v4899 = vunpack.c.l.b16 %v4691
    %v4900 = vunpack.c.l.b16 %v4692
    %v4901 = vunpack.c.l.b16 %v4693
    %v4902 = vunpack.c.l.b16 %v4694
    %v4903 = vunpack.c.l.b16 %v4695
    %v4904 = vunpack.c.l.b16 %v4696
    %v4905 = vunpack.c.l.b16 %v4697
    %v4906 = vunpack.c.l.b16 %v4698
    %v4907 = vunpack.c.l.b16 %v4699
    %v4908 = vunpack.c.l.b16 %v4700
    %v4909 = vunpack.c.l.b16 %v4701
    %v4910 = vunpack.c.l.b16 %v4702
    %v4911 = vunpack.c.l.b16 %v4703
    %v4912 = vunpack.c.l.b16 %v4704
    %v4913 = vunpack.c.l.b16 %v4705
    %v4914 = vunpack.c.l.b16 %v4706
    %v4915 = vunpack.c.l.b16 %v4707
    %v4916 = vunpack.c.l.b16 %v4708
    %v4917 = vunpack.c.l.b16 %v4709
    %v4918 = vunpack.c.l.b16 %v4710
    %v4919 = vunpack.c.l.b16 %v4711
    %v4920 = vpack.c.b16 %v4857, %v4856
    %v4921 = vpack.c.b16 %v4859, %v4858
    %v4922 = vpack.c.b16 %v4861, %v4860
    %v4923 = vpack.c.b16 %v4863, %v4862
    %v4924 = vpack.c.b16 %v4865, %v4864
    %v4925 = vpack.c.b16 %v4867, %v4866
    %v4926 = vpack.c.b16 %v4869, %v4868
    %v4927 = vpack.c.b16 %v4871, %v4870
    %v4928 = vpack.c.b16 %v4873, %v4872
    %v4929 = vpack.c.b16 %v4875, %v4874
    %v4930 = vpack.c.b16 %v4877, %v4876
    %v4931 = vpack.c.b16 %v4879, %v4878
    %v4932 = vpack.c.b16 %v4881, %v4880
    %v4933 = vpack.c.b16 %v4883, %v4882
    %v4934 = vpack.c.b16 %v4885, %v4884
    %v4935 = vpack.c.b16 %v4887, %v4886
    %v4936 = vpack.c.b16 %v4889, %v4888
    %v4937 = vpack.c.b16 %v4891, %v4890
    %v4938 = vpack.c.b16 %v4893, %v4892
    %v4939 = vpack.c.b16 %v4895, %v4894
    %v4940 = vpack.c.b16 %v4897, %v4896
    %v4941 = vpack.c.b16 %v4899, %v4898
    %v4942 = vpack.c.b16 %v4901, %v4900
    %v4943 = vpack.c.b16 %v4903, %v4902
    %v4944 = vpack.c.b16 %v4905, %v4904
    %v4945 = vpack.c.b16 %v4907, %v4906
    %v4946 = vpack.c.b16 %v4909, %v4908
    %v4947 = vpack.c.b16 %v4911, %v4910
    %v4948 = vpack.c.b16 %v4913, %v4912
    %v4949 = vpack.c.b16 %v4915, %v4914
    %v4950 = vpack.c.b16 %v4917, %v4916
    %v4951 = vpack.c.b16 %v4919, %v4918
    %4984 = vmatpush.bf16.msra.mxu0 %v4927
    %4985 = vmatpush.bf16.msra.mxu0 %v4926
    %4986 = vmatpush.bf16.msra.mxu0 %v4925
    %4987 = vmatpush.bf16.msra.mxu0 %v4924
    %4988 = vmatpush.bf16.msra.mxu0 %v4923
    %4989 = vmatpush.bf16.msra.mxu0 %v4922
    %4990 = vmatpush.bf16.msra.mxu0 %v4921
    %4991 = vmatpush.bf16.msra.mxu0 %v4920
    %4992 = vmatmul.bf16.gmra.mxu0 %v4760
    %v4993 = vpop.f32.mrf.mxu0
    %v4994 = vadd.f32 0.0, %v4993
    %v4995 = vpop.f32.mrf.mxu0
    %v4996 = vadd.f32 0.0, %v4995
    %4997 = vmatmul.bf16.gmra.mxu0 %v4764
    %v4998 = vpop.f32.mrf.mxu0
    %v4999 = vadd.f32 0.0, %v4998
    %v5000 = vpop.f32.mrf.mxu0
    %v5001 = vadd.f32 0.0, %v5000
    %5002 = vmatmul.bf16.gmra.mxu0 %v4768
    %v5003 = vpop.f32.mrf.mxu0
    %v5004 = vadd.f32 0.0, %v5003
    %v5005 = vpop.f32.mrf.mxu0
    %v5006 = vadd.f32 0.0, %v5005
    %5007 = vmatmul.bf16.gmra.mxu0 %v4772
    %v5008 = vpop.f32.mrf.mxu0
    %v5009 = vadd.f32 0.0, %v5008
    %v5010 = vpop.f32.mrf.mxu0
    %v5011 = vadd.f32 0.0, %v5010
    %5012 = vdwg.mxu0
    %5013 = vmatpush.bf16.msra.mxu0 %v4935
    %5014 = vmatpush.bf16.msra.mxu0 %v4934
    %5015 = vmatpush.bf16.msra.mxu0 %v4933
    %5016 = vmatpush.bf16.msra.mxu0 %v4932
    %5017 = vmatpush.bf16.msra.mxu0 %v4931
    %5018 = vmatpush.bf16.msra.mxu0 %v4930
    %5019 = vmatpush.bf16.msra.mxu0 %v4929
    %5020 = vmatpush.bf16.msra.mxu0 %v4928
    %5021 = vmatmul.bf16.gmra.mxu0 %v4761
    %v5022 = vpop.f32.mrf.mxu0
    %v5023 = vadd.f32 %v4994, %v5022
    %v5024 = vpop.f32.mrf.mxu0
    %v5025 = vadd.f32 %v4996, %v5024
    %5026 = vmatmul.bf16.gmra.mxu0 %v4765
    %v5027 = vpop.f32.mrf.mxu0
    %v5028 = vadd.f32 %v4999, %v5027
    %v5029 = vpop.f32.mrf.mxu0
    %v5030 = vadd.f32 %v5001, %v5029
    %5031 = vmatmul.bf16.gmra.mxu0 %v4769
    %v5032 = vpop.f32.mrf.mxu0
    %v5033 = vadd.f32 %v5004, %v5032
    %v5034 = vpop.f32.mrf.mxu0
    %v5035 = vadd.f32 %v5006, %v5034
    %5036 = vmatmul.bf16.gmra.mxu0 %v4773
    %v5037 = vpop.f32.mrf.mxu0
    %v5038 = vadd.f32 %v5009, %v5037
    %v5039 = vpop.f32.mrf.mxu0
    %v5040 = vadd.f32 %v5011, %v5039
    %5041 = vdwg.mxu0
    %5042 = vmatpush.bf16.msra.mxu0 %v4943
    %5043 = vmatpush.bf16.msra.mxu0 %v4942
    %5044 = vmatpush.bf16.msra.mxu0 %v4941
    %5045 = vmatpush.bf16.msra.mxu0 %v4940
    %5046 = vmatpush.bf16.msra.mxu0 %v4939
    %5047 = vmatpush.bf16.msra.mxu0 %v4938
    %5048 = vmatpush.bf16.msra.mxu0 %v4937
    %5049 = vmatpush.bf16.msra.mxu0 %v4936
    %5050 = vmatmul.bf16.gmra.mxu0 %v4762
    %v5051 = vpop.f32.mrf.mxu0
    %v5052 = vadd.f32 %v5023, %v5051
    %v5053 = vpop.f32.mrf.mxu0
    %v5054 = vadd.f32 %v5025, %v5053
    %5055 = vmatmul.bf16.gmra.mxu0 %v4766
    %v5056 = vpop.f32.mrf.mxu0
    %v5057 = vadd.f32 %v5028, %v5056
    %v5058 = vpop.f32.mrf.mxu0
    %v5059 = vadd.f32 %v5030, %v5058
    %5060 = vmatmul.bf16.gmra.mxu0 %v4770
    %v5061 = vpop.f32.mrf.mxu0
    %v5062 = vadd.f32 %v5033, %v5061
    %v5063 = vpop.f32.mrf.mxu0
    %v5064 = vadd.f32 %v5035, %v5063
    %5065 = vmatmul.bf16.gmra.mxu0 %v4774
    %v5066 = vpop.f32.mrf.mxu0
    %v5067 = vadd.f32 %v5038, %v5066
    %v5068 = vpop.f32.mrf.mxu0
    %v5069 = vadd.f32 %v5040, %v5068
    %5070 = vdwg.mxu0
    %5071 = vmatpush.bf16.msra.mxu0 %v4951
    %5072 = vmatpush.bf16.msra.mxu0 %v4950
    %5073 = vmatpush.bf16.msra.mxu0 %v4949
    %5074 = vmatpush.bf16.msra.mxu0 %v4948
    %5075 = vmatpush.bf16.msra.mxu0 %v4947
    %5076 = vmatpush.bf16.msra.mxu0 %v4946
    %5077 = vmatpush.bf16.msra.mxu0 %v4945
    %5078 = vmatpush.bf16.msra.mxu0 %v4944
    %5079 = vmatmul.bf16.gmra.mxu0 %v4763
    %v5080 = vpop.f32.mrf.mxu0
    %v5081 = vadd.f32 %v5052, %v5080
    %v5082 = vpop.f32.mrf.mxu0
    %v5083 = vadd.f32 %v5054, %v5082
    %5084 = vmatmul.bf16.gmra.mxu0 %v4767
    %v5085 = vpop.f32.mrf.mxu0
    %v5086 = vadd.f32 %v5057, %v5085
    %v5087 = vpop.f32.mrf.mxu0
    %v5088 = vadd.f32 %v5059, %v5087
    %5089 = vmatmul.bf16.gmra.mxu0 %v4771
    %v5090 = vpop.f32.mrf.mxu0
    %v5091 = vadd.f32 %v5062, %v5090
    %v5092 = vpop.f32.mrf.mxu0
    %v5093 = vadd.f32 %v5064, %v5092
    %5094 = vmatmul.bf16.gmra.mxu0 %v4775
    %v5095 = vpop.f32.mrf.mxu0
    %v5096 = vadd.f32 %v5067, %v5095
    %v5097 = vpop.f32.mrf.mxu0
    %v5098 = vadd.f32 %v5069, %v5097
    %5099 = vdwg.mxu0
    %5100 = vst [vmem:[#allocation2] sm:$0xff] %v5081
    %5101 = vst [vmem:[#allocation2 + $0x20] sm:$0xff] %v5083
    %5102 = vst [vmem:[#allocation2 + $0x40] sm:$0xff] %v5086
    %5103 = vst [vmem:[#allocation2 + $0x60] sm:$0xff] %v5088
    %5104 = vst [vmem:[#allocation2 + $0x80] sm:$0xff] %v5091
    %5105 = vst [vmem:[#allocation2 + $0xa0] sm:$0xff] %v5093
    %5106 = vst [vmem:[#allocation2 + $0xc0] sm:$0xff] %v5096
    %5107 = vst [vmem:[#allocation2 + $0xe0] sm:$0xff] %v5098
    %v5108 = vld [vmem:[#allocation2] sm:$0xff]
    %v5109 = vadd.f32 %v5108, 0.0
    %vm5110 = vcmp.ge.f32.partialorder %v5109, 100000.0
    %5111 = vst [vmem:[%s5] sm:$0xff] %v5109
    %v5112 = vsel %vm5110, 0.0, %v5109
    %v5113 = vld [vmem:[%s2314] sm:$0xff]
    %v5114 = vmul.f32 %v5112, 0.99
    %v5115 = vadd.f32 %v5114, %v5113
    %vm5116 = vcmp.ge.f32.partialorder %v5115, 100000.0
    %s5117 = scalar_lea.vmem %s5, 8
    %5118 = vst [vmem:[%s5117] sm:$0xff] %v5115
    %v5119 = vsel %vm5116, 0.0, %v5115
    %v5120 = vld [vmem:[%s2325] sm:$0xff]
    %v5121 = vmul.f32 %v5119, 0.99
    %v5122 = vadd.f32 %v5121, %v5120
    %vm5123 = vcmp.ge.f32.partialorder %v5122, 100000.0
    %s5124 = scalar_lea.vmem %s5, 16
    %5125 = vst [vmem:[%s5124] sm:$0xff] %v5122
    %v5126 = vsel %vm5123, 0.0, %v5122
    %v5127 = vld [vmem:[%s2336] sm:$0xff]
    %v5128 = vmul.f32 %v5126, 0.99
    %v5129 = vadd.f32 %v5128, %v5127
    %vm5130 = vcmp.ge.f32.partialorder %v5129, 100000.0
    %s5131 = scalar_lea.vmem %s5, 24
    %5132 = vst [vmem:[%s5131] sm:$0xff] %v5129
    %v5133 = vsel %vm5130, 0.0, %v5129
    %v5134 = vld [vmem:[%s2347] sm:$0xff]
    %v5135 = vmul.f32 %v5133, 0.99
    %v5136 = vadd.f32 %v5135, %v5134
    %vm5137 = vcmp.ge.f32.partialorder %v5136, 100000.0
    %s5138 = scalar_lea.vmem %s5, 32
    %5139 = vst [vmem:[%s5138] sm:$0xff] %v5136
    %v5140 = vsel %vm5137, 0.0, %v5136
    %v5141 = vld [vmem:[%s2358] sm:$0xff]
    %v5142 = vmul.f32 %v5140, 0.99
    %v5143 = vadd.f32 %v5142, %v5141
    %vm5144 = vcmp.ge.f32.partialorder %v5143, 100000.0
    %s5145 = scalar_lea.vmem %s5, 40
    %5146 = vst [vmem:[%s5145] sm:$0xff] %v5143
    %v5147 = vsel %vm5144, 0.0, %v5143
    %v5148 = vld [vmem:[%s2369] sm:$0xff]
    %v5149 = vmul.f32 %v5147, 0.99
    %v5150 = vadd.f32 %v5149, %v5148
    %vm5151 = vcmp.ge.f32.partialorder %v5150, 100000.0
    %s5152 = scalar_lea.vmem %s5, 48
    %5153 = vst [vmem:[%s5152] sm:$0xff] %v5150
    %v5154 = vsel %vm5151, 0.0, %v5150
    %v5155 = vld [vmem:[%s2380] sm:$0xff]
    %v5156 = vmul.f32 %v5154, 0.99
    %v5157 = vadd.f32 %v5156, %v5155
    %s5158 = scalar_lea.vmem %s5, 56
    %5159 = vst [vmem:[%s5158] sm:$0xff] %v5157
    // Predicated region
    $region34: #{snn_forward.1} parent=1 // pred_check
      _
    $region35: #{snn_forward.1} parent=1 // pred_check_branch
      %5161 = sbr.rel (0) target = $region37
    $region36: #{snn_forward.1} parent=1 // pred_region
      _
    $region37: #{snn_forward.1} parent=1 // pred_fallthru
      _
    // Predicated region
    $region38: #{snn_forward.1} parent=1 // pred_check
      _
    $region39: #{snn_forward.1} parent=1 // pred_check_branch
      %5163 = sbr.rel (0) target = $region41
    $region40: #{snn_forward.1} parent=1 // pred_region
      _
    $region41: #{snn_forward.1} parent=1 // pred_fallthru
      _
    %5164 = vsyncpa [#allocation7], 1
    %5165 = vsyncpa [#allocation9], 1

</llo_original>
